<compile_context>
chip_gen: v5e
topology: v5e:2x2
jax: 0.10.0
libtpu: 0.0.40
codegen_flags: <defaults>
</compile_context>

<pallas_src>
import jax
import jax.numpy as jnp
import numpy as np
from jax import lax
from jax.experimental import pallas as pl
from jax.experimental.pallas import tpu as pltpu


# ----------------------------------------------------------------------------
# Kernels
# ----------------------------------------------------------------------------
def fused_conv_kernel(col1_ref, w1_ref, b1_ref, w2_ref, b2_ref, o_ref,
                      s1_ref, pad2_ref, s2_ref):
    """One image: conv1+relu+pool2 -> conv2+relu+pool2, entirely in VMEM.

    col1_ref: (1024, 27)  im2col of the padded 32x32x3 image, col = tap*3 + ci
    w1_ref  : (27, 16)    conv1 weights, row = (ky*3+kx)*3 + ci
    b1_ref  : (1, 16)
    w2_ref  : (9, 16, 8)  conv2 weights [tap, ci, co]
    b2_ref  : (1, 8)
    o_ref   : (64, 8)     pooled stage-2 output, row = h*8 + w, lane = channel
    scratch : s1 (1024, 16), pad2 (18, 32, 16), s2 (256, 8)
    """
    # ---- Stage 1: conv1 as ONE K=27 MXU matmul, bias + ReLU on the VPU -----
    c1 = jnp.dot(col1_ref[...], w1_ref[...], preferred_element_type=jnp.float32)
    c1 = jnp.maximum(c1 + b1_ref[...], 0.0)            # (1024, 16), row = h*32+w

    # MaxPool2d(2) on the VPU.
    # W pair-max: even/odd rows of the flat map via a stride-2 sublane read.
    s1_ref[...] = c1
    wmax = jnp.maximum(s1_ref[pl.ds(0, 512, 2), :],
                       s1_ref[pl.ds(1, 512, 2), :])    # (512, 16), row = h*16+j

    # Zero the padded stage-2 input (border = conv2's padding=1), then the
    # H pair-max writes the pooled 16x16x16 map into its interior at an
    # aligned lane... sublane offset (cols [8, 24) of a 32-wide buffer).
    pad2_ref[...] = jnp.zeros_like(pad2_ref)
    for a in range(16):                                # static unroll over h//2
        row = jnp.maximum(wmax[a * 32:a * 32 + 16, :],
                          wmax[a * 32 + 16:a * 32 + 32, :])   # (16, 16) [j, c]
        pad2_ref[1 + a, pl.ds(8, 16), :] = row

    # ---- Stage 2: conv2 (9 accumulating 3x3 taps), bias + ReLU -------------
    acc = jnp.zeros((256, 8), jnp.float32)
    for k in range(9):                                 # static unroll over taps
        dy, dx = k // 3, k % 3
        patch = pad2_ref[pl.ds(dy, 16), pl.ds(7 + dx, 16), :]   # (16, 16, 16)
        acc = acc + jnp.dot(patch.reshape(256, 16), w2_ref[k],
                            preferred_element_type=jnp.float32)
    c2 = jnp.maximum(acc + b2_ref[...], 0.0)           # (256, 8), row = h*16+w

    # MaxPool2d(2), same scheme; the H pair-max writes the output directly.
    s2_ref[...] = c2
    wmax2 = jnp.maximum(s2_ref[pl.ds(0, 128, 2), :],
                        s2_ref[pl.ds(1, 128, 2), :])   # (128, 8), row = h*8+j
    for a in range(8):
        o_ref[pl.ds(a * 8, 8), :] = jnp.maximum(wmax2[a * 16:a * 16 + 8, :],
                                                wmax2[a * 16 + 8:a * 16 + 16, :])


def mlp_kernel(x_ref, w1_ref, b1_ref, w2_ref, b2_ref, o_ref):
    """out = tanh(x @ W1 + b1) @ W2 + b2  (whole batch; W2/b2 lane-padded)."""
    h = jnp.tanh(jnp.dot(x_ref[...], w1_ref[...],
                         preferred_element_type=jnp.float32) + b1_ref[...])
    o_ref[...] = jnp.dot(h, w2_ref[...],
                         preferred_element_type=jnp.float32) + b2_ref[...]


# ----------------------------------------------------------------------------
# Wrappers
# ----------------------------------------------------------------------------
def fused_conv(col1, w1m, b1m, w2m, b2m):
    N = col1.shape[0]
    return pl.pallas_call(
        fused_conv_kernel,
        out_shape=jax.ShapeDtypeStruct((N, 64, 8), jnp.float32),
        grid=(N,),
        in_specs=[
            pl.BlockSpec((pl.Squeezed(), 1024, 27), lambda n: (n, 0, 0)),
            pl.BlockSpec((27, 16), lambda n: (0, 0)),
            pl.BlockSpec((1, 16), lambda n: (0, 0)),
            pl.BlockSpec((9, 16, 8), lambda n: (0, 0, 0)),
            pl.BlockSpec((1, 8), lambda n: (0, 0)),
        ],
        out_specs=pl.BlockSpec((pl.Squeezed(), 64, 8), lambda n: (n, 0, 0)),
        scratch_shapes=[
            pltpu.VMEM((1024, 16), jnp.float32),   # conv1 output (flat rows)
            pltpu.VMEM((18, 32, 16), jnp.float32),  # zero-padded stage-2 input
            pltpu.VMEM((256, 8), jnp.float32),      # conv2 output (flat rows)
        ],
        compiler_params=pltpu.CompilerParams(
            dimension_semantics=("parallel",)),
    )(col1, w1m, b1m, w2m, b2m)


def net_forward(x_nchw, params):
    (w1, b1, w2, b2, fw1, fb1, fw2, fb2) = params
    N = x_nchw.shape[0]

    # Input glue (tiny, input-only): NCHW -> NHWC, pad=1, im2col for conv1 so
    # the kernel sees a single K=27 contraction instead of 9 K=3 taps.
    x = jnp.transpose(x_nchw, (0, 2, 3, 1))
    xp = jnp.pad(x, ((0, 0), (1, 1), (1, 1), (0, 0)))
    col1 = jnp.concatenate(
        [xp[:, dy:dy + 32, dx:dx + 32, :] for dy in range(3) for dx in range(3)],
        axis=-1).reshape(N, 32 * 32, 27)

    # Weight repacking (one-time, trace-level constants / tiny XLA ops).
    w1m = w1.reshape(27, 16)        # row = (ky*3+kx)*3 + ci
    w2m = w2.reshape(9, 16, 8)      # [tap, ci, co]
    # fc1 rows permuted from PyTorch's NCHW flatten (c*64+h*8+w) to the
    # kernel's (h*64 + w*8 + c) order -> no feature-map transpose needed.
    hh, ww, cc = np.meshgrid(np.arange(8), np.arange(8), np.arange(8),
                             indexing="ij")
    perm = (cc * 64 + hh * 8 + ww).reshape(-1)
    fw1p = fw1[perm, :]
    # fc2 padded to 128 output lanes -> lane-dense final store.
    fw2p = jnp.pad(fw2, ((0, 0), (0, 126)))
    fb2p = jnp.pad(fb2, (0, 126)).reshape(1, 128)

    # Stage 1+2 fused: conv1+relu+pool -> conv2+relu+pool, one kernel.
    pooled = fused_conv(col1, w1m, b1.reshape(1, 16), w2m, b2.reshape(1, 8))
    feat = pooled.reshape(N, 8 * 8 * 8)        # (h, w, c) flatten order

    # Stage 3: fc1 + tanh + fc2 (whole batch).
    logits = pl.pallas_call(
        mlp_kernel,
        out_shape=jax.ShapeDtypeStruct((N, 128), jnp.float32),
    )(feat, fw1p, fb1.reshape(1, 32), fw2p, fb2p)
    return logits[:, :2]


# ----------------------------------------------------------------------------
# Pure-JAX reference (for correctness check)
# ----------------------------------------------------------------------------
def net_reference(x_nchw, params):
    (w1, b1, w2, b2, fw1, fb1, fw2, fb2) = params
    dn = ("NHWC", "HWIO", "NHWC")
    x = jnp.transpose(x_nchw, (0, 2, 3, 1))
    y = lax.conv_general_dilated(x, w1, (1, 1), "SAME", dimension_numbers=dn) + b1
    y = jnp.maximum(y, 0.0)
    y = lax.reduce_window(y, -jnp.inf, lax.max, (1, 2, 2, 1), (1, 2, 2, 1), "VALID")
    y = lax.conv_general_dilated(y, w2, (1, 1), "SAME", dimension_numbers=dn) + b2
    y = jnp.maximum(y, 0.0)
    y = lax.reduce_window(y, -jnp.inf, lax.max, (1, 2, 2, 1), (1, 2, 2, 1), "VALID")
    feat = jnp.transpose(y, (0, 3, 1, 2)).reshape(y.shape[0], 512)
    h = jnp.tanh(feat @ fw1 + fb1)
    return h @ fw2 + fb2


# ----------------------------------------------------------------------------
if __name__ == "__main__":
    key = jax.random.PRNGKey(0)
    ks = jax.random.split(key, 9)

    # Deterministic synthetic parameters (shapes from Net.__init__).
    w1 = 0.10 * jax.random.normal(ks[0], (3, 3, 3, 16), jnp.float32)    # HWIO
    b1 = 0.10 * jax.random.normal(ks[1], (16,), jnp.float32)
    w2 = 0.10 * jax.random.normal(ks[2], (3, 3, 16, 8), jnp.float32)    # HWIO
    b2 = 0.10 * jax.random.normal(ks[3], (8,), jnp.float32)
    fw1 = 0.05 * jax.random.normal(ks[4], (512, 32), jnp.float32)       # (in, out)
    fb1 = 0.05 * jax.random.normal(ks[5], (32,), jnp.float32)
    fw2 = 0.05 * jax.random.normal(ks[6], (32, 2), jnp.float32)
    fb2 = 0.05 * jax.random.normal(ks[7], (2,), jnp.float32)
    params = (w1, b1, w2, b2, fw1, fb1, fw2, fb2)

    # Input: batch=2 CIFAR-like images, NCHW (spatial 32 required by fc1=8*8*8).
    x = jax.random.normal(ks[8], (2, 3, 32, 32), jnp.float32)

    out = jax.jit(net_forward)(x, params)
    out = jax.block_until_ready(out)

    ref = net_reference(x, params)
    np.testing.assert_allclose(np.asarray(out), np.asarray(ref),
                               rtol=2e-3, atol=2e-3)
    assert out.shape == (2, 2) and out.dtype == jnp.float32
    print("KERNEL_OK")
</pallas_src>

<mosaic_0001>
module attributes {stable_mosaic.version = 11 : i64} {
  func.func @fused_conv_kernel(%arg0: i32, %arg1: memref<1x1024x27xf32, #tpu.memory_space<vmem>>, %arg2: memref<27x16xf32, #tpu.memory_space<vmem>>, %arg3: memref<1x16xf32, #tpu.memory_space<vmem>>, %arg4: memref<9x16x8xf32, #tpu.memory_space<vmem>>, %arg5: memref<1x8xf32, #tpu.memory_space<vmem>>, %arg6: memref<1x64x8xf32, #tpu.memory_space<vmem>>, %arg7: memref<1024x16xf32, #tpu.memory_space<vmem>>, %arg8: memref<18x32x16xf32, #tpu.memory_space<vmem>>, %arg9: memref<256x8xf32, #tpu.memory_space<vmem>>) attributes {dimension_semantics = [#tpu.dimension_semantics<parallel>], iteration_bounds = array<i64: 2>, scalar_prefetch = 0 : i64, scratch_operands = 3 : i64, tpu.core_type = #tpu.core_type<tc>, window_params = [{transform_indices = @transform_0, window_bounds = array<i64: 1, 1024, 27>}, {pipeline_mode = #tpu.pipeline_mode<synchronous>, transform_indices = @transform_1, window_bounds = array<i64: 27, 16>}, {pipeline_mode = #tpu.pipeline_mode<synchronous>, transform_indices = @transform_2, window_bounds = array<i64: 1, 16>}, {pipeline_mode = #tpu.pipeline_mode<synchronous>, transform_indices = @transform_3, window_bounds = array<i64: 9, 16, 8>}, {pipeline_mode = #tpu.pipeline_mode<synchronous>, transform_indices = @transform_4, window_bounds = array<i64: 1, 8>}, {transform_indices = @transform_5, window_bounds = array<i64: 1, 64, 8>}]} {
    %c0 = arith.constant 0 : index
    %c0_0 = arith.constant 0 : index
    %c0_1 = arith.constant 0 : index
    %0 = vector.load %arg1[%c0, %c0_0, %c0_1] : memref<1x1024x27xf32, #tpu.memory_space<vmem>>, vector<1x1024x27xf32>
    %1 = vector.shape_cast %0 : vector<1x1024x27xf32> to vector<1024x27xf32>
    %c0_2 = arith.constant 0 : index
    %c0_3 = arith.constant 0 : index
    %2 = vector.load %arg2[%c0_2, %c0_3] : memref<27x16xf32, #tpu.memory_space<vmem>>, vector<27x16xf32>
    %cst = arith.constant dense<0.000000e+00> : vector<1024x16xf32>
    %3 = tpu.matmul %1, %2, %cst {dimension_numbers = #tpu.dot_dimension_numbers<[1], [0], [0], [1], [0, 0, 1, 1], [], []>} : vector<1024x27xf32>, vector<27x16xf32>, vector<1024x16xf32> -> vector<1024x16xf32>
    %c0_4 = arith.constant 0 : index
    %c0_5 = arith.constant 0 : index
    %4 = vector.load %arg3[%c0_4, %c0_5] : memref<1x16xf32, #tpu.memory_space<vmem>>, vector<1x16xf32>
    %5 = vector.broadcast %4 : vector<1x16xf32> to vector<1024x16xf32>
    %6 = arith.addf %3, %5 : vector<1024x16xf32>
    %cst_6 = arith.constant 0.000000e+00 : f32
    %7 = vector.broadcast %cst_6 : f32 to vector<1024x16xf32>
    %8 = arith.maximumf %6, %7 : vector<1024x16xf32>
    %c0_7 = arith.constant 0 : index
    %c0_8 = arith.constant 0 : index
    %9 = vector.load %arg7[%c0_7, %c0_8] : memref<1024x16xf32, #tpu.memory_space<vmem>>, vector<1024x16xf32>
    tpu.vector_store %arg7[%c0_7, %c0_8], %8 {strides = array<i32>} : memref<1024x16xf32, #tpu.memory_space<vmem>>, vector<1024x16xf32>,
    %c0_9 = arith.constant 0 : index
    %c0_10 = arith.constant 0 : index
    %10 = tpu.strided_load %arg7[%c0_9, %c0_10] {strides = array<i32: 2, 1>} : memref<1024x16xf32, #tpu.memory_space<vmem>>, vector<512x16xf32>
    %c1 = arith.constant 1 : index
    %c0_11 = arith.constant 0 : index
    %11 = tpu.strided_load %arg7[%c1, %c0_11] {strides = array<i32: 2, 1>} : memref<1024x16xf32, #tpu.memory_space<vmem>>, vector<512x16xf32>
    %12 = arith.maximumf %10, %11 : vector<512x16xf32>
    %cst_12 = arith.constant 0.000000e+00 : f32
    %13 = vector.broadcast %cst_12 : f32 to vector<18x32x16xf32>
    %c0_13 = arith.constant 0 : index
    %c0_14 = arith.constant 0 : index
    %c0_15 = arith.constant 0 : index
    %14 = vector.load %arg8[%c0_13, %c0_14, %c0_15] : memref<18x32x16xf32, #tpu.memory_space<vmem>>, vector<18x32x16xf32>
    tpu.vector_store %arg8[%c0_13, %c0_14, %c0_15], %13 {strides = array<i32>} : memref<18x32x16xf32, #tpu.memory_space<vmem>>, vector<18x32x16xf32>,
    %15 = vector.extract_strided_slice %12 {offsets = [0, 0], sizes = [16, 16], strides = [1, 1]} : vector<512x16xf32> to vector<16x16xf32>
    %16 = vector.extract_strided_slice %12 {offsets = [16, 0], sizes = [16, 16], strides = [1, 1]} : vector<512x16xf32> to vector<16x16xf32>
    %17 = arith.maximumf %15, %16 : vector<16x16xf32>
    %c1_16 = arith.constant 1 : index
    %c8 = arith.constant 8 : index
    %c0_17 = arith.constant 0 : index
    %18 = vector.load %arg8[%c1_16, %c8, %c0_17] : memref<18x32x16xf32, #tpu.memory_space<vmem>>, vector<1x16x16xf32>
    %19 = vector.shape_cast %18 : vector<1x16x16xf32> to vector<16x16xf32>
    %20 = vector.shape_cast %17 : vector<16x16xf32> to vector<1x16x16xf32>
    tpu.vector_store %arg8[%c1_16, %c8, %c0_17], %20 {strides = array<i32>} : memref<18x32x16xf32, #tpu.memory_space<vmem>>, vector<1x16x16xf32>,
    %21 = vector.extract_strided_slice %12 {offsets = [32, 0], sizes = [16, 16], strides = [1, 1]} : vector<512x16xf32> to vector<16x16xf32>
    %22 = vector.extract_strided_slice %12 {offsets = [48, 0], sizes = [16, 16], strides = [1, 1]} : vector<512x16xf32> to vector<16x16xf32>
    %23 = arith.maximumf %21, %22 : vector<16x16xf32>
    %c2 = arith.constant 2 : index
    %c8_18 = arith.constant 8 : index
    %c0_19 = arith.constant 0 : index
    %24 = vector.load %arg8[%c2, %c8_18, %c0_19] : memref<18x32x16xf32, #tpu.memory_space<vmem>>, vector<1x16x16xf32>
    %25 = vector.shape_cast %24 : vector<1x16x16xf32> to vector<16x16xf32>
    %26 = vector.shape_cast %23 : vector<16x16xf32> to vector<1x16x16xf32>
    tpu.vector_store %arg8[%c2, %c8_18, %c0_19], %26 {strides = array<i32>} : memref<18x32x16xf32, #tpu.memory_space<vmem>>, vector<1x16x16xf32>,
    %27 = vector.extract_strided_slice %12 {offsets = [64, 0], sizes = [16, 16], strides = [1, 1]} : vector<512x16xf32> to vector<16x16xf32>
    %28 = vector.extract_strided_slice %12 {offsets = [80, 0], sizes = [16, 16], strides = [1, 1]} : vector<512x16xf32> to vector<16x16xf32>
    %29 = arith.maximumf %27, %28 : vector<16x16xf32>
    %c3 = arith.constant 3 : index
    %c8_20 = arith.constant 8 : index
    %c0_21 = arith.constant 0 : index
    %30 = vector.load %arg8[%c3, %c8_20, %c0_21] : memref<18x32x16xf32, #tpu.memory_space<vmem>>, vector<1x16x16xf32>
    %31 = vector.shape_cast %30 : vector<1x16x16xf32> to vector<16x16xf32>
    %32 = vector.shape_cast %29 : vector<16x16xf32> to vector<1x16x16xf32>
    tpu.vector_store %arg8[%c3, %c8_20, %c0_21], %32 {strides = array<i32>} : memref<18x32x16xf32, #tpu.memory_space<vmem>>, vector<1x16x16xf32>,
    %33 = vector.extract_strided_slice %12 {offsets = [96, 0], sizes = [16, 16], strides = [1, 1]} : vector<512x16xf32> to vector<16x16xf32>
    %34 = vector.extract_strided_slice %12 {offsets = [112, 0], sizes = [16, 16], strides = [1, 1]} : vector<512x16xf32> to vector<16x16xf32>
    %35 = arith.maximumf %33, %34 : vector<16x16xf32>
    %c4 = arith.constant 4 : index
    %c8_22 = arith.constant 8 : index
    %c0_23 = arith.constant 0 : index
    %36 = vector.load %arg8[%c4, %c8_22, %c0_23] : memref<18x32x16xf32, #tpu.memory_space<vmem>>, vector<1x16x16xf32>
    %37 = vector.shape_cast %36 : vector<1x16x16xf32> to vector<16x16xf32>
    %38 = vector.shape_cast %35 : vector<16x16xf32> to vector<1x16x16xf32>
    tpu.vector_store %arg8[%c4, %c8_22, %c0_23], %38 {strides = array<i32>} : memref<18x32x16xf32, #tpu.memory_space<vmem>>, vector<1x16x16xf32>,
    %39 = vector.extract_strided_slice %12 {offsets = [128, 0], sizes = [16, 16], strides = [1, 1]} : vector<512x16xf32> to vector<16x16xf32>
    %40 = vector.extract_strided_slice %12 {offsets = [144, 0], sizes = [16, 16], strides = [1, 1]} : vector<512x16xf32> to vector<16x16xf32>
    %41 = arith.maximumf %39, %40 : vector<16x16xf32>
    %c5 = arith.constant 5 : index
    %c8_24 = arith.constant 8 : index
    %c0_25 = arith.constant 0 : index
    %42 = vector.load %arg8[%c5, %c8_24, %c0_25] : memref<18x32x16xf32, #tpu.memory_space<vmem>>, vector<1x16x16xf32>
    %43 = vector.shape_cast %42 : vector<1x16x16xf32> to vector<16x16xf32>
    %44 = vector.shape_cast %41 : vector<16x16xf32> to vector<1x16x16xf32>
    tpu.vector_store %arg8[%c5, %c8_24, %c0_25], %44 {strides = array<i32>} : memref<18x32x16xf32, #tpu.memory_space<vmem>>, vector<1x16x16xf32>,
    %45 = vector.extract_strided_slice %12 {offsets = [160, 0], sizes = [16, 16], strides = [1, 1]} : vector<512x16xf32> to vector<16x16xf32>
    %46 = vector.extract_strided_slice %12 {offsets = [176, 0], sizes = [16, 16], strides = [1, 1]} : vector<512x16xf32> to vector<16x16xf32>
    %47 = arith.maximumf %45, %46 : vector<16x16xf32>
    %c6 = arith.constant 6 : index
    %c8_26 = arith.constant 8 : index
    %c0_27 = arith.constant 0 : index
    %48 = vector.load %arg8[%c6, %c8_26, %c0_27] : memref<18x32x16xf32, #tpu.memory_space<vmem>>, vector<1x16x16xf32>
    %49 = vector.shape_cast %48 : vector<1x16x16xf32> to vector<16x16xf32>
    %50 = vector.shape_cast %47 : vector<16x16xf32> to vector<1x16x16xf32>
    tpu.vector_store %arg8[%c6, %c8_26, %c0_27], %50 {strides = array<i32>} : memref<18x32x16xf32, #tpu.memory_space<vmem>>, vector<1x16x16xf32>,
    %51 = vector.extract_strided_slice %12 {offsets = [192, 0], sizes = [16, 16], strides = [1, 1]} : vector<512x16xf32> to vector<16x16xf32>
    %52 = vector.extract_strided_slice %12 {offsets = [208, 0], sizes = [16, 16], strides = [1, 1]} : vector<512x16xf32> to vector<16x16xf32>
    %53 = arith.maximumf %51, %52 : vector<16x16xf32>
    %c7 = arith.constant 7 : index
    %c8_28 = arith.constant 8 : index
    %c0_29 = arith.constant 0 : index
    %54 = vector.load %arg8[%c7, %c8_28, %c0_29] : memref<18x32x16xf32, #tpu.memory_space<vmem>>, vector<1x16x16xf32>
    %55 = vector.shape_cast %54 : vector<1x16x16xf32> to vector<16x16xf32>
    %56 = vector.shape_cast %53 : vector<16x16xf32> to vector<1x16x16xf32>
    tpu.vector_store %arg8[%c7, %c8_28, %c0_29], %56 {strides = array<i32>} : memref<18x32x16xf32, #tpu.memory_space<vmem>>, vector<1x16x16xf32>,
    %57 = vector.extract_strided_slice %12 {offsets = [224, 0], sizes = [16, 16], strides = [1, 1]} : vector<512x16xf32> to vector<16x16xf32>
    %58 = vector.extract_strided_slice %12 {offsets = [240, 0], sizes = [16, 16], strides = [1, 1]} : vector<512x16xf32> to vector<16x16xf32>
    %59 = arith.maximumf %57, %58 : vector<16x16xf32>
    %c8_30 = arith.constant 8 : index
    %c8_31 = arith.constant 8 : index
    %c0_32 = arith.constant 0 : index
    %60 = vector.load %arg8[%c8_30, %c8_31, %c0_32] : memref<18x32x16xf32, #tpu.memory_space<vmem>>, vector<1x16x16xf32>
    %61 = vector.shape_cast %60 : vector<1x16x16xf32> to vector<16x16xf32>
    %62 = vector.shape_cast %59 : vector<16x16xf32> to vector<1x16x16xf32>
    tpu.vector_store %arg8[%c8_30, %c8_31, %c0_32], %62 {strides = array<i32>} : memref<18x32x16xf32, #tpu.memory_space<vmem>>, vector<1x16x16xf32>,
    %63 = vector.extract_strided_slice %12 {offsets = [256, 0], sizes = [16, 16], strides = [1, 1]} : vector<512x16xf32> to vector<16x16xf32>
    %64 = vector.extract_strided_slice %12 {offsets = [272, 0], sizes = [16, 16], strides = [1, 1]} : vector<512x16xf32> to vector<16x16xf32>
    %65 = arith.maximumf %63, %64 : vector<16x16xf32>
    %c9 = arith.constant 9 : index
    %c8_33 = arith.constant 8 : index
    %c0_34 = arith.constant 0 : index
    %66 = vector.load %arg8[%c9, %c8_33, %c0_34] : memref<18x32x16xf32, #tpu.memory_space<vmem>>, vector<1x16x16xf32>
    %67 = vector.shape_cast %66 : vector<1x16x16xf32> to vector<16x16xf32>
    %68 = vector.shape_cast %65 : vector<16x16xf32> to vector<1x16x16xf32>
    tpu.vector_store %arg8[%c9, %c8_33, %c0_34], %68 {strides = array<i32>} : memref<18x32x16xf32, #tpu.memory_space<vmem>>, vector<1x16x16xf32>,
    %69 = vector.extract_strided_slice %12 {offsets = [288, 0], sizes = [16, 16], strides = [1, 1]} : vector<512x16xf32> to vector<16x16xf32>
    %70 = vector.extract_strided_slice %12 {offsets = [304, 0], sizes = [16, 16], strides = [1, 1]} : vector<512x16xf32> to vector<16x16xf32>
    %71 = arith.maximumf %69, %70 : vector<16x16xf32>
    %c10 = arith.constant 10 : index
    %c8_35 = arith.constant 8 : index
    %c0_36 = arith.constant 0 : index
    %72 = vector.load %arg8[%c10, %c8_35, %c0_36] : memref<18x32x16xf32, #tpu.memory_space<vmem>>, vector<1x16x16xf32>
    %73 = vector.shape_cast %72 : vector<1x16x16xf32> to vector<16x16xf32>
    %74 = vector.shape_cast %71 : vector<16x16xf32> to vector<1x16x16xf32>
    tpu.vector_store %arg8[%c10, %c8_35, %c0_36], %74 {strides = array<i32>} : memref<18x32x16xf32, #tpu.memory_space<vmem>>, vector<1x16x16xf32>,
    %75 = vector.extract_strided_slice %12 {offsets = [320, 0], sizes = [16, 16], strides = [1, 1]} : vector<512x16xf32> to vector<16x16xf32>
    %76 = vector.extract_strided_slice %12 {offsets = [336, 0], sizes = [16, 16], strides = [1, 1]} : vector<512x16xf32> to vector<16x16xf32>
    %77 = arith.maximumf %75, %76 : vector<16x16xf32>
    %c11 = arith.constant 11 : index
    %c8_37 = arith.constant 8 : index
    %c0_38 = arith.constant 0 : index
    %78 = vector.load %arg8[%c11, %c8_37, %c0_38] : memref<18x32x16xf32, #tpu.memory_space<vmem>>, vector<1x16x16xf32>
    %79 = vector.shape_cast %78 : vector<1x16x16xf32> to vector<16x16xf32>
    %80 = vector.shape_cast %77 : vector<16x16xf32> to vector<1x16x16xf32>
    tpu.vector_store %arg8[%c11, %c8_37, %c0_38], %80 {strides = array<i32>} : memref<18x32x16xf32, #tpu.memory_space<vmem>>, vector<1x16x16xf32>,
    %81 = vector.extract_strided_slice %12 {offsets = [352, 0], sizes = [16, 16], strides = [1, 1]} : vector<512x16xf32> to vector<16x16xf32>
    %82 = vector.extract_strided_slice %12 {offsets = [368, 0], sizes = [16, 16], strides = [1, 1]} : vector<512x16xf32> to vector<16x16xf32>
    %83 = arith.maximumf %81, %82 : vector<16x16xf32>
    %c12 = arith.constant 12 : index
    %c8_39 = arith.constant 8 : index
    %c0_40 = arith.constant 0 : index
    %84 = vector.load %arg8[%c12, %c8_39, %c0_40] : memref<18x32x16xf32, #tpu.memory_space<vmem>>, vector<1x16x16xf32>
    %85 = vector.shape_cast %84 : vector<1x16x16xf32> to vector<16x16xf32>
    %86 = vector.shape_cast %83 : vector<16x16xf32> to vector<1x16x16xf32>
    tpu.vector_store %arg8[%c12, %c8_39, %c0_40], %86 {strides = array<i32>} : memref<18x32x16xf32, #tpu.memory_space<vmem>>, vector<1x16x16xf32>,
    %87 = vector.extract_strided_slice %12 {offsets = [384, 0], sizes = [16, 16], strides = [1, 1]} : vector<512x16xf32> to vector<16x16xf32>
    %88 = vector.extract_strided_slice %12 {offsets = [400, 0], sizes = [16, 16], strides = [1, 1]} : vector<512x16xf32> to vector<16x16xf32>
    %89 = arith.maximumf %87, %88 : vector<16x16xf32>
    %c13 = arith.constant 13 : index
    %c8_41 = arith.constant 8 : index
    %c0_42 = arith.constant 0 : index
    %90 = vector.load %arg8[%c13, %c8_41, %c0_42] : memref<18x32x16xf32, #tpu.memory_space<vmem>>, vector<1x16x16xf32>
    %91 = vector.shape_cast %90 : vector<1x16x16xf32> to vector<16x16xf32>
    %92 = vector.shape_cast %89 : vector<16x16xf32> to vector<1x16x16xf32>
    tpu.vector_store %arg8[%c13, %c8_41, %c0_42], %92 {strides = array<i32>} : memref<18x32x16xf32, #tpu.memory_space<vmem>>, vector<1x16x16xf32>,
    %93 = vector.extract_strided_slice %12 {offsets = [416, 0], sizes = [16, 16], strides = [1, 1]} : vector<512x16xf32> to vector<16x16xf32>
    %94 = vector.extract_strided_slice %12 {offsets = [432, 0], sizes = [16, 16], strides = [1, 1]} : vector<512x16xf32> to vector<16x16xf32>
    %95 = arith.maximumf %93, %94 : vector<16x16xf32>
    %c14 = arith.constant 14 : index
    %c8_43 = arith.constant 8 : index
    %c0_44 = arith.constant 0 : index
    %96 = vector.load %arg8[%c14, %c8_43, %c0_44] : memref<18x32x16xf32, #tpu.memory_space<vmem>>, vector<1x16x16xf32>
    %97 = vector.shape_cast %96 : vector<1x16x16xf32> to vector<16x16xf32>
    %98 = vector.shape_cast %95 : vector<16x16xf32> to vector<1x16x16xf32>
    tpu.vector_store %arg8[%c14, %c8_43, %c0_44], %98 {strides = array<i32>} : memref<18x32x16xf32, #tpu.memory_space<vmem>>, vector<1x16x16xf32>,
    %99 = vector.extract_strided_slice %12 {offsets = [448, 0], sizes = [16, 16], strides = [1, 1]} : vector<512x16xf32> to vector<16x16xf32>
    %100 = vector.extract_strided_slice %12 {offsets = [464, 0], sizes = [16, 16], strides = [1, 1]} : vector<512x16xf32> to vector<16x16xf32>
    %101 = arith.maximumf %99, %100 : vector<16x16xf32>
    %c15 = arith.constant 15 : index
    %c8_45 = arith.constant 8 : index
    %c0_46 = arith.constant 0 : index
    %102 = vector.load %arg8[%c15, %c8_45, %c0_46] : memref<18x32x16xf32, #tpu.memory_space<vmem>>, vector<1x16x16xf32>
    %103 = vector.shape_cast %102 : vector<1x16x16xf32> to vector<16x16xf32>
    %104 = vector.shape_cast %101 : vector<16x16xf32> to vector<1x16x16xf32>
    tpu.vector_store %arg8[%c15, %c8_45, %c0_46], %104 {strides = array<i32>} : memref<18x32x16xf32, #tpu.memory_space<vmem>>, vector<1x16x16xf32>,
    %105 = vector.extract_strided_slice %12 {offsets = [480, 0], sizes = [16, 16], strides = [1, 1]} : vector<512x16xf32> to vector<16x16xf32>
    %106 = vector.extract_strided_slice %12 {offsets = [496, 0], sizes = [16, 16], strides = [1, 1]} : vector<512x16xf32> to vector<16x16xf32>
    %107 = arith.maximumf %105, %106 : vector<16x16xf32>
    %c16 = arith.constant 16 : index
    %c8_47 = arith.constant 8 : index
    %c0_48 = arith.constant 0 : index
    %108 = vector.load %arg8[%c16, %c8_47, %c0_48] : memref<18x32x16xf32, #tpu.memory_space<vmem>>, vector<1x16x16xf32>
    %109 = vector.shape_cast %108 : vector<1x16x16xf32> to vector<16x16xf32>
    %110 = vector.shape_cast %107 : vector<16x16xf32> to vector<1x16x16xf32>
    tpu.vector_store %arg8[%c16, %c8_47, %c0_48], %110 {strides = array<i32>} : memref<18x32x16xf32, #tpu.memory_space<vmem>>, vector<1x16x16xf32>,
    %cst_49 = arith.constant 0.000000e+00 : f32
    %111 = vector.broadcast %cst_49 : f32 to vector<256x8xf32>
    %c0_50 = arith.constant 0 : index
    %c7_51 = arith.constant 7 : index
    %c0_52 = arith.constant 0 : index
    %112 = vector.load %arg8[%c0_50, %c7_51, %c0_52] : memref<18x32x16xf32, #tpu.memory_space<vmem>>, vector<16x16x16xf32>
    %113 = vector.shape_cast %112 : vector<16x16x16xf32> to vector<256x16xf32>
    %c0_53 = arith.constant 0 : index
    %c0_54 = arith.constant 0 : index
    %c0_55 = arith.constant 0 : index
    %114 = vector.load %arg4[%c0_53, %c0_54, %c0_55] : memref<9x16x8xf32, #tpu.memory_space<vmem>>, vector<1x16x8xf32>
    %115 = vector.shape_cast %114 : vector<1x16x8xf32> to vector<16x8xf32>
    %cst_56 = arith.constant dense<0.000000e+00> : vector<256x8xf32>
    %116 = tpu.matmul %113, %115, %cst_56 {dimension_numbers = #tpu.dot_dimension_numbers<[1], [0], [0], [1], [0, 0, 1, 1], [], []>} : vector<256x16xf32>, vector<16x8xf32>, vector<256x8xf32> -> vector<256x8xf32>
    %117 = arith.addf %111, %116 : vector<256x8xf32>
    %c0_57 = arith.constant 0 : index
    %c8_58 = arith.constant 8 : index
    %c0_59 = arith.constant 0 : index
    %118 = vector.load %arg8[%c0_57, %c8_58, %c0_59] : memref<18x32x16xf32, #tpu.memory_space<vmem>>, vector<16x16x16xf32>
    %119 = vector.shape_cast %118 : vector<16x16x16xf32> to vector<256x16xf32>
    %c1_60 = arith.constant 1 : index
    %c0_61 = arith.constant 0 : index
    %c0_62 = arith.constant 0 : index
    %120 = vector.load %arg4[%c1_60, %c0_61, %c0_62] : memref<9x16x8xf32, #tpu.memory_space<vmem>>, vector<1x16x8xf32>
    %121 = vector.shape_cast %120 : vector<1x16x8xf32> to vector<16x8xf32>
    %cst_63 = arith.constant dense<0.000000e+00> : vector<256x8xf32>
    %122 = tpu.matmul %119, %121, %cst_63 {dimension_numbers = #tpu.dot_dimension_numbers<[1], [0], [0], [1], [0, 0, 1, 1], [], []>} : vector<256x16xf32>, vector<16x8xf32>, vector<256x8xf32> -> vector<256x8xf32>
    %123 = arith.addf %117, %122 : vector<256x8xf32>
    %c0_64 = arith.constant 0 : index
    %c9_65 = arith.constant 9 : index
    %c0_66 = arith.constant 0 : index
    %124 = vector.load %arg8[%c0_64, %c9_65, %c0_66] : memref<18x32x16xf32, #tpu.memory_space<vmem>>, vector<16x16x16xf32>
    %125 = vector.shape_cast %124 : vector<16x16x16xf32> to vector<256x16xf32>
    %c2_67 = arith.constant 2 : index
    %c0_68 = arith.constant 0 : index
    %c0_69 = arith.constant 0 : index
    %126 = vector.load %arg4[%c2_67, %c0_68, %c0_69] : memref<9x16x8xf32, #tpu.memory_space<vmem>>, vector<1x16x8xf32>
    %127 = vector.shape_cast %126 : vector<1x16x8xf32> to vector<16x8xf32>
    %cst_70 = arith.constant dense<0.000000e+00> : vector<256x8xf32>
    %128 = tpu.matmul %125, %127, %cst_70 {dimension_numbers = #tpu.dot_dimension_numbers<[1], [0], [0], [1], [0, 0, 1, 1], [], []>} : vector<256x16xf32>, vector<16x8xf32>, vector<256x8xf32> -> vector<256x8xf32>
    %129 = arith.addf %123, %128 : vector<256x8xf32>
    %c1_71 = arith.constant 1 : index
    %c7_72 = arith.constant 7 : index
    %c0_73 = arith.constant 0 : index
    %130 = vector.load %arg8[%c1_71, %c7_72, %c0_73] : memref<18x32x16xf32, #tpu.memory_space<vmem>>, vector<16x16x16xf32>
    %131 = vector.shape_cast %130 : vector<16x16x16xf32> to vector<256x16xf32>
    %c3_74 = arith.constant 3 : index
    %c0_75 = arith.constant 0 : index
    %c0_76 = arith.constant 0 : index
    %132 = vector.load %arg4[%c3_74, %c0_75, %c0_76] : memref<9x16x8xf32, #tpu.memory_space<vmem>>, vector<1x16x8xf32>
    %133 = vector.shape_cast %132 : vector<1x16x8xf32> to vector<16x8xf32>
    %cst_77 = arith.constant dense<0.000000e+00> : vector<256x8xf32>
    %134 = tpu.matmul %131, %133, %cst_77 {dimension_numbers = #tpu.dot_dimension_numbers<[1], [0], [0], [1], [0, 0, 1, 1], [], []>} : vector<256x16xf32>, vector<16x8xf32>, vector<256x8xf32> -> vector<256x8xf32>
    %135 = arith.addf %129, %134 : vector<256x8xf32>
    %c1_78 = arith.constant 1 : index
    %c8_79 = arith.constant 8 : index
    %c0_80 = arith.constant 0 : index
    %136 = vector.load %arg8[%c1_78, %c8_79, %c0_80] : memref<18x32x16xf32, #tpu.memory_space<vmem>>, vector<16x16x16xf32>
    %137 = vector.shape_cast %136 : vector<16x16x16xf32> to vector<256x16xf32>
    %c4_81 = arith.constant 4 : index
    %c0_82 = arith.constant 0 : index
    %c0_83 = arith.constant 0 : index
    %138 = vector.load %arg4[%c4_81, %c0_82, %c0_83] : memref<9x16x8xf32, #tpu.memory_space<vmem>>, vector<1x16x8xf32>
    %139 = vector.shape_cast %138 : vector<1x16x8xf32> to vector<16x8xf32>
    %cst_84 = arith.constant dense<0.000000e+00> : vector<256x8xf32>
    %140 = tpu.matmul %137, %139, %cst_84 {dimension_numbers = #tpu.dot_dimension_numbers<[1], [0], [0], [1], [0, 0, 1, 1], [], []>} : vector<256x16xf32>, vector<16x8xf32>, vector<256x8xf32> -> vector<256x8xf32>
    %141 = arith.addf %135, %140 : vector<256x8xf32>
    %c1_85 = arith.constant 1 : index
    %c9_86 = arith.constant 9 : index
    %c0_87 = arith.constant 0 : index
    %142 = vector.load %arg8[%c1_85, %c9_86, %c0_87] : memref<18x32x16xf32, #tpu.memory_space<vmem>>, vector<16x16x16xf32>
    %143 = vector.shape_cast %142 : vector<16x16x16xf32> to vector<256x16xf32>
    %c5_88 = arith.constant 5 : index
    %c0_89 = arith.constant 0 : index
    %c0_90 = arith.constant 0 : index
    %144 = vector.load %arg4[%c5_88, %c0_89, %c0_90] : memref<9x16x8xf32, #tpu.memory_space<vmem>>, vector<1x16x8xf32>
    %145 = vector.shape_cast %144 : vector<1x16x8xf32> to vector<16x8xf32>
    %cst_91 = arith.constant dense<0.000000e+00> : vector<256x8xf32>
    %146 = tpu.matmul %143, %145, %cst_91 {dimension_numbers = #tpu.dot_dimension_numbers<[1], [0], [0], [1], [0, 0, 1, 1], [], []>} : vector<256x16xf32>, vector<16x8xf32>, vector<256x8xf32> -> vector<256x8xf32>
    %147 = arith.addf %141, %146 : vector<256x8xf32>
    %c2_92 = arith.constant 2 : index
    %c7_93 = arith.constant 7 : index
    %c0_94 = arith.constant 0 : index
    %148 = vector.load %arg8[%c2_92, %c7_93, %c0_94] : memref<18x32x16xf32, #tpu.memory_space<vmem>>, vector<16x16x16xf32>
    %149 = vector.shape_cast %148 : vector<16x16x16xf32> to vector<256x16xf32>
    %c6_95 = arith.constant 6 : index
    %c0_96 = arith.constant 0 : index
    %c0_97 = arith.constant 0 : index
    %150 = vector.load %arg4[%c6_95, %c0_96, %c0_97] : memref<9x16x8xf32, #tpu.memory_space<vmem>>, vector<1x16x8xf32>
    %151 = vector.shape_cast %150 : vector<1x16x8xf32> to vector<16x8xf32>
    %cst_98 = arith.constant dense<0.000000e+00> : vector<256x8xf32>
    %152 = tpu.matmul %149, %151, %cst_98 {dimension_numbers = #tpu.dot_dimension_numbers<[1], [0], [0], [1], [0, 0, 1, 1], [], []>} : vector<256x16xf32>, vector<16x8xf32>, vector<256x8xf32> -> vector<256x8xf32>
    %153 = arith.addf %147, %152 : vector<256x8xf32>
    %c2_99 = arith.constant 2 : index
    %c8_100 = arith.constant 8 : index
    %c0_101 = arith.constant 0 : index
    %154 = vector.load %arg8[%c2_99, %c8_100, %c0_101] : memref<18x32x16xf32, #tpu.memory_space<vmem>>, vector<16x16x16xf32>
    %155 = vector.shape_cast %154 : vector<16x16x16xf32> to vector<256x16xf32>
    %c7_102 = arith.constant 7 : index
    %c0_103 = arith.constant 0 : index
    %c0_104 = arith.constant 0 : index
    %156 = vector.load %arg4[%c7_102, %c0_103, %c0_104] : memref<9x16x8xf32, #tpu.memory_space<vmem>>, vector<1x16x8xf32>
    %157 = vector.shape_cast %156 : vector<1x16x8xf32> to vector<16x8xf32>
    %cst_105 = arith.constant dense<0.000000e+00> : vector<256x8xf32>
    %158 = tpu.matmul %155, %157, %cst_105 {dimension_numbers = #tpu.dot_dimension_numbers<[1], [0], [0], [1], [0, 0, 1, 1], [], []>} : vector<256x16xf32>, vector<16x8xf32>, vector<256x8xf32> -> vector<256x8xf32>
    %159 = arith.addf %153, %158 : vector<256x8xf32>
    %c2_106 = arith.constant 2 : index
    %c9_107 = arith.constant 9 : index
    %c0_108 = arith.constant 0 : index
    %160 = vector.load %arg8[%c2_106, %c9_107, %c0_108] : memref<18x32x16xf32, #tpu.memory_space<vmem>>, vector<16x16x16xf32>
    %161 = vector.shape_cast %160 : vector<16x16x16xf32> to vector<256x16xf32>
    %c8_109 = arith.constant 8 : index
    %c0_110 = arith.constant 0 : index
    %c0_111 = arith.constant 0 : index
    %162 = vector.load %arg4[%c8_109, %c0_110, %c0_111] : memref<9x16x8xf32, #tpu.memory_space<vmem>>, vector<1x16x8xf32>
    %163 = vector.shape_cast %162 : vector<1x16x8xf32> to vector<16x8xf32>
    %cst_112 = arith.constant dense<0.000000e+00> : vector<256x8xf32>
    %164 = tpu.matmul %161, %163, %cst_112 {dimension_numbers = #tpu.dot_dimension_numbers<[1], [0], [0], [1], [0, 0, 1, 1], [], []>} : vector<256x16xf32>, vector<16x8xf32>, vector<256x8xf32> -> vector<256x8xf32>
    %165 = arith.addf %159, %164 : vector<256x8xf32>
    %c0_113 = arith.constant 0 : index
    %c0_114 = arith.constant 0 : index
    %166 = vector.load %arg5[%c0_113, %c0_114] : memref<1x8xf32, #tpu.memory_space<vmem>>, vector<1x8xf32>
    %167 = vector.broadcast %166 : vector<1x8xf32> to vector<256x8xf32>
    %168 = arith.addf %165, %167 : vector<256x8xf32>
    %cst_115 = arith.constant 0.000000e+00 : f32
    %169 = vector.broadcast %cst_115 : f32 to vector<256x8xf32>
    %170 = arith.maximumf %168, %169 : vector<256x8xf32>
    %c0_116 = arith.constant 0 : index
    %c0_117 = arith.constant 0 : index
    %171 = vector.load %arg9[%c0_116, %c0_117] : memref<256x8xf32, #tpu.memory_space<vmem>>, vector<256x8xf32>
    tpu.vector_store %arg9[%c0_116, %c0_117], %170 {strides = array<i32>} : memref<256x8xf32, #tpu.memory_space<vmem>>, vector<256x8xf32>,
    %c0_118 = arith.constant 0 : index
    %c0_119 = arith.constant 0 : index
    %172 = tpu.strided_load %arg9[%c0_118, %c0_119] {strides = array<i32: 2, 1>} : memref<256x8xf32, #tpu.memory_space<vmem>>, vector<128x8xf32>
    %c1_120 = arith.constant 1 : index
    %c0_121 = arith.constant 0 : index
    %173 = tpu.strided_load %arg9[%c1_120, %c0_121] {strides = array<i32: 2, 1>} : memref<256x8xf32, #tpu.memory_space<vmem>>, vector<128x8xf32>
    %174 = arith.maximumf %172, %173 : vector<128x8xf32>
    %175 = vector.extract_strided_slice %174 {offsets = [0, 0], sizes = [8, 8], strides = [1, 1]} : vector<128x8xf32> to vector<8x8xf32>
    %176 = vector.extract_strided_slice %174 {offsets = [8, 0], sizes = [8, 8], strides = [1, 1]} : vector<128x8xf32> to vector<8x8xf32>
    %177 = arith.maximumf %175, %176 : vector<8x8xf32>
    %c0_122 = arith.constant 0 : index
    %c0_123 = arith.constant 0 : index
    %c0_124 = arith.constant 0 : index
    %178 = vector.load %arg6[%c0_122, %c0_123, %c0_124] : memref<1x64x8xf32, #tpu.memory_space<vmem>>, vector<1x8x8xf32>
    %179 = vector.shape_cast %178 : vector<1x8x8xf32> to vector<8x8xf32>
    %180 = vector.shape_cast %177 : vector<8x8xf32> to vector<1x8x8xf32>
    tpu.vector_store %arg6[%c0_122, %c0_123, %c0_124], %180 {strides = array<i32>} : memref<1x64x8xf32, #tpu.memory_space<vmem>>, vector<1x8x8xf32>,
    %181 = vector.extract_strided_slice %174 {offsets = [16, 0], sizes = [8, 8], strides = [1, 1]} : vector<128x8xf32> to vector<8x8xf32>
    %182 = vector.extract_strided_slice %174 {offsets = [24, 0], sizes = [8, 8], strides = [1, 1]} : vector<128x8xf32> to vector<8x8xf32>
    %183 = arith.maximumf %181, %182 : vector<8x8xf32>
    %c0_125 = arith.constant 0 : index
    %c8_126 = arith.constant 8 : index
    %c0_127 = arith.constant 0 : index
    %184 = vector.load %arg6[%c0_125, %c8_126, %c0_127] : memref<1x64x8xf32, #tpu.memory_space<vmem>>, vector<1x8x8xf32>
    %185 = vector.shape_cast %184 : vector<1x8x8xf32> to vector<8x8xf32>
    %186 = vector.shape_cast %183 : vector<8x8xf32> to vector<1x8x8xf32>
    tpu.vector_store %arg6[%c0_125, %c8_126, %c0_127], %186 {strides = array<i32>} : memref<1x64x8xf32, #tpu.memory_space<vmem>>, vector<1x8x8xf32>,
    %187 = vector.extract_strided_slice %174 {offsets = [32, 0], sizes = [8, 8], strides = [1, 1]} : vector<128x8xf32> to vector<8x8xf32>
    %188 = vector.extract_strided_slice %174 {offsets = [40, 0], sizes = [8, 8], strides = [1, 1]} : vector<128x8xf32> to vector<8x8xf32>
    %189 = arith.maximumf %187, %188 : vector<8x8xf32>
    %c0_128 = arith.constant 0 : index
    %c16_129 = arith.constant 16 : index
    %c0_130 = arith.constant 0 : index
    %190 = vector.load %arg6[%c0_128, %c16_129, %c0_130] : memref<1x64x8xf32, #tpu.memory_space<vmem>>, vector<1x8x8xf32>
    %191 = vector.shape_cast %190 : vector<1x8x8xf32> to vector<8x8xf32>
    %192 = vector.shape_cast %189 : vector<8x8xf32> to vector<1x8x8xf32>
    tpu.vector_store %arg6[%c0_128, %c16_129, %c0_130], %192 {strides = array<i32>} : memref<1x64x8xf32, #tpu.memory_space<vmem>>, vector<1x8x8xf32>,
    %193 = vector.extract_strided_slice %174 {offsets = [48, 0], sizes = [8, 8], strides = [1, 1]} : vector<128x8xf32> to vector<8x8xf32>
    %194 = vector.extract_strided_slice %174 {offsets = [56, 0], sizes = [8, 8], strides = [1, 1]} : vector<128x8xf32> to vector<8x8xf32>
    %195 = arith.maximumf %193, %194 : vector<8x8xf32>
    %c0_131 = arith.constant 0 : index
    %c24 = arith.constant 24 : index
    %c0_132 = arith.constant 0 : index
    %196 = vector.load %arg6[%c0_131, %c24, %c0_132] : memref<1x64x8xf32, #tpu.memory_space<vmem>>, vector<1x8x8xf32>
    %197 = vector.shape_cast %196 : vector<1x8x8xf32> to vector<8x8xf32>
    %198 = vector.shape_cast %195 : vector<8x8xf32> to vector<1x8x8xf32>
    tpu.vector_store %arg6[%c0_131, %c24, %c0_132], %198 {strides = array<i32>} : memref<1x64x8xf32, #tpu.memory_space<vmem>>, vector<1x8x8xf32>,
    %199 = vector.extract_strided_slice %174 {offsets = [64, 0], sizes = [8, 8], strides = [1, 1]} : vector<128x8xf32> to vector<8x8xf32>
    %200 = vector.extract_strided_slice %174 {offsets = [72, 0], sizes = [8, 8], strides = [1, 1]} : vector<128x8xf32> to vector<8x8xf32>
    %201 = arith.maximumf %199, %200 : vector<8x8xf32>
    %c0_133 = arith.constant 0 : index
    %c32 = arith.constant 32 : index
    %c0_134 = arith.constant 0 : index
    %202 = vector.load %arg6[%c0_133, %c32, %c0_134] : memref<1x64x8xf32, #tpu.memory_space<vmem>>, vector<1x8x8xf32>
    %203 = vector.shape_cast %202 : vector<1x8x8xf32> to vector<8x8xf32>
    %204 = vector.shape_cast %201 : vector<8x8xf32> to vector<1x8x8xf32>
    tpu.vector_store %arg6[%c0_133, %c32, %c0_134], %204 {strides = array<i32>} : memref<1x64x8xf32, #tpu.memory_space<vmem>>, vector<1x8x8xf32>,
    %205 = vector.extract_strided_slice %174 {offsets = [80, 0], sizes = [8, 8], strides = [1, 1]} : vector<128x8xf32> to vector<8x8xf32>
    %206 = vector.extract_strided_slice %174 {offsets = [88, 0], sizes = [8, 8], strides = [1, 1]} : vector<128x8xf32> to vector<8x8xf32>
    %207 = arith.maximumf %205, %206 : vector<8x8xf32>
    %c0_135 = arith.constant 0 : index
    %c40 = arith.constant 40 : index
    %c0_136 = arith.constant 0 : index
    %208 = vector.load %arg6[%c0_135, %c40, %c0_136] : memref<1x64x8xf32, #tpu.memory_space<vmem>>, vector<1x8x8xf32>
    %209 = vector.shape_cast %208 : vector<1x8x8xf32> to vector<8x8xf32>
    %210 = vector.shape_cast %207 : vector<8x8xf32> to vector<1x8x8xf32>
    tpu.vector_store %arg6[%c0_135, %c40, %c0_136], %210 {strides = array<i32>} : memref<1x64x8xf32, #tpu.memory_space<vmem>>, vector<1x8x8xf32>,
    %211 = vector.extract_strided_slice %174 {offsets = [96, 0], sizes = [8, 8], strides = [1, 1]} : vector<128x8xf32> to vector<8x8xf32>
    %212 = vector.extract_strided_slice %174 {offsets = [104, 0], sizes = [8, 8], strides = [1, 1]} : vector<128x8xf32> to vector<8x8xf32>
    %213 = arith.maximumf %211, %212 : vector<8x8xf32>
    %c0_137 = arith.constant 0 : index
    %c48 = arith.constant 48 : index
    %c0_138 = arith.constant 0 : index
    %214 = vector.load %arg6[%c0_137, %c48, %c0_138] : memref<1x64x8xf32, #tpu.memory_space<vmem>>, vector<1x8x8xf32>
    %215 = vector.shape_cast %214 : vector<1x8x8xf32> to vector<8x8xf32>
    %216 = vector.shape_cast %213 : vector<8x8xf32> to vector<1x8x8xf32>
    tpu.vector_store %arg6[%c0_137, %c48, %c0_138], %216 {strides = array<i32>} : memref<1x64x8xf32, #tpu.memory_space<vmem>>, vector<1x8x8xf32>,
    %217 = vector.extract_strided_slice %174 {offsets = [112, 0], sizes = [8, 8], strides = [1, 1]} : vector<128x8xf32> to vector<8x8xf32>
    %218 = vector.extract_strided_slice %174 {offsets = [120, 0], sizes = [8, 8], strides = [1, 1]} : vector<128x8xf32> to vector<8x8xf32>
    %219 = arith.maximumf %217, %218 : vector<8x8xf32>
    %c0_139 = arith.constant 0 : index
    %c56 = arith.constant 56 : index
    %c0_140 = arith.constant 0 : index
    %220 = vector.load %arg6[%c0_139, %c56, %c0_140] : memref<1x64x8xf32, #tpu.memory_space<vmem>>, vector<1x8x8xf32>
    %221 = vector.shape_cast %220 : vector<1x8x8xf32> to vector<8x8xf32>
    %222 = vector.shape_cast %219 : vector<8x8xf32> to vector<1x8x8xf32>
    tpu.vector_store %arg6[%c0_139, %c56, %c0_140], %222 {strides = array<i32>} : memref<1x64x8xf32, #tpu.memory_space<vmem>>, vector<1x8x8xf32>,
    return
  }
  func.func @transform_0(%arg0: i32) -> (i32, i32, i32) {
    %c0_i32 = arith.constant 0 : i32
    %c0_i32_0 = arith.constant 0 : i32
    %c0_i32_1 = arith.constant 0 : i32
    return %arg0, %c0_i32, %c0_i32_0 : i32, i32, i32
  }
  func.func @transform_1(%arg0: i32) -> (i32, i32) {
    %c0_i32 = arith.constant 0 : i32
    %c0_i32_0 = arith.constant 0 : i32
    %c0_i32_1 = arith.constant 0 : i32
    return %c0_i32, %c0_i32_0 : i32, i32
  }
  func.func @transform_2(%arg0: i32) -> (i32, i32) {
    %c0_i32 = arith.constant 0 : i32
    %c0_i32_0 = arith.constant 0 : i32
    %c0_i32_1 = arith.constant 0 : i32
    return %c0_i32, %c0_i32_0 : i32, i32
  }
  func.func @transform_3(%arg0: i32) -> (i32, i32, i32) {
    %c0_i32 = arith.constant 0 : i32
    %c0_i32_0 = arith.constant 0 : i32
    %c0_i32_1 = arith.constant 0 : i32
    %c0_i32_2 = arith.constant 0 : i32
    return %c0_i32, %c0_i32_0, %c0_i32_1 : i32, i32, i32
  }
  func.func @transform_4(%arg0: i32) -> (i32, i32) {
    %c0_i32 = arith.constant 0 : i32
    %c0_i32_0 = arith.constant 0 : i32
    %c0_i32_1 = arith.constant 0 : i32
    return %c0_i32, %c0_i32_0 : i32, i32
  }
  func.func @transform_5(%arg0: i32) -> (i32, i32, i32) {
    %c0_i32 = arith.constant 0 : i32
    %c0_i32_0 = arith.constant 0 : i32
    %c0_i32_1 = arith.constant 0 : i32
    return %arg0, %c0_i32, %c0_i32_0 : i32, i32, i32
  }
}

module attributes {stable_mosaic.version = 11 : i64} {
  func.func @mlp_kernel(%arg0: memref<2x512xf32, #tpu.memory_space<vmem>>, %arg1: memref<512x32xf32, #tpu.memory_space<vmem>>, %arg2: memref<1x32xf32, #tpu.memory_space<vmem>>, %arg3: memref<32x128xf32, #tpu.memory_space<vmem>>, %arg4: memref<1x128xf32, #tpu.memory_space<vmem>>, %arg5: memref<2x128xf32, #tpu.memory_space<vmem>>) attributes {dimension_semantics = [], scalar_prefetch = 0 : i64, scratch_operands = 0 : i64, tpu.core_type = #tpu.core_type<tc>} {
    %c0 = arith.constant 0 : index
    %c0_0 = arith.constant 0 : index
    %0 = vector.load %arg0[%c0, %c0_0] : memref<2x512xf32, #tpu.memory_space<vmem>>, vector<2x512xf32>
    %c0_1 = arith.constant 0 : index
    %c0_2 = arith.constant 0 : index
    %1 = vector.load %arg1[%c0_1, %c0_2] : memref<512x32xf32, #tpu.memory_space<vmem>>, vector<512x32xf32>
    %cst = arith.constant dense<0.000000e+00> : vector<2x32xf32>
    %2 = tpu.matmul %0, %1, %cst {dimension_numbers = #tpu.dot_dimension_numbers<[1], [0], [0], [1], [0, 0, 1, 1], [], []>} : vector<2x512xf32>, vector<512x32xf32>, vector<2x32xf32> -> vector<2x32xf32>
    %c0_3 = arith.constant 0 : index
    %c0_4 = arith.constant 0 : index
    %3 = vector.load %arg2[%c0_3, %c0_4] : memref<1x32xf32, #tpu.memory_space<vmem>>, vector<1x32xf32>
    %4 = vector.broadcast %3 : vector<1x32xf32> to vector<2x32xf32>
    %5 = arith.addf %2, %4 : vector<2x32xf32>
    %6 = math.tanh %5 : vector<2x32xf32>
    %c0_5 = arith.constant 0 : index
    %c0_6 = arith.constant 0 : index
    %7 = vector.load %arg3[%c0_5, %c0_6] : memref<32x128xf32, #tpu.memory_space<vmem>>, vector<32x128xf32>
    %cst_7 = arith.constant dense<0.000000e+00> : vector<2x128xf32>
    %8 = tpu.matmul %6, %7, %cst_7 {dimension_numbers = #tpu.dot_dimension_numbers<[1], [0], [0], [1], [0, 0, 1, 1], [], []>} : vector<2x32xf32>, vector<32x128xf32>, vector<2x128xf32> -> vector<2x128xf32>
    %c0_8 = arith.constant 0 : index
    %c0_9 = arith.constant 0 : index
    %9 = vector.load %arg4[%c0_8, %c0_9] : memref<1x128xf32, #tpu.memory_space<vmem>>, vector<1x128xf32>
    %10 = vector.broadcast %9 : vector<1x128xf32> to vector<2x128xf32>
    %11 = arith.addf %8, %10 : vector<2x128xf32>
    %c0_10 = arith.constant 0 : index
    %c0_11 = arith.constant 0 : index
    %12 = vector.load %arg5[%c0_10, %c0_11] : memref<2x128xf32, #tpu.memory_space<vmem>>, vector<2x128xf32>
    tpu.vector_store %arg5[%c0_10, %c0_11], %11 {strides = array<i32>} : memref<2x128xf32, #tpu.memory_space<vmem>>, vector<2x128xf32>,
    return
  }
}

</mosaic_0001>

<llo_original>
// kernel: net_forward.3
$region0: #{net_forward.3}
  #allocation0 [shape = 'u32[]', space=smem, size = 0x4, offset = 0x4, fixed_abs, tag = 'smem constant byte address 0x4 - core index']
  #allocation1 [shape = 'u32[72,128]{1,0:T(1,128)}', space=vmem, size = 0x9000, scoped, tag = 'internal scratch']
  %s0 = inlined_call_operand.vmem [shape: f32[2,512], index: 0, kind: input, shape index: {}]
  %s1 = inlined_call_operand.vmem [shape: f32[512,32], index: 1, kind: input, shape index: {}]
  %s2 = inlined_call_operand.vmem [shape: f32[1,32], index: 2, kind: input, shape index: {}]
  %s3 = inlined_call_operand.vmem [shape: f32[32,128], index: 3, kind: input, shape index: {}]
  %s4 = inlined_call_operand.vmem [shape: f32[1,128], index: 4, kind: input, shape index: {}]
  %s5 = inlined_call_operand.hbm [shape: f32[2,128], index: 5, kind: output, shape index: {}]
  %s6 = sld [smem:[#allocation0]]
  $region30: #{net_forward.3} parent=0
    _
  %s8 = ssub.s32 1, %s6
  %s9 = scalar_select 0, %s8, %s6
  $region1: #{net_forward.3} parent=0
    #allocation2 [shape = 'u8[1024]{0}', space=vmem, size = 0x400, scoped, tag = 'output window, operand 0, single buffered']
    #allocation3 [shape = 's32[1]{0}', space=sflag, size = 0x4, scoped, tag = 'scoped memory for net_forward.3']
    %10 = vsyncpa [#allocation3], 0
    // Predicated region
    $region2: #{net_forward.3} parent=1 // pred_check
      _
    $region3: #{net_forward.3} parent=1 // pred_check_branch
      %12 = sbr.rel (0) target = $region5
    $region4: #{net_forward.3} parent=1 // pred_region
      _
    $region5: #{net_forward.3} parent=1 // pred_fallthru
      _
    // Predicated region
    $region6: #{net_forward.3} parent=1 // pred_check
      _
    $region7: #{net_forward.3} parent=1 // pred_check_branch
      %14 = sbr.rel (0) target = $region9
    $region8: #{net_forward.3} parent=1 // pred_region
      _
    $region9: #{net_forward.3} parent=1 // pred_fallthru
      _
    // Predicated region
    $region10: #{net_forward.3} parent=1 // pred_check
      _
    $region11: #{net_forward.3} parent=1 // pred_check_branch
      %16 = sbr.rel (0) target = $region13
    $region12: #{net_forward.3} parent=1 // pred_region
      _
    $region13: #{net_forward.3} parent=1 // pred_fallthru
      _
    // Predicated region
    $region14: #{net_forward.3} parent=1 // pred_check
      _
    $region15: #{net_forward.3} parent=1 // pred_check_branch
      %18 = sbr.rel (0) target = $region17
    $region16: #{net_forward.3} parent=1 // pred_region
      _
    $region17: #{net_forward.3} parent=1 // pred_fallthru
      _
    // Predicated region
    $region18: #{net_forward.3} parent=1 // pred_check
      _
    $region19: #{net_forward.3} parent=1 // pred_check_branch
      %20 = sbr.rel (0) target = $region21
    $region20: #{net_forward.3} parent=1 // pred_region
      _
    $region21: #{net_forward.3} parent=1 // pred_fallthru
      _
    %v21 = vld [vmem:[%s0] sm:$0xff]
    %v22 = vld [vmem:[%s1] sm:$0xff]
    %v23 = vld [vmem:[%s1 + $0x8] sm:$0xff]
    %v24 = vld [vmem:[%s1 + $0x10] sm:$0xff]
    %v25 = vld [vmem:[%s1 + $0x18] sm:$0xff]
    %v26 = vld [vmem:[%s1 + $0x20] sm:$0xff]
    %v27 = vld [vmem:[%s1 + $0x28] sm:$0xff]
    %v28 = vld [vmem:[%s1 + $0x30] sm:$0xff]
    %v29 = vld [vmem:[%s1 + $0x38] sm:$0xff]
    %v30 = vld [vmem:[%s1 + $0x40] sm:$0xff]
    %v31 = vld [vmem:[%s1 + $0x48] sm:$0xff]
    %v32 = vld [vmem:[%s1 + $0x50] sm:$0xff]
    %v33 = vld [vmem:[%s1 + $0x58] sm:$0xff]
    %v34 = vld [vmem:[%s1 + $0x60] sm:$0xff]
    %v35 = vld [vmem:[%s1 + $0x68] sm:$0xff]
    %v36 = vld [vmem:[%s1 + $0x70] sm:$0xff]
    %v37 = vld [vmem:[%s1 + $0x78] sm:$0xff]
    %v38 = vld [vmem:[%s1 + $0x80] sm:$0xff]
    %v39 = vld [vmem:[%s1 + $0x88] sm:$0xff]
    %v40 = vld [vmem:[%s1 + $0x90] sm:$0xff]
    %v41 = vld [vmem:[%s1 + $0x98] sm:$0xff]
    %v42 = vld [vmem:[%s1 + $0xa0] sm:$0xff]
    %v43 = vld [vmem:[%s1 + $0xa8] sm:$0xff]
    %v44 = vld [vmem:[%s1 + $0xb0] sm:$0xff]
    %v45 = vld [vmem:[%s1 + $0xb8] sm:$0xff]
    %v46 = vld [vmem:[%s1 + $0xc0] sm:$0xff]
    %v47 = vld [vmem:[%s1 + $0xc8] sm:$0xff]
    %v48 = vld [vmem:[%s1 + $0xd0] sm:$0xff]
    %v49 = vld [vmem:[%s1 + $0xd8] sm:$0xff]
    %v50 = vld [vmem:[%s1 + $0xe0] sm:$0xff]
    %v51 = vld [vmem:[%s1 + $0xe8] sm:$0xff]
    %v52 = vld [vmem:[%s1 + $0xf0] sm:$0xff]
    %v53 = vld [vmem:[%s1 + $0xf8] sm:$0xff]
    %v54 = vld [vmem:[%s1 + $0x100] sm:$0xff]
    %v55 = vld [vmem:[%s1 + $0x108] sm:$0xff]
    %v56 = vld [vmem:[%s1 + $0x110] sm:$0xff]
    %v57 = vld [vmem:[%s1 + $0x118] sm:$0xff]
    %v58 = vld [vmem:[%s1 + $0x120] sm:$0xff]
    %v59 = vld [vmem:[%s1 + $0x128] sm:$0xff]
    %v60 = vld [vmem:[%s1 + $0x130] sm:$0xff]
    %v61 = vld [vmem:[%s1 + $0x138] sm:$0xff]
    %v62 = vld [vmem:[%s1 + $0x140] sm:$0xff]
    %v63 = vld [vmem:[%s1 + $0x148] sm:$0xff]
    %v64 = vld [vmem:[%s1 + $0x150] sm:$0xff]
    %v65 = vld [vmem:[%s1 + $0x158] sm:$0xff]
    %v66 = vld [vmem:[%s1 + $0x160] sm:$0xff]
    %v67 = vld [vmem:[%s1 + $0x168] sm:$0xff]
    %v68 = vld [vmem:[%s1 + $0x170] sm:$0xff]
    %v69 = vld [vmem:[%s1 + $0x178] sm:$0xff]
    %v70 = vld [vmem:[%s1 + $0x180] sm:$0xff]
    %v71 = vld [vmem:[%s1 + $0x188] sm:$0xff]
    %v72 = vld [vmem:[%s1 + $0x190] sm:$0xff]
    %v73 = vld [vmem:[%s1 + $0x198] sm:$0xff]
    %v74 = vld [vmem:[%s1 + $0x1a0] sm:$0xff]
    %v75 = vld [vmem:[%s1 + $0x1a8] sm:$0xff]
    %v76 = vld [vmem:[%s1 + $0x1b0] sm:$0xff]
    %v77 = vld [vmem:[%s1 + $0x1b8] sm:$0xff]
    %v78 = vld [vmem:[%s1 + $0x1c0] sm:$0xff]
    %v79 = vld [vmem:[%s1 + $0x1c8] sm:$0xff]
    %v80 = vld [vmem:[%s1 + $0x1d0] sm:$0xff]
    %v81 = vld [vmem:[%s1 + $0x1d8] sm:$0xff]
    %v82 = vld [vmem:[%s1 + $0x1e0] sm:$0xff]
    %v83 = vld [vmem:[%s1 + $0x1e8] sm:$0xff]
    %v84 = vld [vmem:[%s1 + $0x1f0] sm:$0xff]
    %v85 = vld [vmem:[%s1 + $0x1f8] sm:$0xff]
    %v86 = vld [vmem:[%s2] sm:$0x1]
    %v88 = vperm.slane %v86, 0
    %91 = vst [vmem:[#allocation1] ss:$4 sm:$0xff] %v21
    %v92 = vld.sshfl [vmem:[#allocation1] sm:$0xff pattern:$0x73625140]
    %v93 = vld.sshfl [vmem:[#allocation1 + $0x8] sm:$0xff pattern:$0x73625140]
    %v94 = vld.sshfl [vmem:[#allocation1 + $0x10] sm:$0xff pattern:$0x73625140]
    %v95 = vld.sshfl [vmem:[#allocation1 + $0x18] sm:$0xff pattern:$0x73625140]
    %100 = vmatpush.msra.mxu0 %v37
    %101 = vmatpush.msra.mxu0 %v36
    %102 = vmatpush.msra.mxu0 %v35
    %103 = vmatpush.msra.mxu0 %v34
    %104 = vmatpush.msra.mxu0 %v33
    %105 = vmatpush.msra.mxu0 %v32
    %106 = vmatpush.msra.mxu0 %v31
    %107 = vmatpush.msra.mxu0 %v30
    %108 = vmatpush.msra.mxu0 %v29
    %109 = vmatpush.msra.mxu0 %v28
    %110 = vmatpush.msra.mxu0 %v27
    %111 = vmatpush.msra.mxu0 %v26
    %112 = vmatpush.msra.mxu0 %v25
    %113 = vmatpush.msra.mxu0 %v24
    %114 = vmatpush.msra.mxu0 %v23
    %115 = vmatpush.msra.mxu0 %v22
    %116 = vmatmul.f32.gmra.mxu0 %v92
    %v117 = vpop.f32.mrf.mxu0
    %v118 = vadd.f32 %v88, %v117
    %119 = vdwg.mxu0
    %120 = vmatpush.msra.mxu0 %v53
    %121 = vmatpush.msra.mxu0 %v52
    %122 = vmatpush.msra.mxu0 %v51
    %123 = vmatpush.msra.mxu0 %v50
    %124 = vmatpush.msra.mxu0 %v49
    %125 = vmatpush.msra.mxu0 %v48
    %126 = vmatpush.msra.mxu0 %v47
    %127 = vmatpush.msra.mxu0 %v46
    %128 = vmatpush.msra.mxu0 %v45
    %129 = vmatpush.msra.mxu0 %v44
    %130 = vmatpush.msra.mxu0 %v43
    %131 = vmatpush.msra.mxu0 %v42
    %132 = vmatpush.msra.mxu0 %v41
    %133 = vmatpush.msra.mxu0 %v40
    %134 = vmatpush.msra.mxu0 %v39
    %135 = vmatpush.msra.mxu0 %v38
    %136 = vmatmul.f32.gmra.mxu0 %v93
    %v137 = vpop.f32.mrf.mxu0
    %v138 = vadd.f32 %v118, %v137
    %139 = vdwg.mxu0
    %140 = vmatpush.msra.mxu0 %v69
    %141 = vmatpush.msra.mxu0 %v68
    %142 = vmatpush.msra.mxu0 %v67
    %143 = vmatpush.msra.mxu0 %v66
    %144 = vmatpush.msra.mxu0 %v65
    %145 = vmatpush.msra.mxu0 %v64
    %146 = vmatpush.msra.mxu0 %v63
    %147 = vmatpush.msra.mxu0 %v62
    %148 = vmatpush.msra.mxu0 %v61
    %149 = vmatpush.msra.mxu0 %v60
    %150 = vmatpush.msra.mxu0 %v59
    %151 = vmatpush.msra.mxu0 %v58
    %152 = vmatpush.msra.mxu0 %v57
    %153 = vmatpush.msra.mxu0 %v56
    %154 = vmatpush.msra.mxu0 %v55
    %155 = vmatpush.msra.mxu0 %v54
    %156 = vmatmul.f32.gmra.mxu0 %v94
    %v157 = vpop.f32.mrf.mxu0
    %v158 = vadd.f32 %v138, %v157
    %159 = vdwg.mxu0
    %160 = vmatpush.msra.mxu0 %v85
    %161 = vmatpush.msra.mxu0 %v84
    %162 = vmatpush.msra.mxu0 %v83
    %163 = vmatpush.msra.mxu0 %v82
    %164 = vmatpush.msra.mxu0 %v81
    %165 = vmatpush.msra.mxu0 %v80
    %166 = vmatpush.msra.mxu0 %v79
    %167 = vmatpush.msra.mxu0 %v78
    %168 = vmatpush.msra.mxu0 %v77
    %169 = vmatpush.msra.mxu0 %v76
    %170 = vmatpush.msra.mxu0 %v75
    %171 = vmatpush.msra.mxu0 %v74
    %172 = vmatpush.msra.mxu0 %v73
    %173 = vmatpush.msra.mxu0 %v72
    %174 = vmatpush.msra.mxu0 %v71
    %175 = vmatpush.msra.mxu0 %v70
    %176 = vmatmul.f32.gmra.mxu0 %v95
    %v177 = vpop.f32.mrf.mxu0
    %v178 = vadd.f32 %v158, %v177
    %179 = vdwg.mxu0
    %v180 = vtanh.pop %v178
    %v181 = vld [vmem:[%s3] sm:$0xff]
    %v182 = vld [vmem:[%s3 + $0x8] sm:$0xff]
    %v183 = vld [vmem:[%s3 + $0x10] sm:$0xff]
    %v184 = vld [vmem:[%s3 + $0x18] sm:$0xff]
    %v185 = vld [vmem:[%s4] sm:$0x1]
    %v187 = vperm.slane %v185, 0
    %vm189 = vcmask 261120
    %v191 = vsel %vm189, %v180, 0
    %193 = vmatpush.msra.mxu0 0.0
    %194 = vmatpush.msra.mxu0 0.0
    %195 = vmatpush.msra.mxu0 0.0
    %196 = vmatpush.msra.mxu0 0.0
    %197 = vmatpush.msra.mxu0 0.0
    %198 = vmatpush.msra.mxu0 0.0
    %199 = vmatpush.msra.mxu0 0.0
    %200 = vmatpush.msra.mxu0 0.0
    %201 = vmatpush.msra.mxu0 0.0
    %202 = vmatpush.msra.mxu0 0.0
    %203 = vmatpush.msra.mxu0 0.0
    %204 = vmatpush.msra.mxu0 0.0
    %205 = vmatpush.msra.mxu0 %v184
    %206 = vmatpush.msra.mxu0 %v183
    %207 = vmatpush.msra.mxu0 %v182
    %208 = vmatpush.msra.mxu0 %v181
    %209 = vmatmul.f32.gmra.mxu0 %v191
    %v210 = vpop.f32.mrf.mxu0
    %v211 = vadd.f32 %v187, %v210
    %212 = vdwg.mxu0
    %213 = vst [vmem:[#allocation2] sm:$0x3] %v211
    // Predicated region
    $region22: #{net_forward.3} parent=1 // pred_check
      _
    $region23: #{net_forward.3} parent=1 // pred_check_branch
      %215 = sbr.rel (0) target = $region25
    $region24: #{net_forward.3} parent=1 // pred_region
      %217 = vsyncadd [#allocation3], 0
      %s219 = sshll.u32 [#allocation2], 4
      %s220 = int_to_ptr.vmem [resolvable:$true] %s219
      %s221 = sshll.u32 %s5, 4
      %s222 = int_to_ptr.hbm [resolvable:$true] %s221
      %224 = dma.vmem_to_hbm [thread:$0]  %s220, 32, %s222, [#allocation3]
    $region25: #{net_forward.3} parent=1 // pred_fallthru
      _
    // Predicated region
    $region26: #{net_forward.3} parent=1 // pred_check
      _
    $region27: #{net_forward.3} parent=1 // pred_check_branch
      %226 = sbr.rel (0) target = $region29
    $region28: #{net_forward.3} parent=1 // pred_region
      %228 = dma.done [#allocation3], 32
    $region29: #{net_forward.3} parent=1 // pred_fallthru
      _
    %229 = vsyncpa [#allocation3], 1

// kernel: net_forward.2
$region0: #{net_forward.2}
  #allocation0 [shape = 'u32[]', space=smem, size = 0x4, offset = 0x4, fixed_abs, tag = 'smem constant byte address 0x4 - core index']
  #allocation1 [shape = 'u32[72,128]{1,0:T(1,128)}', space=vmem, size = 0x9000, scoped, tag = 'internal scratch']
  #allocation2 [shape = 'f32[1024,16]{1,0:T(8,128)}', space=vmem, size = 0x80000, scoped, tag = 'scratch operand']
  #allocation3 [shape = 'f32[18,32,16]{2,1,0:T(8,128)}', space=vmem, size = 0x48000, scoped, tag = 'scratch operand']
  #allocation4 [shape = 'f32[256,8]{1,0:T(8,128)}', space=vmem, size = 0x20000, scoped, tag = 'scratch operand']
  %s0 = inlined_call_operand.vmem [shape: f32[2,1024,27], index: 0, kind: input, shape index: {}]
  %s1 = inlined_call_operand.vmem [shape: f32[27,16], index: 1, kind: input, shape index: {}]
  %s2 = inlined_call_operand.vmem [shape: f32[1,16], index: 2, kind: input, shape index: {}]
  %s3 = inlined_call_operand.vmem [shape: f32[9,16,8], index: 3, kind: input, shape index: {}]
  %s4 = inlined_call_operand.vmem [shape: f32[1,8], index: 4, kind: input, shape index: {}]
  %s5 = inlined_call_operand.vmem [shape: f32[2,64,8], index: 5, kind: output, shape index: {}]
  %s6 = sld [smem:[#allocation0]]
  $region53: #{net_forward.2} parent=0
    _
  %s8 = ssub.s32 1, %s6
  %s9 = scalar_select 0, %s8, %s6
  loop: start=0, step=1, limit=4
  $region2: #{net_forward.2} parent=0 // loop_pre_header
    _
  $region3: #{net_forward.2} parent=0 // loop_header
    %s11 = sphi 0, %s15
    %p12 = scmp.ge.s32.totalorder %s11, 4
    %s21 = sphi 0, %s23
    %s24 = sphi 0, %s21
    %s25 = sphi 0, %s24
    %s41 = sphi 0, %s25
    %s45 = sphi 0, %s45
    %s47 = sphi 0, %s45
    %s48 = sphi 0, %s47
    %s62 = sphi 0, %s48
    %s66 = sphi 0, %s66
    %s68 = sphi 0, %s66
    %s69 = sphi 0, %s68
    %s83 = sphi 0, %s69
    %s87 = sphi 0, %s87
    %s89 = sphi 0, %s87
    %s90 = sphi 0, %s89
    %s104 = sphi 0, %s90
    %s108 = sphi 0, %s108
    %s110 = sphi 0, %s108
    %s111 = sphi 0, %s110
    %s125 = sphi 0, %s111
    %s131 = sphi 0, %s133
    %s134 = sphi 0, %s131
    %s135 = sphi 0, %s134
    %s151 = sphi 0, %s135
  $region4: #{net_forward.2} parent=0 // loop_header_branch
    %14 = sbr.rel (%p12) target = $region8
  $region5: #{net_forward.2} parent=0 // loop_body
    %s16 = ssub.s32 %s11, 1
    %s17 = ssub.s32 %s11, 2
    %s18 = sadd.s32 %s11, 1
    %s19 = ssub.s32 %s11, %s18
    %p20 = scmp.eq.s32.totalorder %s19, 0
    %s22 = sadd.s32 %s21, 1
    %s23 = scalar_select %p20, %s21, %s22
    %p26 = pneg %p20
    %p27 = scmp.eq.s32.totalorder %s11, 1
    %p28 = por %p26, %p27
    %p29 = scmp.ne.s32.totalorder %s21, %s24
    %p30 = scmp.eq.s32.totalorder %s11, 0
    %p31 = por %p29, %p30
    %p32 = scmp.ne.s32.totalorder %s21, %s24
    %p33 = scmp.eq.s32.totalorder %s16, 1
    %p34 = por %p32, %p33
    %p35 = scmp.ne.s32.totalorder %s24, %s25
    %p36 = scmp.eq.s32.totalorder %s16, 0
    %p37 = por %p35, %p36
    %p38 = scmp.ne.s32.totalorder %s24, %s25
    %p39 = scmp.eq.s32.totalorder %s17, 1
    %p40 = por %p38, %p39
    %p42 = scmp.ne.s32.totalorder %s25, %s41
    %p43 = scmp.eq.s32.totalorder %s17, 0
    %p44 = por %p42, %p43
    %s46 = sadd.s32 %s45, 1
    %p49 = scmp.eq.s32.totalorder %s11, 1
    %p50 = scmp.ne.s32.totalorder %s45, %s47
    %p51 = scmp.eq.s32.totalorder %s11, 0
    %p52 = por %p50, %p51
    %p53 = scmp.ne.s32.totalorder %s45, %s47
    %p54 = scmp.eq.s32.totalorder %s16, 1
    %p55 = por %p53, %p54
    %p56 = scmp.ne.s32.totalorder %s47, %s48
    %p57 = scmp.eq.s32.totalorder %s16, 0
    %p58 = por %p56, %p57
    %p59 = scmp.ne.s32.totalorder %s47, %s48
    %p60 = scmp.eq.s32.totalorder %s17, 1
    %p61 = por %p59, %p60
    %p63 = scmp.ne.s32.totalorder %s48, %s62
    %p64 = scmp.eq.s32.totalorder %s17, 0
    %p65 = por %p63, %p64
    %s67 = sadd.s32 %s66, 1
    %p70 = scmp.eq.s32.totalorder %s11, 1
    %p71 = scmp.ne.s32.totalorder %s66, %s68
    %p72 = scmp.eq.s32.totalorder %s11, 0
    %p73 = por %p71, %p72
    %p74 = scmp.ne.s32.totalorder %s66, %s68
    %p75 = scmp.eq.s32.totalorder %s16, 1
    %p76 = por %p74, %p75
    %p77 = scmp.ne.s32.totalorder %s68, %s69
    %p78 = scmp.eq.s32.totalorder %s16, 0
    %p79 = por %p77, %p78
    %p80 = scmp.ne.s32.totalorder %s68, %s69
    %p81 = scmp.eq.s32.totalorder %s17, 1
    %p82 = por %p80, %p81
    %p84 = scmp.ne.s32.totalorder %s69, %s83
    %p85 = scmp.eq.s32.totalorder %s17, 0
    %p86 = por %p84, %p85
    %s88 = sadd.s32 %s87, 1
    %p91 = scmp.eq.s32.totalorder %s11, 1
    %p92 = scmp.ne.s32.totalorder %s87, %s89
    %p93 = scmp.eq.s32.totalorder %s11, 0
    %p94 = por %p92, %p93
    %p95 = scmp.ne.s32.totalorder %s87, %s89
    %p96 = scmp.eq.s32.totalorder %s16, 1
    %p97 = por %p95, %p96
    %p98 = scmp.ne.s32.totalorder %s89, %s90
    %p99 = scmp.eq.s32.totalorder %s16, 0
    %p100 = por %p98, %p99
    %p101 = scmp.ne.s32.totalorder %s89, %s90
    %p102 = scmp.eq.s32.totalorder %s17, 1
    %p103 = por %p101, %p102
    %p105 = scmp.ne.s32.totalorder %s90, %s104
    %p106 = scmp.eq.s32.totalorder %s17, 0
    %p107 = por %p105, %p106
    %s109 = sadd.s32 %s108, 1
    %p112 = scmp.eq.s32.totalorder %s11, 1
    %p113 = scmp.ne.s32.totalorder %s108, %s110
    %p114 = scmp.eq.s32.totalorder %s11, 0
    %p115 = por %p113, %p114
    %p116 = scmp.ne.s32.totalorder %s108, %s110
    %p117 = scmp.eq.s32.totalorder %s16, 1
    %p118 = por %p116, %p117
    %p119 = scmp.ne.s32.totalorder %s110, %s111
    %p120 = scmp.eq.s32.totalorder %s16, 0
    %p121 = por %p119, %p120
    %p122 = scmp.ne.s32.totalorder %s110, %s111
    %p123 = scmp.eq.s32.totalorder %s17, 1
    %p124 = por %p122, %p123
    %p126 = scmp.ne.s32.totalorder %s111, %s125
    %p127 = scmp.eq.s32.totalorder %s17, 0
    %p128 = por %p126, %p127
    %s129 = ssub.s32 %s11, %s18
    %p130 = scmp.eq.s32.totalorder %s129, 0
    %s132 = sadd.s32 %s131, 1
    %s133 = scalar_select %p130, %s131, %s132
    %p136 = pneg %p130
    %p137 = scmp.eq.s32.totalorder %s11, 1
    %p138 = por %p136, %p137
    %p139 = scmp.ne.s32.totalorder %s131, %s134
    %p140 = scmp.eq.s32.totalorder %s11, 0
    %p141 = por %p139, %p140
    %p142 = scmp.ne.s32.totalorder %s131, %s134
    %p143 = scmp.eq.s32.totalorder %s16, 1
    %p144 = por %p142, %p143
    %p145 = scmp.ne.s32.totalorder %s134, %s135
    %p146 = scmp.eq.s32.totalorder %s16, 0
    %p147 = por %p145, %p146
    %p148 = scmp.ne.s32.totalorder %s134, %s135
    %p149 = scmp.eq.s32.totalorder %s17, 1
    %p150 = por %p148, %p149
    %p152 = scmp.ne.s32.totalorder %s135, %s151
    %p153 = scmp.eq.s32.totalorder %s17, 0
    %p154 = por %p152, %p153
    %p155 = scmp.le.s32.totalorder 1, %s11
    %p156 = scmp.lt.s32.totalorder %s11, 3
    %p157 = pnand %p155, %p156
    %p158 = pneg %p157
    // Predicated region
    $region9: #{net_forward.2} parent=5 // pred_check
      _
    $region10: #{net_forward.2} parent=5 // pred_check_branch
      %160 = sbr.rel (%p157) target = $region12
    $region11: #{net_forward.2} parent=5 // pred_region
      %s161 = ssub.s32 %s11, 1
      // Predicated region
      $region13: #{net_forward.2} parent=11 // pred_check
        %p162 = pneg %p58
      $region14: #{net_forward.2} parent=11 // pred_check_branch
        %164 = sbr.rel (%p162) target = $region16
      $region15: #{net_forward.2} parent=11 // pred_region
        _
      $region16: #{net_forward.2} parent=11 // pred_fallthru
        _
      // Predicated region
      $region17: #{net_forward.2} parent=11 // pred_check
        %p165 = pneg %p79
      $region18: #{net_forward.2} parent=11 // pred_check_branch
        %167 = sbr.rel (%p165) target = $region20
      $region19: #{net_forward.2} parent=11 // pred_region
        _
      $region20: #{net_forward.2} parent=11 // pred_fallthru
        _
      // Predicated region
      $region21: #{net_forward.2} parent=11 // pred_check
        %p168 = pneg %p100
      $region22: #{net_forward.2} parent=11 // pred_check_branch
        %170 = sbr.rel (%p168) target = $region24
      $region23: #{net_forward.2} parent=11 // pred_region
        _
      $region24: #{net_forward.2} parent=11 // pred_fallthru
        _
      // Predicated region
      $region25: #{net_forward.2} parent=11 // pred_check
        %p171 = pneg %p121
      $region26: #{net_forward.2} parent=11 // pred_check_branch
        %173 = sbr.rel (%p171) target = $region28
      $region27: #{net_forward.2} parent=11 // pred_region
        _
      $region28: #{net_forward.2} parent=11 // pred_fallthru
        _
    $region12: #{net_forward.2} parent=5 // pred_fallthru
      _
    %p174 = scmp.lt.s32.totalorder %s11, 2
    // Predicated region
    $region29: #{net_forward.2} parent=5 // pred_check
      %p175 = pneg %p174
    $region30: #{net_forward.2} parent=5 // pred_check_branch
      %177 = sbr.rel (%p175) target = $region32
    $region31: #{net_forward.2} parent=5 // pred_region
      // Predicated region
      $region33: #{net_forward.2} parent=31 // pred_check
        %p178 = pneg %p31
      $region34: #{net_forward.2} parent=31 // pred_check_branch
        %180 = sbr.rel (%p178) target = $region36
      $region35: #{net_forward.2} parent=31 // pred_region
        %p181 = scmp.lt.s32.totalorder %s11, 1
        %s182 = scalar_select %p181, %s11, 1
        %s183 = smul.addr %s182, 128
        %s184 = smul.addr %s183, 8
        %s185 = scalar_lea.vmem %s0, %s184
      $region36: #{net_forward.2} parent=31 // pred_fallthru
        _
    $region32: #{net_forward.2} parent=5 // pred_fallthru
      _
    %p186 = scmp.le.s32.totalorder 1, %s11
    %p187 = scmp.lt.s32.totalorder %s11, 3
    %p188 = pnand %p186, %p187
    %p189 = pneg %p188
    // Predicated region
    $region37: #{net_forward.2} parent=5 // pred_check
      _
    $region38: #{net_forward.2} parent=5 // pred_check_branch
      %191 = sbr.rel (%p188) target = $region40
    $region39: #{net_forward.2} parent=5 // pred_region
      %s192 = ssub.s32 %s11, 1
      %p193 = scmp.lt.s32.totalorder %s16, 1
      %s194 = scalar_select %p193, %s16, 1
      %s195 = smul.addr %s194, 128
      %s196 = smul.addr %s195, 8
      %s197 = scalar_lea.vmem %s0, %s196
      %p198 = pneg %p37
      %p199 = pneg %p34
      %p200 = pneg %p58
      %p201 = pneg %p55
      %p202 = pneg %p79
      %p203 = pneg %p76
      %p204 = pneg %p100
      %p205 = pneg %p97
      %p206 = pneg %p121
      %p207 = pneg %p118
      %p208 = pneg %p147
      %p209 = pneg %p144
      %p210 = scmp.lt.s32.totalorder %s16, 1
      %s211 = scalar_select %p210, %s16, 1
      %s212 = smul.addr %s211, 8
      %s213 = smul.addr %s212, 8
      %s214 = scalar_lea.vmem %s5, %s213
      %p215 = scmp.lt.s32.totalorder %s16, 1
      %s216 = scalar_select %p215, %s16, 1
      %s217 = smul.addr %s216, 128
      %s218 = smul.addr %s217, 8
      %s219 = scalar_lea.vmem %s0, %s218
      %p220 = scmp.lt.s32.totalorder %s16, 1
      %s221 = scalar_select %p220, %s16, 1
      %s222 = smul.addr %s221, 8
      %s223 = smul.addr %s222, 8
      %s224 = scalar_lea.vmem %s5, %s223
      %v225 = vld [vmem:[%s219] sm:$0xff]
      %v226 = vld [vmem:[%s219 + $0x8] sm:$0xff]
      %v227 = vld [vmem:[%s219 + $0x10] sm:$0xff]
      %v228 = vld [vmem:[%s219 + $0x18] sm:$0xff]
      %v229 = vld [vmem:[%s219 + $0x20] sm:$0xff]
      %v230 = vld [vmem:[%s219 + $0x28] sm:$0xff]
      %v231 = vld [vmem:[%s219 + $0x30] sm:$0xff]
      %v232 = vld [vmem:[%s219 + $0x38] sm:$0xff]
      %v233 = vld [vmem:[%s219 + $0x40] sm:$0xff]
      %v234 = vld [vmem:[%s219 + $0x48] sm:$0xff]
      %v235 = vld [vmem:[%s219 + $0x50] sm:$0xff]
      %v236 = vld [vmem:[%s219 + $0x58] sm:$0xff]
      %v237 = vld [vmem:[%s219 + $0x60] sm:$0xff]
      %v238 = vld [vmem:[%s219 + $0x68] sm:$0xff]
      %v239 = vld [vmem:[%s219 + $0x70] sm:$0xff]
      %v240 = vld [vmem:[%s219 + $0x78] sm:$0xff]
      %v241 = vld [vmem:[%s219 + $0x80] sm:$0xff]
      %v242 = vld [vmem:[%s219 + $0x88] sm:$0xff]
      %v243 = vld [vmem:[%s219 + $0x90] sm:$0xff]
      %v244 = vld [vmem:[%s219 + $0x98] sm:$0xff]
      %v245 = vld [vmem:[%s219 + $0xa0] sm:$0xff]
      %v246 = vld [vmem:[%s219 + $0xa8] sm:$0xff]
      %v247 = vld [vmem:[%s219 + $0xb0] sm:$0xff]
      %v248 = vld [vmem:[%s219 + $0xb8] sm:$0xff]
      %v249 = vld [vmem:[%s219 + $0xc0] sm:$0xff]
      %v250 = vld [vmem:[%s219 + $0xc8] sm:$0xff]
      %v251 = vld [vmem:[%s219 + $0xd0] sm:$0xff]
      %v252 = vld [vmem:[%s219 + $0xd8] sm:$0xff]
      %v253 = vld [vmem:[%s219 + $0xe0] sm:$0xff]
      %v254 = vld [vmem:[%s219 + $0xe8] sm:$0xff]
      %v255 = vld [vmem:[%s219 + $0xf0] sm:$0xff]
      %v256 = vld [vmem:[%s219 + $0xf8] sm:$0xff]
      %v257 = vld [vmem:[%s219 + $0x100] sm:$0xff]
      %v258 = vld [vmem:[%s219 + $0x108] sm:$0xff]
      %v259 = vld [vmem:[%s219 + $0x110] sm:$0xff]
      %v260 = vld [vmem:[%s219 + $0x118] sm:$0xff]
      %v261 = vld [vmem:[%s219 + $0x120] sm:$0xff]
      %v262 = vld [vmem:[%s219 + $0x128] sm:$0xff]
      %v263 = vld [vmem:[%s219 + $0x130] sm:$0xff]
      %v264 = vld [vmem:[%s219 + $0x138] sm:$0xff]
      %v265 = vld [vmem:[%s219 + $0x140] sm:$0xff]
      %v266 = vld [vmem:[%s219 + $0x148] sm:$0xff]
      %v267 = vld [vmem:[%s219 + $0x150] sm:$0xff]
      %v268 = vld [vmem:[%s219 + $0x158] sm:$0xff]
      %v269 = vld [vmem:[%s219 + $0x160] sm:$0xff]
      %v270 = vld [vmem:[%s219 + $0x168] sm:$0xff]
      %v271 = vld [vmem:[%s219 + $0x170] sm:$0xff]
      %v272 = vld [vmem:[%s219 + $0x178] sm:$0xff]
      %v273 = vld [vmem:[%s219 + $0x180] sm:$0xff]
      %v274 = vld [vmem:[%s219 + $0x188] sm:$0xff]
      %v275 = vld [vmem:[%s219 + $0x190] sm:$0xff]
      %v276 = vld [vmem:[%s219 + $0x198] sm:$0xff]
      %v277 = vld [vmem:[%s219 + $0x1a0] sm:$0xff]
      %v278 = vld [vmem:[%s219 + $0x1a8] sm:$0xff]
      %v279 = vld [vmem:[%s219 + $0x1b0] sm:$0xff]
      %v280 = vld [vmem:[%s219 + $0x1b8] sm:$0xff]
      %v281 = vld [vmem:[%s219 + $0x1c0] sm:$0xff]
      %v282 = vld [vmem:[%s219 + $0x1c8] sm:$0xff]
      %v283 = vld [vmem:[%s219 + $0x1d0] sm:$0xff]
      %v284 = vld [vmem:[%s219 + $0x1d8] sm:$0xff]
      %v285 = vld [vmem:[%s219 + $0x1e0] sm:$0xff]
      %v286 = vld [vmem:[%s219 + $0x1e8] sm:$0xff]
      %v287 = vld [vmem:[%s219 + $0x1f0] sm:$0xff]
      %v288 = vld [vmem:[%s219 + $0x1f8] sm:$0xff]
      %v289 = vld [vmem:[%s219 + $0x200] sm:$0xff]
      %v290 = vld [vmem:[%s219 + $0x208] sm:$0xff]
      %v291 = vld [vmem:[%s219 + $0x210] sm:$0xff]
      %v292 = vld [vmem:[%s219 + $0x218] sm:$0xff]
      %v293 = vld [vmem:[%s219 + $0x220] sm:$0xff]
      %v294 = vld [vmem:[%s219 + $0x228] sm:$0xff]
      %v295 = vld [vmem:[%s219 + $0x230] sm:$0xff]
      %v296 = vld [vmem:[%s219 + $0x238] sm:$0xff]
      %v297 = vld [vmem:[%s219 + $0x240] sm:$0xff]
      %v298 = vld [vmem:[%s219 + $0x248] sm:$0xff]
      %v299 = vld [vmem:[%s219 + $0x250] sm:$0xff]
      %v300 = vld [vmem:[%s219 + $0x258] sm:$0xff]
      %v301 = vld [vmem:[%s219 + $0x260] sm:$0xff]
      %v302 = vld [vmem:[%s219 + $0x268] sm:$0xff]
      %v303 = vld [vmem:[%s219 + $0x270] sm:$0xff]
      %v304 = vld [vmem:[%s219 + $0x278] sm:$0xff]
      %v305 = vld [vmem:[%s219 + $0x280] sm:$0xff]
      %v306 = vld [vmem:[%s219 + $0x288] sm:$0xff]
      %v307 = vld [vmem:[%s219 + $0x290] sm:$0xff]
      %v308 = vld [vmem:[%s219 + $0x298] sm:$0xff]
      %v309 = vld [vmem:[%s219 + $0x2a0] sm:$0xff]
      %v310 = vld [vmem:[%s219 + $0x2a8] sm:$0xff]
      %v311 = vld [vmem:[%s219 + $0x2b0] sm:$0xff]
      %v312 = vld [vmem:[%s219 + $0x2b8] sm:$0xff]
      %v313 = vld [vmem:[%s219 + $0x2c0] sm:$0xff]
      %v314 = vld [vmem:[%s219 + $0x2c8] sm:$0xff]
      %v315 = vld [vmem:[%s219 + $0x2d0] sm:$0xff]
      %v316 = vld [vmem:[%s219 + $0x2d8] sm:$0xff]
      %v317 = vld [vmem:[%s219 + $0x2e0] sm:$0xff]
      %v318 = vld [vmem:[%s219 + $0x2e8] sm:$0xff]
      %v319 = vld [vmem:[%s219 + $0x2f0] sm:$0xff]
      %v320 = vld [vmem:[%s219 + $0x2f8] sm:$0xff]
      %v321 = vld [vmem:[%s219 + $0x300] sm:$0xff]
      %v322 = vld [vmem:[%s219 + $0x308] sm:$0xff]
      %v323 = vld [vmem:[%s219 + $0x310] sm:$0xff]
      %v324 = vld [vmem:[%s219 + $0x318] sm:$0xff]
      %v325 = vld [vmem:[%s219 + $0x320] sm:$0xff]
      %v326 = vld [vmem:[%s219 + $0x328] sm:$0xff]
      %v327 = vld [vmem:[%s219 + $0x330] sm:$0xff]
      %v328 = vld [vmem:[%s219 + $0x338] sm:$0xff]
      %v329 = vld [vmem:[%s219 + $0x340] sm:$0xff]
      %v330 = vld [vmem:[%s219 + $0x348] sm:$0xff]
      %v331 = vld [vmem:[%s219 + $0x350] sm:$0xff]
      %v332 = vld [vmem:[%s219 + $0x358] sm:$0xff]
      %v333 = vld [vmem:[%s219 + $0x360] sm:$0xff]
      %v334 = vld [vmem:[%s219 + $0x368] sm:$0xff]
      %v335 = vld [vmem:[%s219 + $0x370] sm:$0xff]
      %v336 = vld [vmem:[%s219 + $0x378] sm:$0xff]
      %v337 = vld [vmem:[%s219 + $0x380] sm:$0xff]
      %v338 = vld [vmem:[%s219 + $0x388] sm:$0xff]
      %v339 = vld [vmem:[%s219 + $0x390] sm:$0xff]
      %v340 = vld [vmem:[%s219 + $0x398] sm:$0xff]
      %v341 = vld [vmem:[%s219 + $0x3a0] sm:$0xff]
      %v342 = vld [vmem:[%s219 + $0x3a8] sm:$0xff]
      %v343 = vld [vmem:[%s219 + $0x3b0] sm:$0xff]
      %v344 = vld [vmem:[%s219 + $0x3b8] sm:$0xff]
      %v345 = vld [vmem:[%s219 + $0x3c0] sm:$0xff]
      %v346 = vld [vmem:[%s219 + $0x3c8] sm:$0xff]
      %v347 = vld [vmem:[%s219 + $0x3d0] sm:$0xff]
      %v348 = vld [vmem:[%s219 + $0x3d8] sm:$0xff]
      %v349 = vld [vmem:[%s219 + $0x3e0] sm:$0xff]
      %v350 = vld [vmem:[%s219 + $0x3e8] sm:$0xff]
      %v351 = vld [vmem:[%s219 + $0x3f0] sm:$0xff]
      %v352 = vld [vmem:[%s219 + $0x3f8] sm:$0xff]
      %v353 = vld [vmem:[%s1] sm:$0xff]
      %v354 = vld [vmem:[%s1 + $0x8] sm:$0xff]
      %v355 = vld [vmem:[%s1 + $0x10] sm:$0xff]
      %v356 = vld [vmem:[%s1 + $0x18] sm:$0x7]
      %v357 = vld [vmem:[%s2] sm:$0x1]
      %v359 = vperm.slane %v357, 0
      %vm361 = vcmask 220160
      %v363 = vsel %vm361, %v225, 0
      %v366 = vsel %vm361, %v226, 0
      %v369 = vsel %vm361, %v227, 0
      %v372 = vsel %vm361, %v228, 0
      %v375 = vsel %vm361, %v229, 0
      %v378 = vsel %vm361, %v230, 0
      %v381 = vsel %vm361, %v231, 0
      %v384 = vsel %vm361, %v232, 0
      %v387 = vsel %vm361, %v233, 0
      %v390 = vsel %vm361, %v234, 0
      %v393 = vsel %vm361, %v235, 0
      %v396 = vsel %vm361, %v236, 0
      %v399 = vsel %vm361, %v237, 0
      %v402 = vsel %vm361, %v238, 0
      %v405 = vsel %vm361, %v239, 0
      %v408 = vsel %vm361, %v240, 0
      %v411 = vsel %vm361, %v241, 0
      %v414 = vsel %vm361, %v242, 0
      %v417 = vsel %vm361, %v243, 0
      %v420 = vsel %vm361, %v244, 0
      %v423 = vsel %vm361, %v245, 0
      %v426 = vsel %vm361, %v246, 0
      %v429 = vsel %vm361, %v247, 0
      %v432 = vsel %vm361, %v248, 0
      %v435 = vsel %vm361, %v249, 0
      %v438 = vsel %vm361, %v250, 0
      %v441 = vsel %vm361, %v251, 0
      %v444 = vsel %vm361, %v252, 0
      %v447 = vsel %vm361, %v253, 0
      %v450 = vsel %vm361, %v254, 0
      %v453 = vsel %vm361, %v255, 0
      %v456 = vsel %vm361, %v256, 0
      %v459 = vsel %vm361, %v257, 0
      %v462 = vsel %vm361, %v258, 0
      %v465 = vsel %vm361, %v259, 0
      %v468 = vsel %vm361, %v260, 0
      %v471 = vsel %vm361, %v261, 0
      %v474 = vsel %vm361, %v262, 0
      %v477 = vsel %vm361, %v263, 0
      %v480 = vsel %vm361, %v264, 0
      %v483 = vsel %vm361, %v265, 0
      %v486 = vsel %vm361, %v266, 0
      %v489 = vsel %vm361, %v267, 0
      %v492 = vsel %vm361, %v268, 0
      %v495 = vsel %vm361, %v269, 0
      %v498 = vsel %vm361, %v270, 0
      %v501 = vsel %vm361, %v271, 0
      %v504 = vsel %vm361, %v272, 0
      %v507 = vsel %vm361, %v273, 0
      %v510 = vsel %vm361, %v274, 0
      %v513 = vsel %vm361, %v275, 0
      %v516 = vsel %vm361, %v276, 0
      %v519 = vsel %vm361, %v277, 0
      %v522 = vsel %vm361, %v278, 0
      %v525 = vsel %vm361, %v279, 0
      %v528 = vsel %vm361, %v280, 0
      %v531 = vsel %vm361, %v281, 0
      %v534 = vsel %vm361, %v282, 0
      %v537 = vsel %vm361, %v283, 0
      %v540 = vsel %vm361, %v284, 0
      %v543 = vsel %vm361, %v285, 0
      %v546 = vsel %vm361, %v286, 0
      %v549 = vsel %vm361, %v287, 0
      %v552 = vsel %vm361, %v288, 0
      %v555 = vsel %vm361, %v289, 0
      %v558 = vsel %vm361, %v290, 0
      %v561 = vsel %vm361, %v291, 0
      %v564 = vsel %vm361, %v292, 0
      %v567 = vsel %vm361, %v293, 0
      %v570 = vsel %vm361, %v294, 0
      %v573 = vsel %vm361, %v295, 0
      %v576 = vsel %vm361, %v296, 0
      %v579 = vsel %vm361, %v297, 0
      %v582 = vsel %vm361, %v298, 0
      %v585 = vsel %vm361, %v299, 0
      %v588 = vsel %vm361, %v300, 0
      %v591 = vsel %vm361, %v301, 0
      %v594 = vsel %vm361, %v302, 0
      %v597 = vsel %vm361, %v303, 0
      %v600 = vsel %vm361, %v304, 0
      %v603 = vsel %vm361, %v305, 0
      %v606 = vsel %vm361, %v306, 0
      %v609 = vsel %vm361, %v307, 0
      %v612 = vsel %vm361, %v308, 0
      %v615 = vsel %vm361, %v309, 0
      %v618 = vsel %vm361, %v310, 0
      %v621 = vsel %vm361, %v311, 0
      %v624 = vsel %vm361, %v312, 0
      %v627 = vsel %vm361, %v313, 0
      %v630 = vsel %vm361, %v314, 0
      %v633 = vsel %vm361, %v315, 0
      %v636 = vsel %vm361, %v316, 0
      %v639 = vsel %vm361, %v317, 0
      %v642 = vsel %vm361, %v318, 0
      %v645 = vsel %vm361, %v319, 0
      %v648 = vsel %vm361, %v320, 0
      %v651 = vsel %vm361, %v321, 0
      %v654 = vsel %vm361, %v322, 0
      %v657 = vsel %vm361, %v323, 0
      %v660 = vsel %vm361, %v324, 0
      %v663 = vsel %vm361, %v325, 0
      %v666 = vsel %vm361, %v326, 0
      %v669 = vsel %vm361, %v327, 0
      %v672 = vsel %vm361, %v328, 0
      %v675 = vsel %vm361, %v329, 0
      %v678 = vsel %vm361, %v330, 0
      %v681 = vsel %vm361, %v331, 0
      %v684 = vsel %vm361, %v332, 0
      %v687 = vsel %vm361, %v333, 0
      %v690 = vsel %vm361, %v334, 0
      %v693 = vsel %vm361, %v335, 0
      %v696 = vsel %vm361, %v336, 0
      %v699 = vsel %vm361, %v337, 0
      %v702 = vsel %vm361, %v338, 0
      %v705 = vsel %vm361, %v339, 0
      %v708 = vsel %vm361, %v340, 0
      %v711 = vsel %vm361, %v341, 0
      %v714 = vsel %vm361, %v342, 0
      %v717 = vsel %vm361, %v343, 0
      %v720 = vsel %vm361, %v344, 0
      %v723 = vsel %vm361, %v345, 0
      %v726 = vsel %vm361, %v346, 0
      %v729 = vsel %vm361, %v347, 0
      %v732 = vsel %vm361, %v348, 0
      %v735 = vsel %vm361, %v349, 0
      %v738 = vsel %vm361, %v350, 0
      %v741 = vsel %vm361, %v351, 0
      %v744 = vsel %vm361, %v352, 0
      %vm746 = vcmask 1042432
      %v748 = vsel %vm746, %v356, 0
      %750 = vmatpush.msra.mxu0 0.0
      %751 = vmatpush.msra.mxu0 0.0
      %752 = vmatpush.msra.mxu0 0.0
      %753 = vmatpush.msra.mxu0 0.0
      %754 = vmatpush.msra.mxu0 0.0
      %755 = vmatpush.msra.mxu0 0.0
      %756 = vmatpush.msra.mxu0 0.0
      %757 = vmatpush.msra.mxu0 0.0
      %758 = vmatpush.msra.mxu0 0.0
      %759 = vmatpush.msra.mxu0 0.0
      %760 = vmatpush.msra.mxu0 0.0
      %761 = vmatpush.msra.mxu0 0.0
      %762 = vmatpush.msra.mxu0 %v748
      %763 = vmatpush.msra.mxu0 %v355
      %764 = vmatpush.msra.mxu0 %v354
      %765 = vmatpush.msra.mxu0 %v353
      %766 = vmatmul.f32.gmra.mxu0 %v363
      %v767 = vpop.f32.mrf.mxu0
      %v768 = vadd.f32 %v359, %v767
      %769 = vmatmul.f32.gmra.mxu0 %v366
      %v770 = vpop.f32.mrf.mxu0
      %v771 = vadd.f32 %v359, %v770
      %772 = vmatmul.f32.gmra.mxu0 %v369
      %v773 = vpop.f32.mrf.mxu0
      %v774 = vadd.f32 %v359, %v773
      %775 = vmatmul.f32.gmra.mxu0 %v372
      %v776 = vpop.f32.mrf.mxu0
      %v777 = vadd.f32 %v359, %v776
      %778 = vmatmul.f32.gmra.mxu0 %v375
      %v779 = vpop.f32.mrf.mxu0
      %v780 = vadd.f32 %v359, %v779
      %781 = vmatmul.f32.gmra.mxu0 %v378
      %v782 = vpop.f32.mrf.mxu0
      %v783 = vadd.f32 %v359, %v782
      %784 = vmatmul.f32.gmra.mxu0 %v381
      %v785 = vpop.f32.mrf.mxu0
      %v786 = vadd.f32 %v359, %v785
      %787 = vmatmul.f32.gmra.mxu0 %v384
      %v788 = vpop.f32.mrf.mxu0
      %v789 = vadd.f32 %v359, %v788
      %790 = vmatmul.f32.gmra.mxu0 %v387
      %v791 = vpop.f32.mrf.mxu0
      %v792 = vadd.f32 %v359, %v791
      %793 = vmatmul.f32.gmra.mxu0 %v390
      %v794 = vpop.f32.mrf.mxu0
      %v795 = vadd.f32 %v359, %v794
      %796 = vmatmul.f32.gmra.mxu0 %v393
      %v797 = vpop.f32.mrf.mxu0
      %v798 = vadd.f32 %v359, %v797
      %799 = vmatmul.f32.gmra.mxu0 %v396
      %v800 = vpop.f32.mrf.mxu0
      %v801 = vadd.f32 %v359, %v800
      %802 = vmatmul.f32.gmra.mxu0 %v399
      %v803 = vpop.f32.mrf.mxu0
      %v804 = vadd.f32 %v359, %v803
      %805 = vmatmul.f32.gmra.mxu0 %v402
      %v806 = vpop.f32.mrf.mxu0
      %v807 = vadd.f32 %v359, %v806
      %808 = vmatmul.f32.gmra.mxu0 %v405
      %v809 = vpop.f32.mrf.mxu0
      %v810 = vadd.f32 %v359, %v809
      %811 = vmatmul.f32.gmra.mxu0 %v408
      %v812 = vpop.f32.mrf.mxu0
      %v813 = vadd.f32 %v359, %v812
      %814 = vmatmul.f32.gmra.mxu0 %v411
      %v815 = vpop.f32.mrf.mxu0
      %v816 = vadd.f32 %v359, %v815
      %817 = vmatmul.f32.gmra.mxu0 %v414
      %v818 = vpop.f32.mrf.mxu0
      %v819 = vadd.f32 %v359, %v818
      %820 = vmatmul.f32.gmra.mxu0 %v417
      %v821 = vpop.f32.mrf.mxu0
      %v822 = vadd.f32 %v359, %v821
      %823 = vmatmul.f32.gmra.mxu0 %v420
      %v824 = vpop.f32.mrf.mxu0
      %v825 = vadd.f32 %v359, %v824
      %826 = vmatmul.f32.gmra.mxu0 %v423
      %v827 = vpop.f32.mrf.mxu0
      %v828 = vadd.f32 %v359, %v827
      %829 = vmatmul.f32.gmra.mxu0 %v426
      %v830 = vpop.f32.mrf.mxu0
      %v831 = vadd.f32 %v359, %v830
      %832 = vmatmul.f32.gmra.mxu0 %v429
      %v833 = vpop.f32.mrf.mxu0
      %v834 = vadd.f32 %v359, %v833
      %835 = vmatmul.f32.gmra.mxu0 %v432
      %v836 = vpop.f32.mrf.mxu0
      %v837 = vadd.f32 %v359, %v836
      %838 = vmatmul.f32.gmra.mxu0 %v435
      %v839 = vpop.f32.mrf.mxu0
      %v840 = vadd.f32 %v359, %v839
      %841 = vmatmul.f32.gmra.mxu0 %v438
      %v842 = vpop.f32.mrf.mxu0
      %v843 = vadd.f32 %v359, %v842
      %844 = vmatmul.f32.gmra.mxu0 %v441
      %v845 = vpop.f32.mrf.mxu0
      %v846 = vadd.f32 %v359, %v845
      %847 = vmatmul.f32.gmra.mxu0 %v444
      %v848 = vpop.f32.mrf.mxu0
      %v849 = vadd.f32 %v359, %v848
      %850 = vmatmul.f32.gmra.mxu0 %v447
      %v851 = vpop.f32.mrf.mxu0
      %v852 = vadd.f32 %v359, %v851
      %853 = vmatmul.f32.gmra.mxu0 %v450
      %v854 = vpop.f32.mrf.mxu0
      %v855 = vadd.f32 %v359, %v854
      %856 = vmatmul.f32.gmra.mxu0 %v453
      %v857 = vpop.f32.mrf.mxu0
      %v858 = vadd.f32 %v359, %v857
      %859 = vmatmul.f32.gmra.mxu0 %v456
      %v860 = vpop.f32.mrf.mxu0
      %v861 = vadd.f32 %v359, %v860
      %862 = vmatmul.f32.gmra.mxu0 %v459
      %v863 = vpop.f32.mrf.mxu0
      %v864 = vadd.f32 %v359, %v863
      %865 = vmatmul.f32.gmra.mxu0 %v462
      %v866 = vpop.f32.mrf.mxu0
      %v867 = vadd.f32 %v359, %v866
      %868 = vmatmul.f32.gmra.mxu0 %v465
      %v869 = vpop.f32.mrf.mxu0
      %v870 = vadd.f32 %v359, %v869
      %871 = vmatmul.f32.gmra.mxu0 %v468
      %v872 = vpop.f32.mrf.mxu0
      %v873 = vadd.f32 %v359, %v872
      %874 = vmatmul.f32.gmra.mxu0 %v471
      %v875 = vpop.f32.mrf.mxu0
      %v876 = vadd.f32 %v359, %v875
      %877 = vmatmul.f32.gmra.mxu0 %v474
      %v878 = vpop.f32.mrf.mxu0
      %v879 = vadd.f32 %v359, %v878
      %880 = vmatmul.f32.gmra.mxu0 %v477
      %v881 = vpop.f32.mrf.mxu0
      %v882 = vadd.f32 %v359, %v881
      %883 = vmatmul.f32.gmra.mxu0 %v480
      %v884 = vpop.f32.mrf.mxu0
      %v885 = vadd.f32 %v359, %v884
      %886 = vmatmul.f32.gmra.mxu0 %v483
      %v887 = vpop.f32.mrf.mxu0
      %v888 = vadd.f32 %v359, %v887
      %889 = vmatmul.f32.gmra.mxu0 %v486
      %v890 = vpop.f32.mrf.mxu0
      %v891 = vadd.f32 %v359, %v890
      %892 = vmatmul.f32.gmra.mxu0 %v489
      %v893 = vpop.f32.mrf.mxu0
      %v894 = vadd.f32 %v359, %v893
      %895 = vmatmul.f32.gmra.mxu0 %v492
      %v896 = vpop.f32.mrf.mxu0
      %v897 = vadd.f32 %v359, %v896
      %898 = vmatmul.f32.gmra.mxu0 %v495
      %v899 = vpop.f32.mrf.mxu0
      %v900 = vadd.f32 %v359, %v899
      %901 = vmatmul.f32.gmra.mxu0 %v498
      %v902 = vpop.f32.mrf.mxu0
      %v903 = vadd.f32 %v359, %v902
      %904 = vmatmul.f32.gmra.mxu0 %v501
      %v905 = vpop.f32.mrf.mxu0
      %v906 = vadd.f32 %v359, %v905
      %907 = vmatmul.f32.gmra.mxu0 %v504
      %v908 = vpop.f32.mrf.mxu0
      %v909 = vadd.f32 %v359, %v908
      %910 = vmatmul.f32.gmra.mxu0 %v507
      %v911 = vpop.f32.mrf.mxu0
      %v912 = vadd.f32 %v359, %v911
      %913 = vmatmul.f32.gmra.mxu0 %v510
      %v914 = vpop.f32.mrf.mxu0
      %v915 = vadd.f32 %v359, %v914
      %916 = vmatmul.f32.gmra.mxu0 %v513
      %v917 = vpop.f32.mrf.mxu0
      %v918 = vadd.f32 %v359, %v917
      %919 = vmatmul.f32.gmra.mxu0 %v516
      %v920 = vpop.f32.mrf.mxu0
      %v921 = vadd.f32 %v359, %v920
      %922 = vmatmul.f32.gmra.mxu0 %v519
      %v923 = vpop.f32.mrf.mxu0
      %v924 = vadd.f32 %v359, %v923
      %925 = vmatmul.f32.gmra.mxu0 %v522
      %v926 = vpop.f32.mrf.mxu0
      %v927 = vadd.f32 %v359, %v926
      %928 = vmatmul.f32.gmra.mxu0 %v525
      %v929 = vpop.f32.mrf.mxu0
      %v930 = vadd.f32 %v359, %v929
      %931 = vmatmul.f32.gmra.mxu0 %v528
      %v932 = vpop.f32.mrf.mxu0
      %v933 = vadd.f32 %v359, %v932
      %934 = vmatmul.f32.gmra.mxu0 %v531
      %v935 = vpop.f32.mrf.mxu0
      %v936 = vadd.f32 %v359, %v935
      %937 = vmatmul.f32.gmra.mxu0 %v534
      %v938 = vpop.f32.mrf.mxu0
      %v939 = vadd.f32 %v359, %v938
      %940 = vmatmul.f32.gmra.mxu0 %v537
      %v941 = vpop.f32.mrf.mxu0
      %v942 = vadd.f32 %v359, %v941
      %943 = vmatmul.f32.gmra.mxu0 %v540
      %v944 = vpop.f32.mrf.mxu0
      %v945 = vadd.f32 %v359, %v944
      %946 = vmatmul.f32.gmra.mxu0 %v543
      %v947 = vpop.f32.mrf.mxu0
      %v948 = vadd.f32 %v359, %v947
      %949 = vmatmul.f32.gmra.mxu0 %v546
      %v950 = vpop.f32.mrf.mxu0
      %v951 = vadd.f32 %v359, %v950
      %952 = vmatmul.f32.gmra.mxu0 %v549
      %v953 = vpop.f32.mrf.mxu0
      %v954 = vadd.f32 %v359, %v953
      %955 = vmatmul.f32.gmra.mxu0 %v552
      %v956 = vpop.f32.mrf.mxu0
      %v957 = vadd.f32 %v359, %v956
      %958 = vmatmul.f32.gmra.mxu0 %v555
      %v959 = vpop.f32.mrf.mxu0
      %v960 = vadd.f32 %v359, %v959
      %961 = vmatmul.f32.gmra.mxu0 %v558
      %v962 = vpop.f32.mrf.mxu0
      %v963 = vadd.f32 %v359, %v962
      %964 = vmatmul.f32.gmra.mxu0 %v561
      %v965 = vpop.f32.mrf.mxu0
      %v966 = vadd.f32 %v359, %v965
      %967 = vmatmul.f32.gmra.mxu0 %v564
      %v968 = vpop.f32.mrf.mxu0
      %v969 = vadd.f32 %v359, %v968
      %970 = vmatmul.f32.gmra.mxu0 %v567
      %v971 = vpop.f32.mrf.mxu0
      %v972 = vadd.f32 %v359, %v971
      %973 = vmatmul.f32.gmra.mxu0 %v570
      %v974 = vpop.f32.mrf.mxu0
      %v975 = vadd.f32 %v359, %v974
      %976 = vmatmul.f32.gmra.mxu0 %v573
      %v977 = vpop.f32.mrf.mxu0
      %v978 = vadd.f32 %v359, %v977
      %979 = vmatmul.f32.gmra.mxu0 %v576
      %v980 = vpop.f32.mrf.mxu0
      %v981 = vadd.f32 %v359, %v980
      %982 = vmatmul.f32.gmra.mxu0 %v579
      %v983 = vpop.f32.mrf.mxu0
      %v984 = vadd.f32 %v359, %v983
      %985 = vmatmul.f32.gmra.mxu0 %v582
      %v986 = vpop.f32.mrf.mxu0
      %v987 = vadd.f32 %v359, %v986
      %988 = vmatmul.f32.gmra.mxu0 %v585
      %v989 = vpop.f32.mrf.mxu0
      %v990 = vadd.f32 %v359, %v989
      %991 = vmatmul.f32.gmra.mxu0 %v588
      %v992 = vpop.f32.mrf.mxu0
      %v993 = vadd.f32 %v359, %v992
      %994 = vmatmul.f32.gmra.mxu0 %v591
      %v995 = vpop.f32.mrf.mxu0
      %v996 = vadd.f32 %v359, %v995
      %997 = vmatmul.f32.gmra.mxu0 %v594
      %v998 = vpop.f32.mrf.mxu0
      %v999 = vadd.f32 %v359, %v998
      %1000 = vmatmul.f32.gmra.mxu0 %v597
      %v1001 = vpop.f32.mrf.mxu0
      %v1002 = vadd.f32 %v359, %v1001
      %1003 = vmatmul.f32.gmra.mxu0 %v600
      %v1004 = vpop.f32.mrf.mxu0
      %v1005 = vadd.f32 %v359, %v1004
      %1006 = vmatmul.f32.gmra.mxu0 %v603
      %v1007 = vpop.f32.mrf.mxu0
      %v1008 = vadd.f32 %v359, %v1007
      %1009 = vmatmul.f32.gmra.mxu0 %v606
      %v1010 = vpop.f32.mrf.mxu0
      %v1011 = vadd.f32 %v359, %v1010
      %1012 = vmatmul.f32.gmra.mxu0 %v609
      %v1013 = vpop.f32.mrf.mxu0
      %v1014 = vadd.f32 %v359, %v1013
      %1015 = vmatmul.f32.gmra.mxu0 %v612
      %v1016 = vpop.f32.mrf.mxu0
      %v1017 = vadd.f32 %v359, %v1016
      %1018 = vmatmul.f32.gmra.mxu0 %v615
      %v1019 = vpop.f32.mrf.mxu0
      %v1020 = vadd.f32 %v359, %v1019
      %1021 = vmatmul.f32.gmra.mxu0 %v618
      %v1022 = vpop.f32.mrf.mxu0
      %v1023 = vadd.f32 %v359, %v1022
      %1024 = vmatmul.f32.gmra.mxu0 %v621
      %v1025 = vpop.f32.mrf.mxu0
      %v1026 = vadd.f32 %v359, %v1025
      %1027 = vmatmul.f32.gmra.mxu0 %v624
      %v1028 = vpop.f32.mrf.mxu0
      %v1029 = vadd.f32 %v359, %v1028
      %1030 = vmatmul.f32.gmra.mxu0 %v627
      %v1031 = vpop.f32.mrf.mxu0
      %v1032 = vadd.f32 %v359, %v1031
      %1033 = vmatmul.f32.gmra.mxu0 %v630
      %v1034 = vpop.f32.mrf.mxu0
      %v1035 = vadd.f32 %v359, %v1034
      %1036 = vmatmul.f32.gmra.mxu0 %v633
      %v1037 = vpop.f32.mrf.mxu0
      %v1038 = vadd.f32 %v359, %v1037
      %1039 = vmatmul.f32.gmra.mxu0 %v636
      %v1040 = vpop.f32.mrf.mxu0
      %v1041 = vadd.f32 %v359, %v1040
      %1042 = vmatmul.f32.gmra.mxu0 %v639
      %v1043 = vpop.f32.mrf.mxu0
      %v1044 = vadd.f32 %v359, %v1043
      %1045 = vmatmul.f32.gmra.mxu0 %v642
      %v1046 = vpop.f32.mrf.mxu0
      %v1047 = vadd.f32 %v359, %v1046
      %1048 = vmatmul.f32.gmra.mxu0 %v645
      %v1049 = vpop.f32.mrf.mxu0
      %v1050 = vadd.f32 %v359, %v1049
      %1051 = vmatmul.f32.gmra.mxu0 %v648
      %v1052 = vpop.f32.mrf.mxu0
      %v1053 = vadd.f32 %v359, %v1052
      %1054 = vmatmul.f32.gmra.mxu0 %v651
      %v1055 = vpop.f32.mrf.mxu0
      %v1056 = vadd.f32 %v359, %v1055
      %1057 = vmatmul.f32.gmra.mxu0 %v654
      %v1058 = vpop.f32.mrf.mxu0
      %v1059 = vadd.f32 %v359, %v1058
      %1060 = vmatmul.f32.gmra.mxu0 %v657
      %v1061 = vpop.f32.mrf.mxu0
      %v1062 = vadd.f32 %v359, %v1061
      %1063 = vmatmul.f32.gmra.mxu0 %v660
      %v1064 = vpop.f32.mrf.mxu0
      %v1065 = vadd.f32 %v359, %v1064
      %1066 = vmatmul.f32.gmra.mxu0 %v663
      %v1067 = vpop.f32.mrf.mxu0
      %v1068 = vadd.f32 %v359, %v1067
      %1069 = vmatmul.f32.gmra.mxu0 %v666
      %v1070 = vpop.f32.mrf.mxu0
      %v1071 = vadd.f32 %v359, %v1070
      %1072 = vmatmul.f32.gmra.mxu0 %v669
      %v1073 = vpop.f32.mrf.mxu0
      %v1074 = vadd.f32 %v359, %v1073
      %1075 = vmatmul.f32.gmra.mxu0 %v672
      %v1076 = vpop.f32.mrf.mxu0
      %v1077 = vadd.f32 %v359, %v1076
      %1078 = vmatmul.f32.gmra.mxu0 %v675
      %v1079 = vpop.f32.mrf.mxu0
      %v1080 = vadd.f32 %v359, %v1079
      %1081 = vmatmul.f32.gmra.mxu0 %v678
      %v1082 = vpop.f32.mrf.mxu0
      %v1083 = vadd.f32 %v359, %v1082
      %1084 = vmatmul.f32.gmra.mxu0 %v681
      %v1085 = vpop.f32.mrf.mxu0
      %v1086 = vadd.f32 %v359, %v1085
      %1087 = vmatmul.f32.gmra.mxu0 %v684
      %v1088 = vpop.f32.mrf.mxu0
      %v1089 = vadd.f32 %v359, %v1088
      %1090 = vmatmul.f32.gmra.mxu0 %v687
      %v1091 = vpop.f32.mrf.mxu0
      %v1092 = vadd.f32 %v359, %v1091
      %1093 = vmatmul.f32.gmra.mxu0 %v690
      %v1094 = vpop.f32.mrf.mxu0
      %v1095 = vadd.f32 %v359, %v1094
      %1096 = vmatmul.f32.gmra.mxu0 %v693
      %v1097 = vpop.f32.mrf.mxu0
      %v1098 = vadd.f32 %v359, %v1097
      %1099 = vmatmul.f32.gmra.mxu0 %v696
      %v1100 = vpop.f32.mrf.mxu0
      %v1101 = vadd.f32 %v359, %v1100
      %1102 = vmatmul.f32.gmra.mxu0 %v699
      %v1103 = vpop.f32.mrf.mxu0
      %v1104 = vadd.f32 %v359, %v1103
      %1105 = vmatmul.f32.gmra.mxu0 %v702
      %v1106 = vpop.f32.mrf.mxu0
      %v1107 = vadd.f32 %v359, %v1106
      %1108 = vmatmul.f32.gmra.mxu0 %v705
      %v1109 = vpop.f32.mrf.mxu0
      %v1110 = vadd.f32 %v359, %v1109
      %1111 = vmatmul.f32.gmra.mxu0 %v708
      %v1112 = vpop.f32.mrf.mxu0
      %v1113 = vadd.f32 %v359, %v1112
      %1114 = vmatmul.f32.gmra.mxu0 %v711
      %v1115 = vpop.f32.mrf.mxu0
      %v1116 = vadd.f32 %v359, %v1115
      %1117 = vmatmul.f32.gmra.mxu0 %v714
      %v1118 = vpop.f32.mrf.mxu0
      %v1119 = vadd.f32 %v359, %v1118
      %1120 = vmatmul.f32.gmra.mxu0 %v717
      %v1121 = vpop.f32.mrf.mxu0
      %v1122 = vadd.f32 %v359, %v1121
      %1123 = vmatmul.f32.gmra.mxu0 %v720
      %v1124 = vpop.f32.mrf.mxu0
      %v1125 = vadd.f32 %v359, %v1124
      %1126 = vmatmul.f32.gmra.mxu0 %v723
      %v1127 = vpop.f32.mrf.mxu0
      %v1128 = vadd.f32 %v359, %v1127
      %1129 = vmatmul.f32.gmra.mxu0 %v726
      %v1130 = vpop.f32.mrf.mxu0
      %v1131 = vadd.f32 %v359, %v1130
      %1132 = vmatmul.f32.gmra.mxu0 %v729
      %v1133 = vpop.f32.mrf.mxu0
      %v1134 = vadd.f32 %v359, %v1133
      %1135 = vmatmul.f32.gmra.mxu0 %v732
      %v1136 = vpop.f32.mrf.mxu0
      %v1137 = vadd.f32 %v359, %v1136
      %1138 = vmatmul.f32.gmra.mxu0 %v735
      %v1139 = vpop.f32.mrf.mxu0
      %v1140 = vadd.f32 %v359, %v1139
      %1141 = vmatmul.f32.gmra.mxu0 %v738
      %v1142 = vpop.f32.mrf.mxu0
      %v1143 = vadd.f32 %v359, %v1142
      %1144 = vmatmul.f32.gmra.mxu0 %v741
      %v1145 = vpop.f32.mrf.mxu0
      %v1146 = vadd.f32 %v359, %v1145
      %1147 = vmatmul.f32.gmra.mxu0 %v744
      %v1148 = vpop.f32.mrf.mxu0
      %v1149 = vadd.f32 %v359, %v1148
      %1150 = vdwg.mxu0
      %v1151 = vmax.f32 %v768, 0.0
      %v1152 = vmax.f32 %v771, 0.0
      %v1153 = vmax.f32 %v774, 0.0
      %v1154 = vmax.f32 %v777, 0.0
      %v1155 = vmax.f32 %v780, 0.0
      %v1156 = vmax.f32 %v783, 0.0
      %v1157 = vmax.f32 %v786, 0.0
      %v1158 = vmax.f32 %v789, 0.0
      %v1159 = vmax.f32 %v792, 0.0
      %v1160 = vmax.f32 %v795, 0.0
      %v1161 = vmax.f32 %v798, 0.0
      %v1162 = vmax.f32 %v801, 0.0
      %v1163 = vmax.f32 %v804, 0.0
      %v1164 = vmax.f32 %v807, 0.0
      %v1165 = vmax.f32 %v810, 0.0
      %v1166 = vmax.f32 %v813, 0.0
      %v1167 = vmax.f32 %v816, 0.0
      %v1168 = vmax.f32 %v819, 0.0
      %v1169 = vmax.f32 %v822, 0.0
      %v1170 = vmax.f32 %v825, 0.0
      %v1171 = vmax.f32 %v828, 0.0
      %v1172 = vmax.f32 %v831, 0.0
      %v1173 = vmax.f32 %v834, 0.0
      %v1174 = vmax.f32 %v837, 0.0
      %v1175 = vmax.f32 %v840, 0.0
      %v1176 = vmax.f32 %v843, 0.0
      %v1177 = vmax.f32 %v846, 0.0
      %v1178 = vmax.f32 %v849, 0.0
      %v1179 = vmax.f32 %v852, 0.0
      %v1180 = vmax.f32 %v855, 0.0
      %v1181 = vmax.f32 %v858, 0.0
      %v1182 = vmax.f32 %v861, 0.0
      %v1183 = vmax.f32 %v864, 0.0
      %v1184 = vmax.f32 %v867, 0.0
      %v1185 = vmax.f32 %v870, 0.0
      %v1186 = vmax.f32 %v873, 0.0
      %v1187 = vmax.f32 %v876, 0.0
      %v1188 = vmax.f32 %v879, 0.0
      %v1189 = vmax.f32 %v882, 0.0
      %v1190 = vmax.f32 %v885, 0.0
      %v1191 = vmax.f32 %v888, 0.0
      %v1192 = vmax.f32 %v891, 0.0
      %v1193 = vmax.f32 %v894, 0.0
      %v1194 = vmax.f32 %v897, 0.0
      %v1195 = vmax.f32 %v900, 0.0
      %v1196 = vmax.f32 %v903, 0.0
      %v1197 = vmax.f32 %v906, 0.0
      %v1198 = vmax.f32 %v909, 0.0
      %v1199 = vmax.f32 %v912, 0.0
      %v1200 = vmax.f32 %v915, 0.0
      %v1201 = vmax.f32 %v918, 0.0
      %v1202 = vmax.f32 %v921, 0.0
      %v1203 = vmax.f32 %v924, 0.0
      %v1204 = vmax.f32 %v927, 0.0
      %v1205 = vmax.f32 %v930, 0.0
      %v1206 = vmax.f32 %v933, 0.0
      %v1207 = vmax.f32 %v936, 0.0
      %v1208 = vmax.f32 %v939, 0.0
      %v1209 = vmax.f32 %v942, 0.0
      %v1210 = vmax.f32 %v945, 0.0
      %v1211 = vmax.f32 %v948, 0.0
      %v1212 = vmax.f32 %v951, 0.0
      %v1213 = vmax.f32 %v954, 0.0
      %v1214 = vmax.f32 %v957, 0.0
      %v1215 = vmax.f32 %v960, 0.0
      %v1216 = vmax.f32 %v963, 0.0
      %v1217 = vmax.f32 %v966, 0.0
      %v1218 = vmax.f32 %v969, 0.0
      %v1219 = vmax.f32 %v972, 0.0
      %v1220 = vmax.f32 %v975, 0.0
      %v1221 = vmax.f32 %v978, 0.0
      %v1222 = vmax.f32 %v981, 0.0
      %v1223 = vmax.f32 %v984, 0.0
      %v1224 = vmax.f32 %v987, 0.0
      %v1225 = vmax.f32 %v990, 0.0
      %v1226 = vmax.f32 %v993, 0.0
      %v1227 = vmax.f32 %v996, 0.0
      %v1228 = vmax.f32 %v999, 0.0
      %v1229 = vmax.f32 %v1002, 0.0
      %v1230 = vmax.f32 %v1005, 0.0
      %v1231 = vmax.f32 %v1008, 0.0
      %v1232 = vmax.f32 %v1011, 0.0
      %v1233 = vmax.f32 %v1014, 0.0
      %v1234 = vmax.f32 %v1017, 0.0
      %v1235 = vmax.f32 %v1020, 0.0
      %v1236 = vmax.f32 %v1023, 0.0
      %v1237 = vmax.f32 %v1026, 0.0
      %v1238 = vmax.f32 %v1029, 0.0
      %v1239 = vmax.f32 %v1032, 0.0
      %v1240 = vmax.f32 %v1035, 0.0
      %v1241 = vmax.f32 %v1038, 0.0
      %v1242 = vmax.f32 %v1041, 0.0
      %v1243 = vmax.f32 %v1044, 0.0
      %v1244 = vmax.f32 %v1047, 0.0
      %v1245 = vmax.f32 %v1050, 0.0
      %v1246 = vmax.f32 %v1053, 0.0
      %v1247 = vmax.f32 %v1056, 0.0
      %v1248 = vmax.f32 %v1059, 0.0
      %v1249 = vmax.f32 %v1062, 0.0
      %v1250 = vmax.f32 %v1065, 0.0
      %v1251 = vmax.f32 %v1068, 0.0
      %v1252 = vmax.f32 %v1071, 0.0
      %v1253 = vmax.f32 %v1074, 0.0
      %v1254 = vmax.f32 %v1077, 0.0
      %v1255 = vmax.f32 %v1080, 0.0
      %v1256 = vmax.f32 %v1083, 0.0
      %v1257 = vmax.f32 %v1086, 0.0
      %v1258 = vmax.f32 %v1089, 0.0
      %v1259 = vmax.f32 %v1092, 0.0
      %v1260 = vmax.f32 %v1095, 0.0
      %v1261 = vmax.f32 %v1098, 0.0
      %v1262 = vmax.f32 %v1101, 0.0
      %v1263 = vmax.f32 %v1104, 0.0
      %v1264 = vmax.f32 %v1107, 0.0
      %v1265 = vmax.f32 %v1110, 0.0
      %v1266 = vmax.f32 %v1113, 0.0
      %v1267 = vmax.f32 %v1116, 0.0
      %v1268 = vmax.f32 %v1119, 0.0
      %v1269 = vmax.f32 %v1122, 0.0
      %v1270 = vmax.f32 %v1125, 0.0
      %v1271 = vmax.f32 %v1128, 0.0
      %v1272 = vmax.f32 %v1131, 0.0
      %v1273 = vmax.f32 %v1134, 0.0
      %v1274 = vmax.f32 %v1137, 0.0
      %v1275 = vmax.f32 %v1140, 0.0
      %v1276 = vmax.f32 %v1143, 0.0
      %v1277 = vmax.f32 %v1146, 0.0
      %v1278 = vmax.f32 %v1149, 0.0
      %vm1279 = vcmask 130048
      %1280 = vst.msk [vmem:[#allocation2] sm:$0xff] %vm1279, %v1151
      %1281 = vst.msk [vmem:[#allocation2 + $0x8] sm:$0xff] %vm1279, %v1152
      %1282 = vst.msk [vmem:[#allocation2 + $0x10] sm:$0xff] %vm1279, %v1153
      %1283 = vst.msk [vmem:[#allocation2 + $0x18] sm:$0xff] %vm1279, %v1154
      %1284 = vst.msk [vmem:[#allocation2 + $0x20] sm:$0xff] %vm1279, %v1155
      %1285 = vst.msk [vmem:[#allocation2 + $0x28] sm:$0xff] %vm1279, %v1156
      %1286 = vst.msk [vmem:[#allocation2 + $0x30] sm:$0xff] %vm1279, %v1157
      %1287 = vst.msk [vmem:[#allocation2 + $0x38] sm:$0xff] %vm1279, %v1158
      %1288 = vst.msk [vmem:[#allocation2 + $0x40] sm:$0xff] %vm1279, %v1159
      %1289 = vst.msk [vmem:[#allocation2 + $0x48] sm:$0xff] %vm1279, %v1160
      %1290 = vst.msk [vmem:[#allocation2 + $0x50] sm:$0xff] %vm1279, %v1161
      %1291 = vst.msk [vmem:[#allocation2 + $0x58] sm:$0xff] %vm1279, %v1162
      %1292 = vst.msk [vmem:[#allocation2 + $0x60] sm:$0xff] %vm1279, %v1163
      %1293 = vst.msk [vmem:[#allocation2 + $0x68] sm:$0xff] %vm1279, %v1164
      %1294 = vst.msk [vmem:[#allocation2 + $0x70] sm:$0xff] %vm1279, %v1165
      %1295 = vst.msk [vmem:[#allocation2 + $0x78] sm:$0xff] %vm1279, %v1166
      %1296 = vst.msk [vmem:[#allocation2 + $0x80] sm:$0xff] %vm1279, %v1167
      %1297 = vst.msk [vmem:[#allocation2 + $0x88] sm:$0xff] %vm1279, %v1168
      %1298 = vst.msk [vmem:[#allocation2 + $0x90] sm:$0xff] %vm1279, %v1169
      %1299 = vst.msk [vmem:[#allocation2 + $0x98] sm:$0xff] %vm1279, %v1170
      %1300 = vst.msk [vmem:[#allocation2 + $0xa0] sm:$0xff] %vm1279, %v1171
      %1301 = vst.msk [vmem:[#allocation2 + $0xa8] sm:$0xff] %vm1279, %v1172
      %1302 = vst.msk [vmem:[#allocation2 + $0xb0] sm:$0xff] %vm1279, %v1173
      %1303 = vst.msk [vmem:[#allocation2 + $0xb8] sm:$0xff] %vm1279, %v1174
      %1304 = vst.msk [vmem:[#allocation2 + $0xc0] sm:$0xff] %vm1279, %v1175
      %1305 = vst.msk [vmem:[#allocation2 + $0xc8] sm:$0xff] %vm1279, %v1176
      %1306 = vst.msk [vmem:[#allocation2 + $0xd0] sm:$0xff] %vm1279, %v1177
      %1307 = vst.msk [vmem:[#allocation2 + $0xd8] sm:$0xff] %vm1279, %v1178
      %1308 = vst.msk [vmem:[#allocation2 + $0xe0] sm:$0xff] %vm1279, %v1179
      %1309 = vst.msk [vmem:[#allocation2 + $0xe8] sm:$0xff] %vm1279, %v1180
      %1310 = vst.msk [vmem:[#allocation2 + $0xf0] sm:$0xff] %vm1279, %v1181
      %1311 = vst.msk [vmem:[#allocation2 + $0xf8] sm:$0xff] %vm1279, %v1182
      %1312 = vst.msk [vmem:[#allocation2 + $0x100] sm:$0xff] %vm1279, %v1183
      %1313 = vst.msk [vmem:[#allocation2 + $0x108] sm:$0xff] %vm1279, %v1184
      %1314 = vst.msk [vmem:[#allocation2 + $0x110] sm:$0xff] %vm1279, %v1185
      %1315 = vst.msk [vmem:[#allocation2 + $0x118] sm:$0xff] %vm1279, %v1186
      %1316 = vst.msk [vmem:[#allocation2 + $0x120] sm:$0xff] %vm1279, %v1187
      %1317 = vst.msk [vmem:[#allocation2 + $0x128] sm:$0xff] %vm1279, %v1188
      %1318 = vst.msk [vmem:[#allocation2 + $0x130] sm:$0xff] %vm1279, %v1189
      %1319 = vst.msk [vmem:[#allocation2 + $0x138] sm:$0xff] %vm1279, %v1190
      %1320 = vst.msk [vmem:[#allocation2 + $0x140] sm:$0xff] %vm1279, %v1191
      %1321 = vst.msk [vmem:[#allocation2 + $0x148] sm:$0xff] %vm1279, %v1192
      %1322 = vst.msk [vmem:[#allocation2 + $0x150] sm:$0xff] %vm1279, %v1193
      %1323 = vst.msk [vmem:[#allocation2 + $0x158] sm:$0xff] %vm1279, %v1194
      %1324 = vst.msk [vmem:[#allocation2 + $0x160] sm:$0xff] %vm1279, %v1195
      %1325 = vst.msk [vmem:[#allocation2 + $0x168] sm:$0xff] %vm1279, %v1196
      %1326 = vst.msk [vmem:[#allocation2 + $0x170] sm:$0xff] %vm1279, %v1197
      %1327 = vst.msk [vmem:[#allocation2 + $0x178] sm:$0xff] %vm1279, %v1198
      %1328 = vst.msk [vmem:[#allocation2 + $0x180] sm:$0xff] %vm1279, %v1199
      %1329 = vst.msk [vmem:[#allocation2 + $0x188] sm:$0xff] %vm1279, %v1200
      %1330 = vst.msk [vmem:[#allocation2 + $0x190] sm:$0xff] %vm1279, %v1201
      %1331 = vst.msk [vmem:[#allocation2 + $0x198] sm:$0xff] %vm1279, %v1202
      %1332 = vst.msk [vmem:[#allocation2 + $0x1a0] sm:$0xff] %vm1279, %v1203
      %1333 = vst.msk [vmem:[#allocation2 + $0x1a8] sm:$0xff] %vm1279, %v1204
      %1334 = vst.msk [vmem:[#allocation2 + $0x1b0] sm:$0xff] %vm1279, %v1205
      %1335 = vst.msk [vmem:[#allocation2 + $0x1b8] sm:$0xff] %vm1279, %v1206
      %1336 = vst.msk [vmem:[#allocation2 + $0x1c0] sm:$0xff] %vm1279, %v1207
      %1337 = vst.msk [vmem:[#allocation2 + $0x1c8] sm:$0xff] %vm1279, %v1208
      %1338 = vst.msk [vmem:[#allocation2 + $0x1d0] sm:$0xff] %vm1279, %v1209
      %1339 = vst.msk [vmem:[#allocation2 + $0x1d8] sm:$0xff] %vm1279, %v1210
      %1340 = vst.msk [vmem:[#allocation2 + $0x1e0] sm:$0xff] %vm1279, %v1211
      %1341 = vst.msk [vmem:[#allocation2 + $0x1e8] sm:$0xff] %vm1279, %v1212
      %1342 = vst.msk [vmem:[#allocation2 + $0x1f0] sm:$0xff] %vm1279, %v1213
      %1343 = vst.msk [vmem:[#allocation2 + $0x1f8] sm:$0xff] %vm1279, %v1214
      %1344 = vst.msk [vmem:[#allocation2 + $0x200] sm:$0xff] %vm1279, %v1215
      %1345 = vst.msk [vmem:[#allocation2 + $0x208] sm:$0xff] %vm1279, %v1216
      %1346 = vst.msk [vmem:[#allocation2 + $0x210] sm:$0xff] %vm1279, %v1217
      %1347 = vst.msk [vmem:[#allocation2 + $0x218] sm:$0xff] %vm1279, %v1218
      %1348 = vst.msk [vmem:[#allocation2 + $0x220] sm:$0xff] %vm1279, %v1219
      %1349 = vst.msk [vmem:[#allocation2 + $0x228] sm:$0xff] %vm1279, %v1220
      %1350 = vst.msk [vmem:[#allocation2 + $0x230] sm:$0xff] %vm1279, %v1221
      %1351 = vst.msk [vmem:[#allocation2 + $0x238] sm:$0xff] %vm1279, %v1222
      %1352 = vst.msk [vmem:[#allocation2 + $0x240] sm:$0xff] %vm1279, %v1223
      %1353 = vst.msk [vmem:[#allocation2 + $0x248] sm:$0xff] %vm1279, %v1224
      %1354 = vst.msk [vmem:[#allocation2 + $0x250] sm:$0xff] %vm1279, %v1225
      %1355 = vst.msk [vmem:[#allocation2 + $0x258] sm:$0xff] %vm1279, %v1226
      %1356 = vst.msk [vmem:[#allocation2 + $0x260] sm:$0xff] %vm1279, %v1227
      %1357 = vst.msk [vmem:[#allocation2 + $0x268] sm:$0xff] %vm1279, %v1228
      %1358 = vst.msk [vmem:[#allocation2 + $0x270] sm:$0xff] %vm1279, %v1229
      %1359 = vst.msk [vmem:[#allocation2 + $0x278] sm:$0xff] %vm1279, %v1230
      %1360 = vst.msk [vmem:[#allocation2 + $0x280] sm:$0xff] %vm1279, %v1231
      %1361 = vst.msk [vmem:[#allocation2 + $0x288] sm:$0xff] %vm1279, %v1232
      %1362 = vst.msk [vmem:[#allocation2 + $0x290] sm:$0xff] %vm1279, %v1233
      %1363 = vst.msk [vmem:[#allocation2 + $0x298] sm:$0xff] %vm1279, %v1234
      %1364 = vst.msk [vmem:[#allocation2 + $0x2a0] sm:$0xff] %vm1279, %v1235
      %1365 = vst.msk [vmem:[#allocation2 + $0x2a8] sm:$0xff] %vm1279, %v1236
      %1366 = vst.msk [vmem:[#allocation2 + $0x2b0] sm:$0xff] %vm1279, %v1237
      %1367 = vst.msk [vmem:[#allocation2 + $0x2b8] sm:$0xff] %vm1279, %v1238
      %1368 = vst.msk [vmem:[#allocation2 + $0x2c0] sm:$0xff] %vm1279, %v1239
      %1369 = vst.msk [vmem:[#allocation2 + $0x2c8] sm:$0xff] %vm1279, %v1240
      %1370 = vst.msk [vmem:[#allocation2 + $0x2d0] sm:$0xff] %vm1279, %v1241
      %1371 = vst.msk [vmem:[#allocation2 + $0x2d8] sm:$0xff] %vm1279, %v1242
      %1372 = vst.msk [vmem:[#allocation2 + $0x2e0] sm:$0xff] %vm1279, %v1243
      %1373 = vst.msk [vmem:[#allocation2 + $0x2e8] sm:$0xff] %vm1279, %v1244
      %1374 = vst.msk [vmem:[#allocation2 + $0x2f0] sm:$0xff] %vm1279, %v1245
      %1375 = vst.msk [vmem:[#allocation2 + $0x2f8] sm:$0xff] %vm1279, %v1246
      %1376 = vst.msk [vmem:[#allocation2 + $0x300] sm:$0xff] %vm1279, %v1247
      %1377 = vst.msk [vmem:[#allocation2 + $0x308] sm:$0xff] %vm1279, %v1248
      %1378 = vst.msk [vmem:[#allocation2 + $0x310] sm:$0xff] %vm1279, %v1249
      %1379 = vst.msk [vmem:[#allocation2 + $0x318] sm:$0xff] %vm1279, %v1250
      %1380 = vst.msk [vmem:[#allocation2 + $0x320] sm:$0xff] %vm1279, %v1251
      %1381 = vst.msk [vmem:[#allocation2 + $0x328] sm:$0xff] %vm1279, %v1252
      %1382 = vst.msk [vmem:[#allocation2 + $0x330] sm:$0xff] %vm1279, %v1253
      %1383 = vst.msk [vmem:[#allocation2 + $0x338] sm:$0xff] %vm1279, %v1254
      %1384 = vst.msk [vmem:[#allocation2 + $0x340] sm:$0xff] %vm1279, %v1255
      %1385 = vst.msk [vmem:[#allocation2 + $0x348] sm:$0xff] %vm1279, %v1256
      %1386 = vst.msk [vmem:[#allocation2 + $0x350] sm:$0xff] %vm1279, %v1257
      %1387 = vst.msk [vmem:[#allocation2 + $0x358] sm:$0xff] %vm1279, %v1258
      %1388 = vst.msk [vmem:[#allocation2 + $0x360] sm:$0xff] %vm1279, %v1259
      %1389 = vst.msk [vmem:[#allocation2 + $0x368] sm:$0xff] %vm1279, %v1260
      %1390 = vst.msk [vmem:[#allocation2 + $0x370] sm:$0xff] %vm1279, %v1261
      %1391 = vst.msk [vmem:[#allocation2 + $0x378] sm:$0xff] %vm1279, %v1262
      %1392 = vst.msk [vmem:[#allocation2 + $0x380] sm:$0xff] %vm1279, %v1263
      %1393 = vst.msk [vmem:[#allocation2 + $0x388] sm:$0xff] %vm1279, %v1264
      %1394 = vst.msk [vmem:[#allocation2 + $0x390] sm:$0xff] %vm1279, %v1265
      %1395 = vst.msk [vmem:[#allocation2 + $0x398] sm:$0xff] %vm1279, %v1266
      %1396 = vst.msk [vmem:[#allocation2 + $0x3a0] sm:$0xff] %vm1279, %v1267
      %1397 = vst.msk [vmem:[#allocation2 + $0x3a8] sm:$0xff] %vm1279, %v1268
      %1398 = vst.msk [vmem:[#allocation2 + $0x3b0] sm:$0xff] %vm1279, %v1269
      %1399 = vst.msk [vmem:[#allocation2 + $0x3b8] sm:$0xff] %vm1279, %v1270
      %1400 = vst.msk [vmem:[#allocation2 + $0x3c0] sm:$0xff] %vm1279, %v1271
      %1401 = vst.msk [vmem:[#allocation2 + $0x3c8] sm:$0xff] %vm1279, %v1272
      %1402 = vst.msk [vmem:[#allocation2 + $0x3d0] sm:$0xff] %vm1279, %v1273
      %1403 = vst.msk [vmem:[#allocation2 + $0x3d8] sm:$0xff] %vm1279, %v1274
      %1404 = vst.msk [vmem:[#allocation2 + $0x3e0] sm:$0xff] %vm1279, %v1275
      %1405 = vst.msk [vmem:[#allocation2 + $0x3e8] sm:$0xff] %vm1279, %v1276
      %1406 = vst.msk [vmem:[#allocation2 + $0x3f0] sm:$0xff] %vm1279, %v1277
      %1407 = vst.msk [vmem:[#allocation2 + $0x3f8] sm:$0xff] %vm1279, %v1278
      %v1408 = vld [vmem:[#allocation2] ss:$2 sm:$0xff]
      %s1409 = scalar_lea.vmem [#allocation2], 16
      %v1410 = vld [vmem:[%s1409] ss:$2 sm:$0xff]
      %s1411 = scalar_lea.vmem [#allocation2], 32
      %v1412 = vld [vmem:[%s1411] ss:$2 sm:$0xff]
      %s1413 = scalar_lea.vmem [#allocation2], 48
      %v1414 = vld [vmem:[%s1413] ss:$2 sm:$0xff]
      %s1415 = scalar_lea.vmem [#allocation2], 64
      %v1416 = vld [vmem:[%s1415] ss:$2 sm:$0xff]
      %s1417 = scalar_lea.vmem [#allocation2], 80
      %v1418 = vld [vmem:[%s1417] ss:$2 sm:$0xff]
      %s1419 = scalar_lea.vmem [#allocation2], 96
      %v1420 = vld [vmem:[%s1419] ss:$2 sm:$0xff]
      %s1421 = scalar_lea.vmem [#allocation2], 112
      %v1422 = vld [vmem:[%s1421] ss:$2 sm:$0xff]
      %s1423 = scalar_lea.vmem [#allocation2], 128
      %v1424 = vld [vmem:[%s1423] ss:$2 sm:$0xff]
      %s1425 = scalar_lea.vmem [#allocation2], 144
      %v1426 = vld [vmem:[%s1425] ss:$2 sm:$0xff]
      %s1427 = scalar_lea.vmem [#allocation2], 160
      %v1428 = vld [vmem:[%s1427] ss:$2 sm:$0xff]
      %s1429 = scalar_lea.vmem [#allocation2], 176
      %v1430 = vld [vmem:[%s1429] ss:$2 sm:$0xff]
      %s1431 = scalar_lea.vmem [#allocation2], 192
      %v1432 = vld [vmem:[%s1431] ss:$2 sm:$0xff]
      %s1433 = scalar_lea.vmem [#allocation2], 208
      %v1434 = vld [vmem:[%s1433] ss:$2 sm:$0xff]
      %s1435 = scalar_lea.vmem [#allocation2], 224
      %v1436 = vld [vmem:[%s1435] ss:$2 sm:$0xff]
      %s1437 = scalar_lea.vmem [#allocation2], 240
      %v1438 = vld [vmem:[%s1437] ss:$2 sm:$0xff]
      %s1439 = scalar_lea.vmem [#allocation2], 256
      %v1440 = vld [vmem:[%s1439] ss:$2 sm:$0xff]
      %s1441 = scalar_lea.vmem [#allocation2], 272
      %v1442 = vld [vmem:[%s1441] ss:$2 sm:$0xff]
      %s1443 = scalar_lea.vmem [#allocation2], 288
      %v1444 = vld [vmem:[%s1443] ss:$2 sm:$0xff]
      %s1445 = scalar_lea.vmem [#allocation2], 304
      %v1446 = vld [vmem:[%s1445] ss:$2 sm:$0xff]
      %s1447 = scalar_lea.vmem [#allocation2], 320
      %v1448 = vld [vmem:[%s1447] ss:$2 sm:$0xff]
      %s1449 = scalar_lea.vmem [#allocation2], 336
      %v1450 = vld [vmem:[%s1449] ss:$2 sm:$0xff]
      %s1451 = scalar_lea.vmem [#allocation2], 352
      %v1452 = vld [vmem:[%s1451] ss:$2 sm:$0xff]
      %s1453 = scalar_lea.vmem [#allocation2], 368
      %v1454 = vld [vmem:[%s1453] ss:$2 sm:$0xff]
      %s1455 = scalar_lea.vmem [#allocation2], 384
      %v1456 = vld [vmem:[%s1455] ss:$2 sm:$0xff]
      %s1457 = scalar_lea.vmem [#allocation2], 400
      %v1458 = vld [vmem:[%s1457] ss:$2 sm:$0xff]
      %s1459 = scalar_lea.vmem [#allocation2], 416
      %v1460 = vld [vmem:[%s1459] ss:$2 sm:$0xff]
      %s1461 = scalar_lea.vmem [#allocation2], 432
      %v1462 = vld [vmem:[%s1461] ss:$2 sm:$0xff]
      %s1463 = scalar_lea.vmem [#allocation2], 448
      %v1464 = vld [vmem:[%s1463] ss:$2 sm:$0xff]
      %s1465 = scalar_lea.vmem [#allocation2], 464
      %v1466 = vld [vmem:[%s1465] ss:$2 sm:$0xff]
      %s1467 = scalar_lea.vmem [#allocation2], 480
      %v1468 = vld [vmem:[%s1467] ss:$2 sm:$0xff]
      %s1469 = scalar_lea.vmem [#allocation2], 496
      %v1470 = vld [vmem:[%s1469] ss:$2 sm:$0xff]
      %s1471 = scalar_lea.vmem [#allocation2], 512
      %v1472 = vld [vmem:[%s1471] ss:$2 sm:$0xff]
      %s1473 = scalar_lea.vmem [#allocation2], 528
      %v1474 = vld [vmem:[%s1473] ss:$2 sm:$0xff]
      %s1475 = scalar_lea.vmem [#allocation2], 544
      %v1476 = vld [vmem:[%s1475] ss:$2 sm:$0xff]
      %s1477 = scalar_lea.vmem [#allocation2], 560
      %v1478 = vld [vmem:[%s1477] ss:$2 sm:$0xff]
      %s1479 = scalar_lea.vmem [#allocation2], 576
      %v1480 = vld [vmem:[%s1479] ss:$2 sm:$0xff]
      %s1481 = scalar_lea.vmem [#allocation2], 592
      %v1482 = vld [vmem:[%s1481] ss:$2 sm:$0xff]
      %s1483 = scalar_lea.vmem [#allocation2], 608
      %v1484 = vld [vmem:[%s1483] ss:$2 sm:$0xff]
      %s1485 = scalar_lea.vmem [#allocation2], 624
      %v1486 = vld [vmem:[%s1485] ss:$2 sm:$0xff]
      %s1487 = scalar_lea.vmem [#allocation2], 640
      %v1488 = vld [vmem:[%s1487] ss:$2 sm:$0xff]
      %s1489 = scalar_lea.vmem [#allocation2], 656
      %v1490 = vld [vmem:[%s1489] ss:$2 sm:$0xff]
      %s1491 = scalar_lea.vmem [#allocation2], 672
      %v1492 = vld [vmem:[%s1491] ss:$2 sm:$0xff]
      %s1493 = scalar_lea.vmem [#allocation2], 688
      %v1494 = vld [vmem:[%s1493] ss:$2 sm:$0xff]
      %s1495 = scalar_lea.vmem [#allocation2], 704
      %v1496 = vld [vmem:[%s1495] ss:$2 sm:$0xff]
      %s1497 = scalar_lea.vmem [#allocation2], 720
      %v1498 = vld [vmem:[%s1497] ss:$2 sm:$0xff]
      %s1499 = scalar_lea.vmem [#allocation2], 736
      %v1500 = vld [vmem:[%s1499] ss:$2 sm:$0xff]
      %s1501 = scalar_lea.vmem [#allocation2], 752
      %v1502 = vld [vmem:[%s1501] ss:$2 sm:$0xff]
      %s1503 = scalar_lea.vmem [#allocation2], 768
      %v1504 = vld [vmem:[%s1503] ss:$2 sm:$0xff]
      %s1505 = scalar_lea.vmem [#allocation2], 784
      %v1506 = vld [vmem:[%s1505] ss:$2 sm:$0xff]
      %s1507 = scalar_lea.vmem [#allocation2], 800
      %v1508 = vld [vmem:[%s1507] ss:$2 sm:$0xff]
      %s1509 = scalar_lea.vmem [#allocation2], 816
      %v1510 = vld [vmem:[%s1509] ss:$2 sm:$0xff]
      %s1511 = scalar_lea.vmem [#allocation2], 832
      %v1512 = vld [vmem:[%s1511] ss:$2 sm:$0xff]
      %s1513 = scalar_lea.vmem [#allocation2], 848
      %v1514 = vld [vmem:[%s1513] ss:$2 sm:$0xff]
      %s1515 = scalar_lea.vmem [#allocation2], 864
      %v1516 = vld [vmem:[%s1515] ss:$2 sm:$0xff]
      %s1517 = scalar_lea.vmem [#allocation2], 880
      %v1518 = vld [vmem:[%s1517] ss:$2 sm:$0xff]
      %s1519 = scalar_lea.vmem [#allocation2], 896
      %v1520 = vld [vmem:[%s1519] ss:$2 sm:$0xff]
      %s1521 = scalar_lea.vmem [#allocation2], 912
      %v1522 = vld [vmem:[%s1521] ss:$2 sm:$0xff]
      %s1523 = scalar_lea.vmem [#allocation2], 928
      %v1524 = vld [vmem:[%s1523] ss:$2 sm:$0xff]
      %s1525 = scalar_lea.vmem [#allocation2], 944
      %v1526 = vld [vmem:[%s1525] ss:$2 sm:$0xff]
      %s1527 = scalar_lea.vmem [#allocation2], 960
      %v1528 = vld [vmem:[%s1527] ss:$2 sm:$0xff]
      %s1529 = scalar_lea.vmem [#allocation2], 976
      %v1530 = vld [vmem:[%s1529] ss:$2 sm:$0xff]
      %s1531 = scalar_lea.vmem [#allocation2], 992
      %v1532 = vld [vmem:[%s1531] ss:$2 sm:$0xff]
      %s1533 = scalar_lea.vmem [#allocation2], 1008
      %v1534 = vld [vmem:[%s1533] ss:$2 sm:$0xff]
      %s1535 = scalar_lea.vmem [#allocation2], 1
      %v1536 = vld [vmem:[%s1535] ss:$2 sm:$0xff]
      %s1537 = scalar_lea.vmem [#allocation2], 17
      %v1538 = vld [vmem:[%s1537] ss:$2 sm:$0xff]
      %s1539 = scalar_lea.vmem [#allocation2], 33
      %v1540 = vld [vmem:[%s1539] ss:$2 sm:$0xff]
      %s1541 = scalar_lea.vmem [#allocation2], 49
      %v1542 = vld [vmem:[%s1541] ss:$2 sm:$0xff]
      %s1543 = scalar_lea.vmem [#allocation2], 65
      %v1544 = vld [vmem:[%s1543] ss:$2 sm:$0xff]
      %s1545 = scalar_lea.vmem [#allocation2], 81
      %v1546 = vld [vmem:[%s1545] ss:$2 sm:$0xff]
      %s1547 = scalar_lea.vmem [#allocation2], 97
      %v1548 = vld [vmem:[%s1547] ss:$2 sm:$0xff]
      %s1549 = scalar_lea.vmem [#allocation2], 113
      %v1550 = vld [vmem:[%s1549] ss:$2 sm:$0xff]
      %s1551 = scalar_lea.vmem [#allocation2], 129
      %v1552 = vld [vmem:[%s1551] ss:$2 sm:$0xff]
      %s1553 = scalar_lea.vmem [#allocation2], 145
      %v1554 = vld [vmem:[%s1553] ss:$2 sm:$0xff]
      %s1555 = scalar_lea.vmem [#allocation2], 161
      %v1556 = vld [vmem:[%s1555] ss:$2 sm:$0xff]
      %s1557 = scalar_lea.vmem [#allocation2], 177
      %v1558 = vld [vmem:[%s1557] ss:$2 sm:$0xff]
      %s1559 = scalar_lea.vmem [#allocation2], 193
      %v1560 = vld [vmem:[%s1559] ss:$2 sm:$0xff]
      %s1561 = scalar_lea.vmem [#allocation2], 209
      %v1562 = vld [vmem:[%s1561] ss:$2 sm:$0xff]
      %s1563 = scalar_lea.vmem [#allocation2], 225
      %v1564 = vld [vmem:[%s1563] ss:$2 sm:$0xff]
      %s1565 = scalar_lea.vmem [#allocation2], 241
      %v1566 = vld [vmem:[%s1565] ss:$2 sm:$0xff]
      %s1567 = scalar_lea.vmem [#allocation2], 257
      %v1568 = vld [vmem:[%s1567] ss:$2 sm:$0xff]
      %s1569 = scalar_lea.vmem [#allocation2], 273
      %v1570 = vld [vmem:[%s1569] ss:$2 sm:$0xff]
      %s1571 = scalar_lea.vmem [#allocation2], 289
      %v1572 = vld [vmem:[%s1571] ss:$2 sm:$0xff]
      %s1573 = scalar_lea.vmem [#allocation2], 305
      %v1574 = vld [vmem:[%s1573] ss:$2 sm:$0xff]
      %s1575 = scalar_lea.vmem [#allocation2], 321
      %v1576 = vld [vmem:[%s1575] ss:$2 sm:$0xff]
      %s1577 = scalar_lea.vmem [#allocation2], 337
      %v1578 = vld [vmem:[%s1577] ss:$2 sm:$0xff]
      %s1579 = scalar_lea.vmem [#allocation2], 353
      %v1580 = vld [vmem:[%s1579] ss:$2 sm:$0xff]
      %s1581 = scalar_lea.vmem [#allocation2], 369
      %v1582 = vld [vmem:[%s1581] ss:$2 sm:$0xff]
      %s1583 = scalar_lea.vmem [#allocation2], 385
      %v1584 = vld [vmem:[%s1583] ss:$2 sm:$0xff]
      %s1585 = scalar_lea.vmem [#allocation2], 401
      %v1586 = vld [vmem:[%s1585] ss:$2 sm:$0xff]
      %s1587 = scalar_lea.vmem [#allocation2], 417
      %v1588 = vld [vmem:[%s1587] ss:$2 sm:$0xff]
      %s1589 = scalar_lea.vmem [#allocation2], 433
      %v1590 = vld [vmem:[%s1589] ss:$2 sm:$0xff]
      %s1591 = scalar_lea.vmem [#allocation2], 449
      %v1592 = vld [vmem:[%s1591] ss:$2 sm:$0xff]
      %s1593 = scalar_lea.vmem [#allocation2], 465
      %v1594 = vld [vmem:[%s1593] ss:$2 sm:$0xff]
      %s1595 = scalar_lea.vmem [#allocation2], 481
      %v1596 = vld [vmem:[%s1595] ss:$2 sm:$0xff]
      %s1597 = scalar_lea.vmem [#allocation2], 497
      %v1598 = vld [vmem:[%s1597] ss:$2 sm:$0xff]
      %s1599 = scalar_lea.vmem [#allocation2], 513
      %v1600 = vld [vmem:[%s1599] ss:$2 sm:$0xff]
      %s1601 = scalar_lea.vmem [#allocation2], 529
      %v1602 = vld [vmem:[%s1601] ss:$2 sm:$0xff]
      %s1603 = scalar_lea.vmem [#allocation2], 545
      %v1604 = vld [vmem:[%s1603] ss:$2 sm:$0xff]
      %s1605 = scalar_lea.vmem [#allocation2], 561
      %v1606 = vld [vmem:[%s1605] ss:$2 sm:$0xff]
      %s1607 = scalar_lea.vmem [#allocation2], 577
      %v1608 = vld [vmem:[%s1607] ss:$2 sm:$0xff]
      %s1609 = scalar_lea.vmem [#allocation2], 593
      %v1610 = vld [vmem:[%s1609] ss:$2 sm:$0xff]
      %s1611 = scalar_lea.vmem [#allocation2], 609
      %v1612 = vld [vmem:[%s1611] ss:$2 sm:$0xff]
      %s1613 = scalar_lea.vmem [#allocation2], 625
      %v1614 = vld [vmem:[%s1613] ss:$2 sm:$0xff]
      %s1615 = scalar_lea.vmem [#allocation2], 641
      %v1616 = vld [vmem:[%s1615] ss:$2 sm:$0xff]
      %s1617 = scalar_lea.vmem [#allocation2], 657
      %v1618 = vld [vmem:[%s1617] ss:$2 sm:$0xff]
      %s1619 = scalar_lea.vmem [#allocation2], 673
      %v1620 = vld [vmem:[%s1619] ss:$2 sm:$0xff]
      %s1621 = scalar_lea.vmem [#allocation2], 689
      %v1622 = vld [vmem:[%s1621] ss:$2 sm:$0xff]
      %s1623 = scalar_lea.vmem [#allocation2], 705
      %v1624 = vld [vmem:[%s1623] ss:$2 sm:$0xff]
      %s1625 = scalar_lea.vmem [#allocation2], 721
      %v1626 = vld [vmem:[%s1625] ss:$2 sm:$0xff]
      %s1627 = scalar_lea.vmem [#allocation2], 737
      %v1628 = vld [vmem:[%s1627] ss:$2 sm:$0xff]
      %s1629 = scalar_lea.vmem [#allocation2], 753
      %v1630 = vld [vmem:[%s1629] ss:$2 sm:$0xff]
      %s1631 = scalar_lea.vmem [#allocation2], 769
      %v1632 = vld [vmem:[%s1631] ss:$2 sm:$0xff]
      %s1633 = scalar_lea.vmem [#allocation2], 785
      %v1634 = vld [vmem:[%s1633] ss:$2 sm:$0xff]
      %s1635 = scalar_lea.vmem [#allocation2], 801
      %v1636 = vld [vmem:[%s1635] ss:$2 sm:$0xff]
      %s1637 = scalar_lea.vmem [#allocation2], 817
      %v1638 = vld [vmem:[%s1637] ss:$2 sm:$0xff]
      %s1639 = scalar_lea.vmem [#allocation2], 833
      %v1640 = vld [vmem:[%s1639] ss:$2 sm:$0xff]
      %s1641 = scalar_lea.vmem [#allocation2], 849
      %v1642 = vld [vmem:[%s1641] ss:$2 sm:$0xff]
      %s1643 = scalar_lea.vmem [#allocation2], 865
      %v1644 = vld [vmem:[%s1643] ss:$2 sm:$0xff]
      %s1645 = scalar_lea.vmem [#allocation2], 881
      %v1646 = vld [vmem:[%s1645] ss:$2 sm:$0xff]
      %s1647 = scalar_lea.vmem [#allocation2], 897
      %v1648 = vld [vmem:[%s1647] ss:$2 sm:$0xff]
      %s1649 = scalar_lea.vmem [#allocation2], 913
      %v1650 = vld [vmem:[%s1649] ss:$2 sm:$0xff]
      %s1651 = scalar_lea.vmem [#allocation2], 929
      %v1652 = vld [vmem:[%s1651] ss:$2 sm:$0xff]
      %s1653 = scalar_lea.vmem [#allocation2], 945
      %v1654 = vld [vmem:[%s1653] ss:$2 sm:$0xff]
      %s1655 = scalar_lea.vmem [#allocation2], 961
      %v1656 = vld [vmem:[%s1655] ss:$2 sm:$0xff]
      %s1657 = scalar_lea.vmem [#allocation2], 977
      %v1658 = vld [vmem:[%s1657] ss:$2 sm:$0xff]
      %s1659 = scalar_lea.vmem [#allocation2], 993
      %v1660 = vld [vmem:[%s1659] ss:$2 sm:$0xff]
      %s1661 = scalar_lea.vmem [#allocation2], 1009
      %v1662 = vld [vmem:[%s1661] ss:$2 sm:$0xff]
      %v1663 = vmax.f32 %v1408, %v1536
      %v1664 = vmax.f32 %v1410, %v1538
      %v1665 = vmax.f32 %v1412, %v1540
      %v1666 = vmax.f32 %v1414, %v1542
      %v1667 = vmax.f32 %v1416, %v1544
      %v1668 = vmax.f32 %v1418, %v1546
      %v1669 = vmax.f32 %v1420, %v1548
      %v1670 = vmax.f32 %v1422, %v1550
      %v1671 = vmax.f32 %v1424, %v1552
      %v1672 = vmax.f32 %v1426, %v1554
      %v1673 = vmax.f32 %v1428, %v1556
      %v1674 = vmax.f32 %v1430, %v1558
      %v1675 = vmax.f32 %v1432, %v1560
      %v1676 = vmax.f32 %v1434, %v1562
      %v1677 = vmax.f32 %v1436, %v1564
      %v1678 = vmax.f32 %v1438, %v1566
      %v1679 = vmax.f32 %v1440, %v1568
      %v1680 = vmax.f32 %v1442, %v1570
      %v1681 = vmax.f32 %v1444, %v1572
      %v1682 = vmax.f32 %v1446, %v1574
      %v1683 = vmax.f32 %v1448, %v1576
      %v1684 = vmax.f32 %v1450, %v1578
      %v1685 = vmax.f32 %v1452, %v1580
      %v1686 = vmax.f32 %v1454, %v1582
      %v1687 = vmax.f32 %v1456, %v1584
      %v1688 = vmax.f32 %v1458, %v1586
      %v1689 = vmax.f32 %v1460, %v1588
      %v1690 = vmax.f32 %v1462, %v1590
      %v1691 = vmax.f32 %v1464, %v1592
      %v1692 = vmax.f32 %v1466, %v1594
      %v1693 = vmax.f32 %v1468, %v1596
      %v1694 = vmax.f32 %v1470, %v1598
      %v1695 = vmax.f32 %v1472, %v1600
      %v1696 = vmax.f32 %v1474, %v1602
      %v1697 = vmax.f32 %v1476, %v1604
      %v1698 = vmax.f32 %v1478, %v1606
      %v1699 = vmax.f32 %v1480, %v1608
      %v1700 = vmax.f32 %v1482, %v1610
      %v1701 = vmax.f32 %v1484, %v1612
      %v1702 = vmax.f32 %v1486, %v1614
      %v1703 = vmax.f32 %v1488, %v1616
      %v1704 = vmax.f32 %v1490, %v1618
      %v1705 = vmax.f32 %v1492, %v1620
      %v1706 = vmax.f32 %v1494, %v1622
      %v1707 = vmax.f32 %v1496, %v1624
      %v1708 = vmax.f32 %v1498, %v1626
      %v1709 = vmax.f32 %v1500, %v1628
      %v1710 = vmax.f32 %v1502, %v1630
      %v1711 = vmax.f32 %v1504, %v1632
      %v1712 = vmax.f32 %v1506, %v1634
      %v1713 = vmax.f32 %v1508, %v1636
      %v1714 = vmax.f32 %v1510, %v1638
      %v1715 = vmax.f32 %v1512, %v1640
      %v1716 = vmax.f32 %v1514, %v1642
      %v1717 = vmax.f32 %v1516, %v1644
      %v1718 = vmax.f32 %v1518, %v1646
      %v1719 = vmax.f32 %v1520, %v1648
      %v1720 = vmax.f32 %v1522, %v1650
      %v1721 = vmax.f32 %v1524, %v1652
      %v1722 = vmax.f32 %v1526, %v1654
      %v1723 = vmax.f32 %v1528, %v1656
      %v1724 = vmax.f32 %v1530, %v1658
      %v1725 = vmax.f32 %v1532, %v1660
      %v1726 = vmax.f32 %v1534, %v1662
      %1727 = vst.msk [vmem:[#allocation3] sm:$0xff] %vm1279, 0.0
      %1728 = vst.msk [vmem:[#allocation3 + $0x8] sm:$0xff] %vm1279, 0.0
      %1729 = vst.msk [vmem:[#allocation3 + $0x10] sm:$0xff] %vm1279, 0.0
      %1730 = vst.msk [vmem:[#allocation3 + $0x18] sm:$0xff] %vm1279, 0.0
      %1731 = vst.msk [vmem:[#allocation3 + $0x20] sm:$0xff] %vm1279, 0.0
      %1732 = vst.msk [vmem:[#allocation3 + $0x28] sm:$0xff] %vm1279, 0.0
      %1733 = vst.msk [vmem:[#allocation3 + $0x30] sm:$0xff] %vm1279, 0.0
      %1734 = vst.msk [vmem:[#allocation3 + $0x38] sm:$0xff] %vm1279, 0.0
      %1735 = vst.msk [vmem:[#allocation3 + $0x40] sm:$0xff] %vm1279, 0.0
      %1736 = vst.msk [vmem:[#allocation3 + $0x48] sm:$0xff] %vm1279, 0.0
      %1737 = vst.msk [vmem:[#allocation3 + $0x50] sm:$0xff] %vm1279, 0.0
      %1738 = vst.msk [vmem:[#allocation3 + $0x58] sm:$0xff] %vm1279, 0.0
      %1739 = vst.msk [vmem:[#allocation3 + $0x60] sm:$0xff] %vm1279, 0.0
      %1740 = vst.msk [vmem:[#allocation3 + $0x68] sm:$0xff] %vm1279, 0.0
      %1741 = vst.msk [vmem:[#allocation3 + $0x70] sm:$0xff] %vm1279, 0.0
      %1742 = vst.msk [vmem:[#allocation3 + $0x78] sm:$0xff] %vm1279, 0.0
      %1743 = vst.msk [vmem:[#allocation3 + $0x80] sm:$0xff] %vm1279, 0.0
      %1744 = vst.msk [vmem:[#allocation3 + $0x88] sm:$0xff] %vm1279, 0.0
      %1745 = vst.msk [vmem:[#allocation3 + $0x90] sm:$0xff] %vm1279, 0.0
      %1746 = vst.msk [vmem:[#allocation3 + $0x98] sm:$0xff] %vm1279, 0.0
      %1747 = vst.msk [vmem:[#allocation3 + $0xa0] sm:$0xff] %vm1279, 0.0
      %1748 = vst.msk [vmem:[#allocation3 + $0xa8] sm:$0xff] %vm1279, 0.0
      %1749 = vst.msk [vmem:[#allocation3 + $0xb0] sm:$0xff] %vm1279, 0.0
      %1750 = vst.msk [vmem:[#allocation3 + $0xb8] sm:$0xff] %vm1279, 0.0
      %1751 = vst.msk [vmem:[#allocation3 + $0xc0] sm:$0xff] %vm1279, 0.0
      %1752 = vst.msk [vmem:[#allocation3 + $0xc8] sm:$0xff] %vm1279, 0.0
      %1753 = vst.msk [vmem:[#allocation3 + $0xd0] sm:$0xff] %vm1279, 0.0
      %1754 = vst.msk [vmem:[#allocation3 + $0xd8] sm:$0xff] %vm1279, 0.0
      %1755 = vst.msk [vmem:[#allocation3 + $0xe0] sm:$0xff] %vm1279, 0.0
      %1756 = vst.msk [vmem:[#allocation3 + $0xe8] sm:$0xff] %vm1279, 0.0
      %1757 = vst.msk [vmem:[#allocation3 + $0xf0] sm:$0xff] %vm1279, 0.0
      %1758 = vst.msk [vmem:[#allocation3 + $0xf8] sm:$0xff] %vm1279, 0.0
      %1759 = vst.msk [vmem:[#allocation3 + $0x100] sm:$0xff] %vm1279, 0.0
      %1760 = vst.msk [vmem:[#allocation3 + $0x108] sm:$0xff] %vm1279, 0.0
      %1761 = vst.msk [vmem:[#allocation3 + $0x110] sm:$0xff] %vm1279, 0.0
      %1762 = vst.msk [vmem:[#allocation3 + $0x118] sm:$0xff] %vm1279, 0.0
      %1763 = vst.msk [vmem:[#allocation3 + $0x120] sm:$0xff] %vm1279, 0.0
      %1764 = vst.msk [vmem:[#allocation3 + $0x128] sm:$0xff] %vm1279, 0.0
      %1765 = vst.msk [vmem:[#allocation3 + $0x130] sm:$0xff] %vm1279, 0.0
      %1766 = vst.msk [vmem:[#allocation3 + $0x138] sm:$0xff] %vm1279, 0.0
      %1767 = vst.msk [vmem:[#allocation3 + $0x140] sm:$0xff] %vm1279, 0.0
      %1768 = vst.msk [vmem:[#allocation3 + $0x148] sm:$0xff] %vm1279, 0.0
      %1769 = vst.msk [vmem:[#allocation3 + $0x150] sm:$0xff] %vm1279, 0.0
      %1770 = vst.msk [vmem:[#allocation3 + $0x158] sm:$0xff] %vm1279, 0.0
      %1771 = vst.msk [vmem:[#allocation3 + $0x160] sm:$0xff] %vm1279, 0.0
      %1772 = vst.msk [vmem:[#allocation3 + $0x168] sm:$0xff] %vm1279, 0.0
      %1773 = vst.msk [vmem:[#allocation3 + $0x170] sm:$0xff] %vm1279, 0.0
      %1774 = vst.msk [vmem:[#allocation3 + $0x178] sm:$0xff] %vm1279, 0.0
      %1775 = vst.msk [vmem:[#allocation3 + $0x180] sm:$0xff] %vm1279, 0.0
      %1776 = vst.msk [vmem:[#allocation3 + $0x188] sm:$0xff] %vm1279, 0.0
      %1777 = vst.msk [vmem:[#allocation3 + $0x190] sm:$0xff] %vm1279, 0.0
      %1778 = vst.msk [vmem:[#allocation3 + $0x198] sm:$0xff] %vm1279, 0.0
      %1779 = vst.msk [vmem:[#allocation3 + $0x1a0] sm:$0xff] %vm1279, 0.0
      %1780 = vst.msk [vmem:[#allocation3 + $0x1a8] sm:$0xff] %vm1279, 0.0
      %1781 = vst.msk [vmem:[#allocation3 + $0x1b0] sm:$0xff] %vm1279, 0.0
      %1782 = vst.msk [vmem:[#allocation3 + $0x1b8] sm:$0xff] %vm1279, 0.0
      %1783 = vst.msk [vmem:[#allocation3 + $0x1c0] sm:$0xff] %vm1279, 0.0
      %1784 = vst.msk [vmem:[#allocation3 + $0x1c8] sm:$0xff] %vm1279, 0.0
      %1785 = vst.msk [vmem:[#allocation3 + $0x1d0] sm:$0xff] %vm1279, 0.0
      %1786 = vst.msk [vmem:[#allocation3 + $0x1d8] sm:$0xff] %vm1279, 0.0
      %1787 = vst.msk [vmem:[#allocation3 + $0x1e0] sm:$0xff] %vm1279, 0.0
      %1788 = vst.msk [vmem:[#allocation3 + $0x1e8] sm:$0xff] %vm1279, 0.0
      %1789 = vst.msk [vmem:[#allocation3 + $0x1f0] sm:$0xff] %vm1279, 0.0
      %1790 = vst.msk [vmem:[#allocation3 + $0x1f8] sm:$0xff] %vm1279, 0.0
      %1791 = vst.msk [vmem:[#allocation3 + $0x200] sm:$0xff] %vm1279, 0.0
      %1792 = vst.msk [vmem:[#allocation3 + $0x208] sm:$0xff] %vm1279, 0.0
      %1793 = vst.msk [vmem:[#allocation3 + $0x210] sm:$0xff] %vm1279, 0.0
      %1794 = vst.msk [vmem:[#allocation3 + $0x218] sm:$0xff] %vm1279, 0.0
      %1795 = vst.msk [vmem:[#allocation3 + $0x220] sm:$0xff] %vm1279, 0.0
      %1796 = vst.msk [vmem:[#allocation3 + $0x228] sm:$0xff] %vm1279, 0.0
      %1797 = vst.msk [vmem:[#allocation3 + $0x230] sm:$0xff] %vm1279, 0.0
      %1798 = vst.msk [vmem:[#allocation3 + $0x238] sm:$0xff] %vm1279, 0.0
      %v1799 = vmax.f32 %v1663, %v1665
      %v1800 = vmax.f32 %v1664, %v1666
      %s1801 = scalar_lea.vmem [#allocation3], 32
      %1802 = vst.msk [vmem:[%s1801 + $0x8] sm:$0xff] %vm1279, %v1799
      %1803 = vst.msk [vmem:[%s1801 + $0x10] sm:$0xff] %vm1279, %v1800
      %v1804 = vmax.f32 %v1667, %v1669
      %v1805 = vmax.f32 %v1668, %v1670
      %s1806 = scalar_lea.vmem [#allocation3], 64
      %1807 = vst.msk [vmem:[%s1806 + $0x8] sm:$0xff] %vm1279, %v1804
      %1808 = vst.msk [vmem:[%s1806 + $0x10] sm:$0xff] %vm1279, %v1805
      %v1809 = vmax.f32 %v1671, %v1673
      %v1810 = vmax.f32 %v1672, %v1674
      %s1811 = scalar_lea.vmem [#allocation3], 96
      %1812 = vst.msk [vmem:[%s1811 + $0x8] sm:$0xff] %vm1279, %v1809
      %1813 = vst.msk [vmem:[%s1811 + $0x10] sm:$0xff] %vm1279, %v1810
      %v1814 = vmax.f32 %v1675, %v1677
      %v1815 = vmax.f32 %v1676, %v1678
      %s1816 = scalar_lea.vmem [#allocation3], 128
      %1817 = vst.msk [vmem:[%s1816 + $0x8] sm:$0xff] %vm1279, %v1814
      %1818 = vst.msk [vmem:[%s1816 + $0x10] sm:$0xff] %vm1279, %v1815
      %v1819 = vmax.f32 %v1679, %v1681
      %v1820 = vmax.f32 %v1680, %v1682
      %s1821 = scalar_lea.vmem [#allocation3], 160
      %1822 = vst.msk [vmem:[%s1821 + $0x8] sm:$0xff] %vm1279, %v1819
      %1823 = vst.msk [vmem:[%s1821 + $0x10] sm:$0xff] %vm1279, %v1820
      %v1824 = vmax.f32 %v1683, %v1685
      %v1825 = vmax.f32 %v1684, %v1686
      %s1826 = scalar_lea.vmem [#allocation3], 192
      %1827 = vst.msk [vmem:[%s1826 + $0x8] sm:$0xff] %vm1279, %v1824
      %1828 = vst.msk [vmem:[%s1826 + $0x10] sm:$0xff] %vm1279, %v1825
      %v1829 = vmax.f32 %v1687, %v1689
      %v1830 = vmax.f32 %v1688, %v1690
      %s1831 = scalar_lea.vmem [#allocation3], 224
      %1832 = vst.msk [vmem:[%s1831 + $0x8] sm:$0xff] %vm1279, %v1829
      %1833 = vst.msk [vmem:[%s1831 + $0x10] sm:$0xff] %vm1279, %v1830
      %v1834 = vmax.f32 %v1691, %v1693
      %v1835 = vmax.f32 %v1692, %v1694
      %s1836 = scalar_lea.vmem [#allocation3], 256
      %1837 = vst.msk [vmem:[%s1836 + $0x8] sm:$0xff] %vm1279, %v1834
      %1838 = vst.msk [vmem:[%s1836 + $0x10] sm:$0xff] %vm1279, %v1835
      %v1839 = vmax.f32 %v1695, %v1697
      %v1840 = vmax.f32 %v1696, %v1698
      %s1841 = scalar_lea.vmem [#allocation3], 288
      %1842 = vst.msk [vmem:[%s1841 + $0x8] sm:$0xff] %vm1279, %v1839
      %1843 = vst.msk [vmem:[%s1841 + $0x10] sm:$0xff] %vm1279, %v1840
      %v1844 = vmax.f32 %v1699, %v1701
      %v1845 = vmax.f32 %v1700, %v1702
      %s1846 = scalar_lea.vmem [#allocation3], 320
      %1847 = vst.msk [vmem:[%s1846 + $0x8] sm:$0xff] %vm1279, %v1844
      %1848 = vst.msk [vmem:[%s1846 + $0x10] sm:$0xff] %vm1279, %v1845
      %v1849 = vmax.f32 %v1703, %v1705
      %v1850 = vmax.f32 %v1704, %v1706
      %s1851 = scalar_lea.vmem [#allocation3], 352
      %1852 = vst.msk [vmem:[%s1851 + $0x8] sm:$0xff] %vm1279, %v1849
      %1853 = vst.msk [vmem:[%s1851 + $0x10] sm:$0xff] %vm1279, %v1850
      %v1854 = vmax.f32 %v1707, %v1709
      %v1855 = vmax.f32 %v1708, %v1710
      %s1856 = scalar_lea.vmem [#allocation3], 384
      %1857 = vst.msk [vmem:[%s1856 + $0x8] sm:$0xff] %vm1279, %v1854
      %1858 = vst.msk [vmem:[%s1856 + $0x10] sm:$0xff] %vm1279, %v1855
      %v1859 = vmax.f32 %v1711, %v1713
      %v1860 = vmax.f32 %v1712, %v1714
      %s1861 = scalar_lea.vmem [#allocation3], 416
      %1862 = vst.msk [vmem:[%s1861 + $0x8] sm:$0xff] %vm1279, %v1859
      %1863 = vst.msk [vmem:[%s1861 + $0x10] sm:$0xff] %vm1279, %v1860
      %v1864 = vmax.f32 %v1715, %v1717
      %v1865 = vmax.f32 %v1716, %v1718
      %s1866 = scalar_lea.vmem [#allocation3], 448
      %1867 = vst.msk [vmem:[%s1866 + $0x8] sm:$0xff] %vm1279, %v1864
      %1868 = vst.msk [vmem:[%s1866 + $0x10] sm:$0xff] %vm1279, %v1865
      %v1869 = vmax.f32 %v1719, %v1721
      %v1870 = vmax.f32 %v1720, %v1722
      %s1871 = scalar_lea.vmem [#allocation3], 480
      %1872 = vst.msk [vmem:[%s1871 + $0x8] sm:$0xff] %vm1279, %v1869
      %1873 = vst.msk [vmem:[%s1871 + $0x10] sm:$0xff] %vm1279, %v1870
      %v1874 = vmax.f32 %v1723, %v1725
      %v1875 = vmax.f32 %v1724, %v1726
      %s1876 = scalar_lea.vmem [#allocation3], 512
      %1877 = vst.msk [vmem:[%s1876 + $0x8] sm:$0xff] %vm1279, %v1874
      %1878 = vst.msk [vmem:[%s1876 + $0x10] sm:$0xff] %vm1279, %v1875
      %v1879 = vld [vmem:[#allocation3 + $0x7] sm:$0xff]
      %v1880 = vld [vmem:[#allocation3 + $0xf] sm:$0xff]
      %v1881 = vld [vmem:[#allocation3 + $0x27] sm:$0xff]
      %v1882 = vld [vmem:[#allocation3 + $0x2f] sm:$0xff]
      %v1883 = vld [vmem:[#allocation3 + $0x47] sm:$0xff]
      %v1884 = vld [vmem:[#allocation3 + $0x4f] sm:$0xff]
      %v1885 = vld [vmem:[#allocation3 + $0x67] sm:$0xff]
      %v1886 = vld [vmem:[#allocation3 + $0x6f] sm:$0xff]
      %v1887 = vld [vmem:[#allocation3 + $0x87] sm:$0xff]
      %v1888 = vld [vmem:[#allocation3 + $0x8f] sm:$0xff]
      %v1889 = vld [vmem:[#allocation3 + $0xa7] sm:$0xff]
      %v1890 = vld [vmem:[#allocation3 + $0xaf] sm:$0xff]
      %v1891 = vld [vmem:[#allocation3 + $0xc7] sm:$0xff]
      %v1892 = vld [vmem:[#allocation3 + $0xcf] sm:$0xff]
      %v1893 = vld [vmem:[#allocation3 + $0xe7] sm:$0xff]
      %v1894 = vld [vmem:[#allocation3 + $0xef] sm:$0xff]
      %v1895 = vld [vmem:[#allocation3 + $0x107] sm:$0xff]
      %v1896 = vld [vmem:[#allocation3 + $0x10f] sm:$0xff]
      %v1897 = vld [vmem:[#allocation3 + $0x127] sm:$0xff]
      %v1898 = vld [vmem:[#allocation3 + $0x12f] sm:$0xff]
      %v1899 = vld [vmem:[#allocation3 + $0x147] sm:$0xff]
      %v1900 = vld [vmem:[#allocation3 + $0x14f] sm:$0xff]
      %v1901 = vld [vmem:[#allocation3 + $0x167] sm:$0xff]
      %v1902 = vld [vmem:[#allocation3 + $0x16f] sm:$0xff]
      %v1903 = vld [vmem:[#allocation3 + $0x187] sm:$0xff]
      %v1904 = vld [vmem:[#allocation3 + $0x18f] sm:$0xff]
      %v1905 = vld [vmem:[#allocation3 + $0x1a7] sm:$0xff]
      %v1906 = vld [vmem:[#allocation3 + $0x1af] sm:$0xff]
      %v1907 = vld [vmem:[#allocation3 + $0x1c7] sm:$0xff]
      %v1908 = vld [vmem:[#allocation3 + $0x1cf] sm:$0xff]
      %v1909 = vld [vmem:[#allocation3 + $0x1e7] sm:$0xff]
      %v1910 = vld [vmem:[#allocation3 + $0x1ef] sm:$0xff]
      %v1911 = vld [vmem:[%s3] sm:$0xff]
      %v1912 = vld [vmem:[%s3 + $0x8] sm:$0xff]
      %v1913 = vld [vmem:[#allocation3 + $0x8] sm:$0xff]
      %v1914 = vld [vmem:[#allocation3 + $0x10] sm:$0xff]
      %v1915 = vld [vmem:[#allocation3 + $0x28] sm:$0xff]
      %v1916 = vld [vmem:[#allocation3 + $0x30] sm:$0xff]
      %v1917 = vld [vmem:[#allocation3 + $0x48] sm:$0xff]
      %v1918 = vld [vmem:[#allocation3 + $0x50] sm:$0xff]
      %v1919 = vld [vmem:[#allocation3 + $0x68] sm:$0xff]
      %v1920 = vld [vmem:[#allocation3 + $0x70] sm:$0xff]
      %v1921 = vld [vmem:[#allocation3 + $0x88] sm:$0xff]
      %v1922 = vld [vmem:[#allocation3 + $0x90] sm:$0xff]
      %v1923 = vld [vmem:[#allocation3 + $0xa8] sm:$0xff]
      %v1924 = vld [vmem:[#allocation3 + $0xb0] sm:$0xff]
      %v1925 = vld [vmem:[#allocation3 + $0xc8] sm:$0xff]
      %v1926 = vld [vmem:[#allocation3 + $0xd0] sm:$0xff]
      %v1927 = vld [vmem:[#allocation3 + $0xe8] sm:$0xff]
      %v1928 = vld [vmem:[#allocation3 + $0xf0] sm:$0xff]
      %v1929 = vld [vmem:[#allocation3 + $0x108] sm:$0xff]
      %v1930 = vld [vmem:[#allocation3 + $0x110] sm:$0xff]
      %v1931 = vld [vmem:[#allocation3 + $0x128] sm:$0xff]
      %v1932 = vld [vmem:[#allocation3 + $0x130] sm:$0xff]
      %v1933 = vld [vmem:[#allocation3 + $0x148] sm:$0xff]
      %v1934 = vld [vmem:[#allocation3 + $0x150] sm:$0xff]
      %v1935 = vld [vmem:[#allocation3 + $0x168] sm:$0xff]
      %v1936 = vld [vmem:[#allocation3 + $0x170] sm:$0xff]
      %v1937 = vld [vmem:[#allocation3 + $0x188] sm:$0xff]
      %v1938 = vld [vmem:[#allocation3 + $0x190] sm:$0xff]
      %v1939 = vld [vmem:[#allocation3 + $0x1a8] sm:$0xff]
      %v1940 = vld [vmem:[#allocation3 + $0x1b0] sm:$0xff]
      %v1941 = vld [vmem:[#allocation3 + $0x1c8] sm:$0xff]
      %v1942 = vld [vmem:[#allocation3 + $0x1d0] sm:$0xff]
      %v1943 = vld [vmem:[#allocation3 + $0x1e8] sm:$0xff]
      %v1944 = vld [vmem:[#allocation3 + $0x1f0] sm:$0xff]
      %s1945 = scalar_lea.vmem %s3, 16
      %v1946 = vld [vmem:[%s1945] sm:$0xff]
      %v1947 = vld [vmem:[%s1945 + $0x8] sm:$0xff]
      %v1949 = vsel %vm1279, %v1913, 0
      %v1952 = vsel %vm1279, %v1914, 0
      %v1955 = vsel %vm1279, %v1915, 0
      %v1958 = vsel %vm1279, %v1916, 0
      %v1961 = vsel %vm1279, %v1917, 0
      %v1964 = vsel %vm1279, %v1918, 0
      %v1967 = vsel %vm1279, %v1919, 0
      %v1970 = vsel %vm1279, %v1920, 0
      %v1973 = vsel %vm1279, %v1921, 0
      %v1976 = vsel %vm1279, %v1922, 0
      %v1979 = vsel %vm1279, %v1923, 0
      %v1982 = vsel %vm1279, %v1924, 0
      %v1985 = vsel %vm1279, %v1925, 0
      %v1988 = vsel %vm1279, %v1926, 0
      %v1991 = vsel %vm1279, %v1927, 0
      %v1994 = vsel %vm1279, %v1928, 0
      %v1997 = vsel %vm1279, %v1929, 0
      %v2000 = vsel %vm1279, %v1930, 0
      %v2003 = vsel %vm1279, %v1931, 0
      %v2006 = vsel %vm1279, %v1932, 0
      %v2009 = vsel %vm1279, %v1933, 0
      %v2012 = vsel %vm1279, %v1934, 0
      %v2015 = vsel %vm1279, %v1935, 0
      %v2018 = vsel %vm1279, %v1936, 0
      %v2021 = vsel %vm1279, %v1937, 0
      %v2024 = vsel %vm1279, %v1938, 0
      %v2027 = vsel %vm1279, %v1939, 0
      %v2030 = vsel %vm1279, %v1940, 0
      %v2033 = vsel %vm1279, %v1941, 0
      %v2036 = vsel %vm1279, %v1942, 0
      %v2039 = vsel %vm1279, %v1943, 0
      %v2042 = vsel %vm1279, %v1944, 0
      %2044 = vmatpush.msra.mxu0 0.0
      %2045 = vmatpush.msra.mxu0 0.0
      %2046 = vmatpush.msra.mxu0 0.0
      %2047 = vmatpush.msra.mxu0 0.0
      %2048 = vmatpush.msra.mxu0 0.0
      %2049 = vmatpush.msra.mxu0 0.0
      %2050 = vmatpush.msra.mxu0 0.0
      %2051 = vmatpush.msra.mxu0 0.0
      %2052 = vmatpush.msra.mxu0 0.0
      %2053 = vmatpush.msra.mxu0 0.0
      %2054 = vmatpush.msra.mxu0 0.0
      %2055 = vmatpush.msra.mxu0 0.0
      %2056 = vmatpush.msra.mxu0 0.0
      %2057 = vmatpush.msra.mxu0 0.0
      %2058 = vmatpush.msra.mxu0 %v1947
      %2059 = vmatpush.msra.mxu0 %v1946
      %2060 = vmatmul.f32.gmra.mxu0 %v1949
      %v2061 = vpop.f32.mrf.mxu0
      %v2062 = vadd.f32 0.0, %v2061
      %2063 = vmatmul.f32.gmra.mxu0 %v1952
      %v2064 = vpop.f32.mrf.mxu0
      %v2065 = vadd.f32 0.0, %v2064
      %2066 = vmatmul.f32.gmra.mxu0 %v1955
      %v2067 = vpop.f32.mrf.mxu0
      %v2068 = vadd.f32 0.0, %v2067
      %2069 = vmatmul.f32.gmra.mxu0 %v1958
      %v2070 = vpop.f32.mrf.mxu0
      %v2071 = vadd.f32 0.0, %v2070
      %2072 = vmatmul.f32.gmra.mxu0 %v1961
      %v2073 = vpop.f32.mrf.mxu0
      %v2074 = vadd.f32 0.0, %v2073
      %2075 = vmatmul.f32.gmra.mxu0 %v1964
      %v2076 = vpop.f32.mrf.mxu0
      %v2077 = vadd.f32 0.0, %v2076
      %2078 = vmatmul.f32.gmra.mxu0 %v1967
      %v2079 = vpop.f32.mrf.mxu0
      %v2080 = vadd.f32 0.0, %v2079
      %2081 = vmatmul.f32.gmra.mxu0 %v1970
      %v2082 = vpop.f32.mrf.mxu0
      %v2083 = vadd.f32 0.0, %v2082
      %2084 = vmatmul.f32.gmra.mxu0 %v1973
      %v2085 = vpop.f32.mrf.mxu0
      %v2086 = vadd.f32 0.0, %v2085
      %2087 = vmatmul.f32.gmra.mxu0 %v1976
      %v2088 = vpop.f32.mrf.mxu0
      %v2089 = vadd.f32 0.0, %v2088
      %2090 = vmatmul.f32.gmra.mxu0 %v1979
      %v2091 = vpop.f32.mrf.mxu0
      %v2092 = vadd.f32 0.0, %v2091
      %2093 = vmatmul.f32.gmra.mxu0 %v1982
      %v2094 = vpop.f32.mrf.mxu0
      %v2095 = vadd.f32 0.0, %v2094
      %2096 = vmatmul.f32.gmra.mxu0 %v1985
      %v2097 = vpop.f32.mrf.mxu0
      %v2098 = vadd.f32 0.0, %v2097
      %2099 = vmatmul.f32.gmra.mxu0 %v1988
      %v2100 = vpop.f32.mrf.mxu0
      %v2101 = vadd.f32 0.0, %v2100
      %2102 = vmatmul.f32.gmra.mxu0 %v1991
      %v2103 = vpop.f32.mrf.mxu0
      %v2104 = vadd.f32 0.0, %v2103
      %2105 = vmatmul.f32.gmra.mxu0 %v1994
      %v2106 = vpop.f32.mrf.mxu0
      %v2107 = vadd.f32 0.0, %v2106
      %2108 = vmatmul.f32.gmra.mxu0 %v1997
      %v2109 = vpop.f32.mrf.mxu0
      %v2110 = vadd.f32 0.0, %v2109
      %2111 = vmatmul.f32.gmra.mxu0 %v2000
      %v2112 = vpop.f32.mrf.mxu0
      %v2113 = vadd.f32 0.0, %v2112
      %2114 = vmatmul.f32.gmra.mxu0 %v2003
      %v2115 = vpop.f32.mrf.mxu0
      %v2116 = vadd.f32 0.0, %v2115
      %2117 = vmatmul.f32.gmra.mxu0 %v2006
      %v2118 = vpop.f32.mrf.mxu0
      %v2119 = vadd.f32 0.0, %v2118
      %2120 = vmatmul.f32.gmra.mxu0 %v2009
      %v2121 = vpop.f32.mrf.mxu0
      %v2122 = vadd.f32 0.0, %v2121
      %2123 = vmatmul.f32.gmra.mxu0 %v2012
      %v2124 = vpop.f32.mrf.mxu0
      %v2125 = vadd.f32 0.0, %v2124
      %2126 = vmatmul.f32.gmra.mxu0 %v2015
      %v2127 = vpop.f32.mrf.mxu0
      %v2128 = vadd.f32 0.0, %v2127
      %2129 = vmatmul.f32.gmra.mxu0 %v2018
      %v2130 = vpop.f32.mrf.mxu0
      %v2131 = vadd.f32 0.0, %v2130
      %2132 = vmatmul.f32.gmra.mxu0 %v2021
      %v2133 = vpop.f32.mrf.mxu0
      %v2134 = vadd.f32 0.0, %v2133
      %2135 = vmatmul.f32.gmra.mxu0 %v2024
      %v2136 = vpop.f32.mrf.mxu0
      %v2137 = vadd.f32 0.0, %v2136
      %2138 = vmatmul.f32.gmra.mxu0 %v2027
      %v2139 = vpop.f32.mrf.mxu0
      %v2140 = vadd.f32 0.0, %v2139
      %2141 = vmatmul.f32.gmra.mxu0 %v2030
      %v2142 = vpop.f32.mrf.mxu0
      %v2143 = vadd.f32 0.0, %v2142
      %2144 = vmatmul.f32.gmra.mxu0 %v2033
      %v2145 = vpop.f32.mrf.mxu0
      %v2146 = vadd.f32 0.0, %v2145
      %2147 = vmatmul.f32.gmra.mxu0 %v2036
      %v2148 = vpop.f32.mrf.mxu0
      %v2149 = vadd.f32 0.0, %v2148
      %2150 = vmatmul.f32.gmra.mxu0 %v2039
      %v2151 = vpop.f32.mrf.mxu0
      %v2152 = vadd.f32 0.0, %v2151
      %2153 = vmatmul.f32.gmra.mxu0 %v2042
      %v2154 = vpop.f32.mrf.mxu0
      %v2155 = vadd.f32 0.0, %v2154
      %2156 = vdwg.mxu0
      %v2158 = vsel %vm1279, %v1879, 0
      %v2161 = vsel %vm1279, %v1880, 0
      %v2164 = vsel %vm1279, %v1881, 0
      %v2167 = vsel %vm1279, %v1882, 0
      %v2170 = vsel %vm1279, %v1883, 0
      %v2173 = vsel %vm1279, %v1884, 0
      %v2176 = vsel %vm1279, %v1885, 0
      %v2179 = vsel %vm1279, %v1886, 0
      %v2182 = vsel %vm1279, %v1887, 0
      %v2185 = vsel %vm1279, %v1888, 0
      %v2188 = vsel %vm1279, %v1889, 0
      %v2191 = vsel %vm1279, %v1890, 0
      %v2194 = vsel %vm1279, %v1891, 0
      %v2197 = vsel %vm1279, %v1892, 0
      %v2200 = vsel %vm1279, %v1893, 0
      %v2203 = vsel %vm1279, %v1894, 0
      %v2206 = vsel %vm1279, %v1895, 0
      %v2209 = vsel %vm1279, %v1896, 0
      %v2212 = vsel %vm1279, %v1897, 0
      %v2215 = vsel %vm1279, %v1898, 0
      %v2218 = vsel %vm1279, %v1899, 0
      %v2221 = vsel %vm1279, %v1900, 0
      %v2224 = vsel %vm1279, %v1901, 0
      %v2227 = vsel %vm1279, %v1902, 0
      %v2230 = vsel %vm1279, %v1903, 0
      %v2233 = vsel %vm1279, %v1904, 0
      %v2236 = vsel %vm1279, %v1905, 0
      %v2239 = vsel %vm1279, %v1906, 0
      %v2242 = vsel %vm1279, %v1907, 0
      %v2245 = vsel %vm1279, %v1908, 0
      %v2248 = vsel %vm1279, %v1909, 0
      %v2251 = vsel %vm1279, %v1910, 0
      %2253 = vmatpush.msra.mxu0 0.0
      %2254 = vmatpush.msra.mxu0 0.0
      %2255 = vmatpush.msra.mxu0 0.0
      %2256 = vmatpush.msra.mxu0 0.0
      %2257 = vmatpush.msra.mxu0 0.0
      %2258 = vmatpush.msra.mxu0 0.0
      %2259 = vmatpush.msra.mxu0 0.0
      %2260 = vmatpush.msra.mxu0 0.0
      %2261 = vmatpush.msra.mxu0 0.0
      %2262 = vmatpush.msra.mxu0 0.0
      %2263 = vmatpush.msra.mxu0 0.0
      %2264 = vmatpush.msra.mxu0 0.0
      %2265 = vmatpush.msra.mxu0 0.0
      %2266 = vmatpush.msra.mxu0 0.0
      %2267 = vmatpush.msra.mxu0 %v1912
      %2268 = vmatpush.msra.mxu0 %v1911
      %2269 = vmatmul.f32.gmra.mxu0 %v2158
      %v2270 = vpop.f32.mrf.mxu0
      %v2271 = vadd.f32 %v2062, %v2270
      %2272 = vmatmul.f32.gmra.mxu0 %v2161
      %v2273 = vpop.f32.mrf.mxu0
      %v2274 = vadd.f32 %v2065, %v2273
      %2275 = vmatmul.f32.gmra.mxu0 %v2164
      %v2276 = vpop.f32.mrf.mxu0
      %v2277 = vadd.f32 %v2068, %v2276
      %2278 = vmatmul.f32.gmra.mxu0 %v2167
      %v2279 = vpop.f32.mrf.mxu0
      %v2280 = vadd.f32 %v2071, %v2279
      %2281 = vmatmul.f32.gmra.mxu0 %v2170
      %v2282 = vpop.f32.mrf.mxu0
      %v2283 = vadd.f32 %v2074, %v2282
      %2284 = vmatmul.f32.gmra.mxu0 %v2173
      %v2285 = vpop.f32.mrf.mxu0
      %v2286 = vadd.f32 %v2077, %v2285
      %2287 = vmatmul.f32.gmra.mxu0 %v2176
      %v2288 = vpop.f32.mrf.mxu0
      %v2289 = vadd.f32 %v2080, %v2288
      %2290 = vmatmul.f32.gmra.mxu0 %v2179
      %v2291 = vpop.f32.mrf.mxu0
      %v2292 = vadd.f32 %v2083, %v2291
      %2293 = vmatmul.f32.gmra.mxu0 %v2182
      %v2294 = vpop.f32.mrf.mxu0
      %v2295 = vadd.f32 %v2086, %v2294
      %2296 = vmatmul.f32.gmra.mxu0 %v2185
      %v2297 = vpop.f32.mrf.mxu0
      %v2298 = vadd.f32 %v2089, %v2297
      %2299 = vmatmul.f32.gmra.mxu0 %v2188
      %v2300 = vpop.f32.mrf.mxu0
      %v2301 = vadd.f32 %v2092, %v2300
      %2302 = vmatmul.f32.gmra.mxu0 %v2191
      %v2303 = vpop.f32.mrf.mxu0
      %v2304 = vadd.f32 %v2095, %v2303
      %2305 = vmatmul.f32.gmra.mxu0 %v2194
      %v2306 = vpop.f32.mrf.mxu0
      %v2307 = vadd.f32 %v2098, %v2306
      %2308 = vmatmul.f32.gmra.mxu0 %v2197
      %v2309 = vpop.f32.mrf.mxu0
      %v2310 = vadd.f32 %v2101, %v2309
      %2311 = vmatmul.f32.gmra.mxu0 %v2200
      %v2312 = vpop.f32.mrf.mxu0
      %v2313 = vadd.f32 %v2104, %v2312
      %2314 = vmatmul.f32.gmra.mxu0 %v2203
      %v2315 = vpop.f32.mrf.mxu0
      %v2316 = vadd.f32 %v2107, %v2315
      %2317 = vmatmul.f32.gmra.mxu0 %v2206
      %v2318 = vpop.f32.mrf.mxu0
      %v2319 = vadd.f32 %v2110, %v2318
      %2320 = vmatmul.f32.gmra.mxu0 %v2209
      %v2321 = vpop.f32.mrf.mxu0
      %v2322 = vadd.f32 %v2113, %v2321
      %2323 = vmatmul.f32.gmra.mxu0 %v2212
      %v2324 = vpop.f32.mrf.mxu0
      %v2325 = vadd.f32 %v2116, %v2324
      %2326 = vmatmul.f32.gmra.mxu0 %v2215
      %v2327 = vpop.f32.mrf.mxu0
      %v2328 = vadd.f32 %v2119, %v2327
      %2329 = vmatmul.f32.gmra.mxu0 %v2218
      %v2330 = vpop.f32.mrf.mxu0
      %v2331 = vadd.f32 %v2122, %v2330
      %2332 = vmatmul.f32.gmra.mxu0 %v2221
      %v2333 = vpop.f32.mrf.mxu0
      %v2334 = vadd.f32 %v2125, %v2333
      %2335 = vmatmul.f32.gmra.mxu0 %v2224
      %v2336 = vpop.f32.mrf.mxu0
      %v2337 = vadd.f32 %v2128, %v2336
      %2338 = vmatmul.f32.gmra.mxu0 %v2227
      %v2339 = vpop.f32.mrf.mxu0
      %v2340 = vadd.f32 %v2131, %v2339
      %2341 = vmatmul.f32.gmra.mxu0 %v2230
      %v2342 = vpop.f32.mrf.mxu0
      %v2343 = vadd.f32 %v2134, %v2342
      %2344 = vmatmul.f32.gmra.mxu0 %v2233
      %v2345 = vpop.f32.mrf.mxu0
      %v2346 = vadd.f32 %v2137, %v2345
      %2347 = vmatmul.f32.gmra.mxu0 %v2236
      %v2348 = vpop.f32.mrf.mxu0
      %v2349 = vadd.f32 %v2140, %v2348
      %2350 = vmatmul.f32.gmra.mxu0 %v2239
      %v2351 = vpop.f32.mrf.mxu0
      %v2352 = vadd.f32 %v2143, %v2351
      %2353 = vmatmul.f32.gmra.mxu0 %v2242
      %v2354 = vpop.f32.mrf.mxu0
      %v2355 = vadd.f32 %v2146, %v2354
      %2356 = vmatmul.f32.gmra.mxu0 %v2245
      %v2357 = vpop.f32.mrf.mxu0
      %v2358 = vadd.f32 %v2149, %v2357
      %2359 = vmatmul.f32.gmra.mxu0 %v2248
      %v2360 = vpop.f32.mrf.mxu0
      %v2361 = vadd.f32 %v2152, %v2360
      %2362 = vmatmul.f32.gmra.mxu0 %v2251
      %v2363 = vpop.f32.mrf.mxu0
      %v2364 = vadd.f32 %v2155, %v2363
      %2365 = vdwg.mxu0
      %v2366 = vld [vmem:[#allocation3 + $0x9] sm:$0xff]
      %v2367 = vld [vmem:[#allocation3 + $0x11] sm:$0xff]
      %v2368 = vld [vmem:[#allocation3 + $0x29] sm:$0xff]
      %v2369 = vld [vmem:[#allocation3 + $0x31] sm:$0xff]
      %v2370 = vld [vmem:[#allocation3 + $0x49] sm:$0xff]
      %v2371 = vld [vmem:[#allocation3 + $0x51] sm:$0xff]
      %v2372 = vld [vmem:[#allocation3 + $0x69] sm:$0xff]
      %v2373 = vld [vmem:[#allocation3 + $0x71] sm:$0xff]
      %v2374 = vld [vmem:[#allocation3 + $0x89] sm:$0xff]
      %v2375 = vld [vmem:[#allocation3 + $0x91] sm:$0xff]
      %v2376 = vld [vmem:[#allocation3 + $0xa9] sm:$0xff]
      %v2377 = vld [vmem:[#allocation3 + $0xb1] sm:$0xff]
      %v2378 = vld [vmem:[#allocation3 + $0xc9] sm:$0xff]
      %v2379 = vld [vmem:[#allocation3 + $0xd1] sm:$0xff]
      %v2380 = vld [vmem:[#allocation3 + $0xe9] sm:$0xff]
      %v2381 = vld [vmem:[#allocation3 + $0xf1] sm:$0xff]
      %v2382 = vld [vmem:[#allocation3 + $0x109] sm:$0xff]
      %v2383 = vld [vmem:[#allocation3 + $0x111] sm:$0xff]
      %v2384 = vld [vmem:[#allocation3 + $0x129] sm:$0xff]
      %v2385 = vld [vmem:[#allocation3 + $0x131] sm:$0xff]
      %v2386 = vld [vmem:[#allocation3 + $0x149] sm:$0xff]
      %v2387 = vld [vmem:[#allocation3 + $0x151] sm:$0xff]
      %v2388 = vld [vmem:[#allocation3 + $0x169] sm:$0xff]
      %v2389 = vld [vmem:[#allocation3 + $0x171] sm:$0xff]
      %v2390 = vld [vmem:[#allocation3 + $0x189] sm:$0xff]
      %v2391 = vld [vmem:[#allocation3 + $0x191] sm:$0xff]
      %v2392 = vld [vmem:[#allocation3 + $0x1a9] sm:$0xff]
      %v2393 = vld [vmem:[#allocation3 + $0x1b1] sm:$0xff]
      %v2394 = vld [vmem:[#allocation3 + $0x1c9] sm:$0xff]
      %v2395 = vld [vmem:[#allocation3 + $0x1d1] sm:$0xff]
      %v2396 = vld [vmem:[#allocation3 + $0x1e9] sm:$0xff]
      %v2397 = vld [vmem:[#allocation3 + $0x1f1] sm:$0xff]
      %s2398 = scalar_lea.vmem %s3, 32
      %v2399 = vld [vmem:[%s2398] sm:$0xff]
      %v2400 = vld [vmem:[%s2398 + $0x8] sm:$0xff]
      %v2402 = vsel %vm1279, %v2366, 0
      %v2405 = vsel %vm1279, %v2367, 0
      %v2408 = vsel %vm1279, %v2368, 0
      %v2411 = vsel %vm1279, %v2369, 0
      %v2414 = vsel %vm1279, %v2370, 0
      %v2417 = vsel %vm1279, %v2371, 0
      %v2420 = vsel %vm1279, %v2372, 0
      %v2423 = vsel %vm1279, %v2373, 0
      %v2426 = vsel %vm1279, %v2374, 0
      %v2429 = vsel %vm1279, %v2375, 0
      %v2432 = vsel %vm1279, %v2376, 0
      %v2435 = vsel %vm1279, %v2377, 0
      %v2438 = vsel %vm1279, %v2378, 0
      %v2441 = vsel %vm1279, %v2379, 0
      %v2444 = vsel %vm1279, %v2380, 0
      %v2447 = vsel %vm1279, %v2381, 0
      %v2450 = vsel %vm1279, %v2382, 0
      %v2453 = vsel %vm1279, %v2383, 0
      %v2456 = vsel %vm1279, %v2384, 0
      %v2459 = vsel %vm1279, %v2385, 0
      %v2462 = vsel %vm1279, %v2386, 0
      %v2465 = vsel %vm1279, %v2387, 0
      %v2468 = vsel %vm1279, %v2388, 0
      %v2471 = vsel %vm1279, %v2389, 0
      %v2474 = vsel %vm1279, %v2390, 0
      %v2477 = vsel %vm1279, %v2391, 0
      %v2480 = vsel %vm1279, %v2392, 0
      %v2483 = vsel %vm1279, %v2393, 0
      %v2486 = vsel %vm1279, %v2394, 0
      %v2489 = vsel %vm1279, %v2395, 0
      %v2492 = vsel %vm1279, %v2396, 0
      %v2495 = vsel %vm1279, %v2397, 0
      %2497 = vmatpush.msra.mxu0 0.0
      %2498 = vmatpush.msra.mxu0 0.0
      %2499 = vmatpush.msra.mxu0 0.0
      %2500 = vmatpush.msra.mxu0 0.0
      %2501 = vmatpush.msra.mxu0 0.0
      %2502 = vmatpush.msra.mxu0 0.0
      %2503 = vmatpush.msra.mxu0 0.0
      %2504 = vmatpush.msra.mxu0 0.0
      %2505 = vmatpush.msra.mxu0 0.0
      %2506 = vmatpush.msra.mxu0 0.0
      %2507 = vmatpush.msra.mxu0 0.0
      %2508 = vmatpush.msra.mxu0 0.0
      %2509 = vmatpush.msra.mxu0 0.0
      %2510 = vmatpush.msra.mxu0 0.0
      %2511 = vmatpush.msra.mxu0 %v2400
      %2512 = vmatpush.msra.mxu0 %v2399
      %2513 = vmatmul.f32.gmra.mxu0 %v2402
      %v2514 = vpop.f32.mrf.mxu0
      %v2515 = vadd.f32 0.0, %v2514
      %2516 = vmatmul.f32.gmra.mxu0 %v2405
      %v2517 = vpop.f32.mrf.mxu0
      %v2518 = vadd.f32 0.0, %v2517
      %2519 = vmatmul.f32.gmra.mxu0 %v2408
      %v2520 = vpop.f32.mrf.mxu0
      %v2521 = vadd.f32 0.0, %v2520
      %2522 = vmatmul.f32.gmra.mxu0 %v2411
      %v2523 = vpop.f32.mrf.mxu0
      %v2524 = vadd.f32 0.0, %v2523
      %2525 = vmatmul.f32.gmra.mxu0 %v2414
      %v2526 = vpop.f32.mrf.mxu0
      %v2527 = vadd.f32 0.0, %v2526
      %2528 = vmatmul.f32.gmra.mxu0 %v2417
      %v2529 = vpop.f32.mrf.mxu0
      %v2530 = vadd.f32 0.0, %v2529
      %2531 = vmatmul.f32.gmra.mxu0 %v2420
      %v2532 = vpop.f32.mrf.mxu0
      %v2533 = vadd.f32 0.0, %v2532
      %2534 = vmatmul.f32.gmra.mxu0 %v2423
      %v2535 = vpop.f32.mrf.mxu0
      %v2536 = vadd.f32 0.0, %v2535
      %2537 = vmatmul.f32.gmra.mxu0 %v2426
      %v2538 = vpop.f32.mrf.mxu0
      %v2539 = vadd.f32 0.0, %v2538
      %2540 = vmatmul.f32.gmra.mxu0 %v2429
      %v2541 = vpop.f32.mrf.mxu0
      %v2542 = vadd.f32 0.0, %v2541
      %2543 = vmatmul.f32.gmra.mxu0 %v2432
      %v2544 = vpop.f32.mrf.mxu0
      %v2545 = vadd.f32 0.0, %v2544
      %2546 = vmatmul.f32.gmra.mxu0 %v2435
      %v2547 = vpop.f32.mrf.mxu0
      %v2548 = vadd.f32 0.0, %v2547
      %2549 = vmatmul.f32.gmra.mxu0 %v2438
      %v2550 = vpop.f32.mrf.mxu0
      %v2551 = vadd.f32 0.0, %v2550
      %2552 = vmatmul.f32.gmra.mxu0 %v2441
      %v2553 = vpop.f32.mrf.mxu0
      %v2554 = vadd.f32 0.0, %v2553
      %2555 = vmatmul.f32.gmra.mxu0 %v2444
      %v2556 = vpop.f32.mrf.mxu0
      %v2557 = vadd.f32 0.0, %v2556
      %2558 = vmatmul.f32.gmra.mxu0 %v2447
      %v2559 = vpop.f32.mrf.mxu0
      %v2560 = vadd.f32 0.0, %v2559
      %2561 = vmatmul.f32.gmra.mxu0 %v2450
      %v2562 = vpop.f32.mrf.mxu0
      %v2563 = vadd.f32 0.0, %v2562
      %2564 = vmatmul.f32.gmra.mxu0 %v2453
      %v2565 = vpop.f32.mrf.mxu0
      %v2566 = vadd.f32 0.0, %v2565
      %2567 = vmatmul.f32.gmra.mxu0 %v2456
      %v2568 = vpop.f32.mrf.mxu0
      %v2569 = vadd.f32 0.0, %v2568
      %2570 = vmatmul.f32.gmra.mxu0 %v2459
      %v2571 = vpop.f32.mrf.mxu0
      %v2572 = vadd.f32 0.0, %v2571
      %2573 = vmatmul.f32.gmra.mxu0 %v2462
      %v2574 = vpop.f32.mrf.mxu0
      %v2575 = vadd.f32 0.0, %v2574
      %2576 = vmatmul.f32.gmra.mxu0 %v2465
      %v2577 = vpop.f32.mrf.mxu0
      %v2578 = vadd.f32 0.0, %v2577
      %2579 = vmatmul.f32.gmra.mxu0 %v2468
      %v2580 = vpop.f32.mrf.mxu0
      %v2581 = vadd.f32 0.0, %v2580
      %2582 = vmatmul.f32.gmra.mxu0 %v2471
      %v2583 = vpop.f32.mrf.mxu0
      %v2584 = vadd.f32 0.0, %v2583
      %2585 = vmatmul.f32.gmra.mxu0 %v2474
      %v2586 = vpop.f32.mrf.mxu0
      %v2587 = vadd.f32 0.0, %v2586
      %2588 = vmatmul.f32.gmra.mxu0 %v2477
      %v2589 = vpop.f32.mrf.mxu0
      %v2590 = vadd.f32 0.0, %v2589
      %2591 = vmatmul.f32.gmra.mxu0 %v2480
      %v2592 = vpop.f32.mrf.mxu0
      %v2593 = vadd.f32 0.0, %v2592
      %2594 = vmatmul.f32.gmra.mxu0 %v2483
      %v2595 = vpop.f32.mrf.mxu0
      %v2596 = vadd.f32 0.0, %v2595
      %2597 = vmatmul.f32.gmra.mxu0 %v2486
      %v2598 = vpop.f32.mrf.mxu0
      %v2599 = vadd.f32 0.0, %v2598
      %2600 = vmatmul.f32.gmra.mxu0 %v2489
      %v2601 = vpop.f32.mrf.mxu0
      %v2602 = vadd.f32 0.0, %v2601
      %2603 = vmatmul.f32.gmra.mxu0 %v2492
      %v2604 = vpop.f32.mrf.mxu0
      %v2605 = vadd.f32 0.0, %v2604
      %2606 = vmatmul.f32.gmra.mxu0 %v2495
      %v2607 = vpop.f32.mrf.mxu0
      %v2608 = vadd.f32 0.0, %v2607
      %2609 = vdwg.mxu0
      %v2610 = vadd.f32 %v2271, %v2515
      %v2611 = vadd.f32 %v2274, %v2518
      %v2612 = vadd.f32 %v2277, %v2521
      %v2613 = vadd.f32 %v2280, %v2524
      %v2614 = vadd.f32 %v2283, %v2527
      %v2615 = vadd.f32 %v2286, %v2530
      %v2616 = vadd.f32 %v2289, %v2533
      %v2617 = vadd.f32 %v2292, %v2536
      %v2618 = vadd.f32 %v2295, %v2539
      %v2619 = vadd.f32 %v2298, %v2542
      %v2620 = vadd.f32 %v2301, %v2545
      %v2621 = vadd.f32 %v2304, %v2548
      %v2622 = vadd.f32 %v2307, %v2551
      %v2623 = vadd.f32 %v2310, %v2554
      %v2624 = vadd.f32 %v2313, %v2557
      %v2625 = vadd.f32 %v2316, %v2560
      %v2626 = vadd.f32 %v2319, %v2563
      %v2627 = vadd.f32 %v2322, %v2566
      %v2628 = vadd.f32 %v2325, %v2569
      %v2629 = vadd.f32 %v2328, %v2572
      %v2630 = vadd.f32 %v2331, %v2575
      %v2631 = vadd.f32 %v2334, %v2578
      %v2632 = vadd.f32 %v2337, %v2581
      %v2633 = vadd.f32 %v2340, %v2584
      %v2634 = vadd.f32 %v2343, %v2587
      %v2635 = vadd.f32 %v2346, %v2590
      %v2636 = vadd.f32 %v2349, %v2593
      %v2637 = vadd.f32 %v2352, %v2596
      %v2638 = vadd.f32 %v2355, %v2599
      %v2639 = vadd.f32 %v2358, %v2602
      %v2640 = vadd.f32 %v2361, %v2605
      %v2641 = vadd.f32 %v2364, %v2608
      %v2642 = vld [vmem:[%s1801 + $0x7] sm:$0xff]
      %v2643 = vld [vmem:[%s1801 + $0xf] sm:$0xff]
      %v2644 = vld [vmem:[%s1801 + $0x27] sm:$0xff]
      %v2645 = vld [vmem:[%s1801 + $0x2f] sm:$0xff]
      %v2646 = vld [vmem:[%s1801 + $0x47] sm:$0xff]
      %v2647 = vld [vmem:[%s1801 + $0x4f] sm:$0xff]
      %v2648 = vld [vmem:[%s1801 + $0x67] sm:$0xff]
      %v2649 = vld [vmem:[%s1801 + $0x6f] sm:$0xff]
      %v2650 = vld [vmem:[%s1801 + $0x87] sm:$0xff]
      %v2651 = vld [vmem:[%s1801 + $0x8f] sm:$0xff]
      %v2652 = vld [vmem:[%s1801 + $0xa7] sm:$0xff]
      %v2653 = vld [vmem:[%s1801 + $0xaf] sm:$0xff]
      %v2654 = vld [vmem:[%s1801 + $0xc7] sm:$0xff]
      %v2655 = vld [vmem:[%s1801 + $0xcf] sm:$0xff]
      %v2656 = vld [vmem:[%s1801 + $0xe7] sm:$0xff]
      %v2657 = vld [vmem:[%s1801 + $0xef] sm:$0xff]
      %v2658 = vld [vmem:[%s1801 + $0x107] sm:$0xff]
      %v2659 = vld [vmem:[%s1801 + $0x10f] sm:$0xff]
      %v2660 = vld [vmem:[%s1801 + $0x127] sm:$0xff]
      %v2661 = vld [vmem:[%s1801 + $0x12f] sm:$0xff]
      %v2662 = vld [vmem:[%s1801 + $0x147] sm:$0xff]
      %v2663 = vld [vmem:[%s1801 + $0x14f] sm:$0xff]
      %v2664 = vld [vmem:[%s1801 + $0x167] sm:$0xff]
      %v2665 = vld [vmem:[%s1801 + $0x16f] sm:$0xff]
      %v2666 = vld [vmem:[%s1801 + $0x187] sm:$0xff]
      %v2667 = vld [vmem:[%s1801 + $0x18f] sm:$0xff]
      %v2668 = vld [vmem:[%s1801 + $0x1a7] sm:$0xff]
      %v2669 = vld [vmem:[%s1801 + $0x1af] sm:$0xff]
      %v2670 = vld [vmem:[%s1801 + $0x1c7] sm:$0xff]
      %v2671 = vld [vmem:[%s1801 + $0x1cf] sm:$0xff]
      %v2672 = vld [vmem:[%s1801 + $0x1e7] sm:$0xff]
      %v2673 = vld [vmem:[%s1801 + $0x1ef] sm:$0xff]
      %s2674 = scalar_lea.vmem %s3, 48
      %v2675 = vld [vmem:[%s2674] sm:$0xff]
      %v2676 = vld [vmem:[%s2674 + $0x8] sm:$0xff]
      %v2678 = vsel %vm1279, %v2642, 0
      %v2681 = vsel %vm1279, %v2643, 0
      %v2684 = vsel %vm1279, %v2644, 0
      %v2687 = vsel %vm1279, %v2645, 0
      %v2690 = vsel %vm1279, %v2646, 0
      %v2693 = vsel %vm1279, %v2647, 0
      %v2696 = vsel %vm1279, %v2648, 0
      %v2699 = vsel %vm1279, %v2649, 0
      %v2702 = vsel %vm1279, %v2650, 0
      %v2705 = vsel %vm1279, %v2651, 0
      %v2708 = vsel %vm1279, %v2652, 0
      %v2711 = vsel %vm1279, %v2653, 0
      %v2714 = vsel %vm1279, %v2654, 0
      %v2717 = vsel %vm1279, %v2655, 0
      %v2720 = vsel %vm1279, %v2656, 0
      %v2723 = vsel %vm1279, %v2657, 0
      %v2726 = vsel %vm1279, %v2658, 0
      %v2729 = vsel %vm1279, %v2659, 0
      %v2732 = vsel %vm1279, %v2660, 0
      %v2735 = vsel %vm1279, %v2661, 0
      %v2738 = vsel %vm1279, %v2662, 0
      %v2741 = vsel %vm1279, %v2663, 0
      %v2744 = vsel %vm1279, %v2664, 0
      %v2747 = vsel %vm1279, %v2665, 0
      %v2750 = vsel %vm1279, %v2666, 0
      %v2753 = vsel %vm1279, %v2667, 0
      %v2756 = vsel %vm1279, %v2668, 0
      %v2759 = vsel %vm1279, %v2669, 0
      %v2762 = vsel %vm1279, %v2670, 0
      %v2765 = vsel %vm1279, %v2671, 0
      %v2768 = vsel %vm1279, %v2672, 0
      %v2771 = vsel %vm1279, %v2673, 0
      %2773 = vmatpush.msra.mxu0 0.0
      %2774 = vmatpush.msra.mxu0 0.0
      %2775 = vmatpush.msra.mxu0 0.0
      %2776 = vmatpush.msra.mxu0 0.0
      %2777 = vmatpush.msra.mxu0 0.0
      %2778 = vmatpush.msra.mxu0 0.0
      %2779 = vmatpush.msra.mxu0 0.0
      %2780 = vmatpush.msra.mxu0 0.0
      %2781 = vmatpush.msra.mxu0 0.0
      %2782 = vmatpush.msra.mxu0 0.0
      %2783 = vmatpush.msra.mxu0 0.0
      %2784 = vmatpush.msra.mxu0 0.0
      %2785 = vmatpush.msra.mxu0 0.0
      %2786 = vmatpush.msra.mxu0 0.0
      %2787 = vmatpush.msra.mxu0 %v2676
      %2788 = vmatpush.msra.mxu0 %v2675
      %2789 = vmatmul.f32.gmra.mxu0 %v2678
      %v2790 = vpop.f32.mrf.mxu0
      %v2791 = vadd.f32 0.0, %v2790
      %2792 = vmatmul.f32.gmra.mxu0 %v2681
      %v2793 = vpop.f32.mrf.mxu0
      %v2794 = vadd.f32 0.0, %v2793
      %2795 = vmatmul.f32.gmra.mxu0 %v2684
      %v2796 = vpop.f32.mrf.mxu0
      %v2797 = vadd.f32 0.0, %v2796
      %2798 = vmatmul.f32.gmra.mxu0 %v2687
      %v2799 = vpop.f32.mrf.mxu0
      %v2800 = vadd.f32 0.0, %v2799
      %2801 = vmatmul.f32.gmra.mxu0 %v2690
      %v2802 = vpop.f32.mrf.mxu0
      %v2803 = vadd.f32 0.0, %v2802
      %2804 = vmatmul.f32.gmra.mxu0 %v2693
      %v2805 = vpop.f32.mrf.mxu0
      %v2806 = vadd.f32 0.0, %v2805
      %2807 = vmatmul.f32.gmra.mxu0 %v2696
      %v2808 = vpop.f32.mrf.mxu0
      %v2809 = vadd.f32 0.0, %v2808
      %2810 = vmatmul.f32.gmra.mxu0 %v2699
      %v2811 = vpop.f32.mrf.mxu0
      %v2812 = vadd.f32 0.0, %v2811
      %2813 = vmatmul.f32.gmra.mxu0 %v2702
      %v2814 = vpop.f32.mrf.mxu0
      %v2815 = vadd.f32 0.0, %v2814
      %2816 = vmatmul.f32.gmra.mxu0 %v2705
      %v2817 = vpop.f32.mrf.mxu0
      %v2818 = vadd.f32 0.0, %v2817
      %2819 = vmatmul.f32.gmra.mxu0 %v2708
      %v2820 = vpop.f32.mrf.mxu0
      %v2821 = vadd.f32 0.0, %v2820
      %2822 = vmatmul.f32.gmra.mxu0 %v2711
      %v2823 = vpop.f32.mrf.mxu0
      %v2824 = vadd.f32 0.0, %v2823
      %2825 = vmatmul.f32.gmra.mxu0 %v2714
      %v2826 = vpop.f32.mrf.mxu0
      %v2827 = vadd.f32 0.0, %v2826
      %2828 = vmatmul.f32.gmra.mxu0 %v2717
      %v2829 = vpop.f32.mrf.mxu0
      %v2830 = vadd.f32 0.0, %v2829
      %2831 = vmatmul.f32.gmra.mxu0 %v2720
      %v2832 = vpop.f32.mrf.mxu0
      %v2833 = vadd.f32 0.0, %v2832
      %2834 = vmatmul.f32.gmra.mxu0 %v2723
      %v2835 = vpop.f32.mrf.mxu0
      %v2836 = vadd.f32 0.0, %v2835
      %2837 = vmatmul.f32.gmra.mxu0 %v2726
      %v2838 = vpop.f32.mrf.mxu0
      %v2839 = vadd.f32 0.0, %v2838
      %2840 = vmatmul.f32.gmra.mxu0 %v2729
      %v2841 = vpop.f32.mrf.mxu0
      %v2842 = vadd.f32 0.0, %v2841
      %2843 = vmatmul.f32.gmra.mxu0 %v2732
      %v2844 = vpop.f32.mrf.mxu0
      %v2845 = vadd.f32 0.0, %v2844
      %2846 = vmatmul.f32.gmra.mxu0 %v2735
      %v2847 = vpop.f32.mrf.mxu0
      %v2848 = vadd.f32 0.0, %v2847
      %2849 = vmatmul.f32.gmra.mxu0 %v2738
      %v2850 = vpop.f32.mrf.mxu0
      %v2851 = vadd.f32 0.0, %v2850
      %2852 = vmatmul.f32.gmra.mxu0 %v2741
      %v2853 = vpop.f32.mrf.mxu0
      %v2854 = vadd.f32 0.0, %v2853
      %2855 = vmatmul.f32.gmra.mxu0 %v2744
      %v2856 = vpop.f32.mrf.mxu0
      %v2857 = vadd.f32 0.0, %v2856
      %2858 = vmatmul.f32.gmra.mxu0 %v2747
      %v2859 = vpop.f32.mrf.mxu0
      %v2860 = vadd.f32 0.0, %v2859
      %2861 = vmatmul.f32.gmra.mxu0 %v2750
      %v2862 = vpop.f32.mrf.mxu0
      %v2863 = vadd.f32 0.0, %v2862
      %2864 = vmatmul.f32.gmra.mxu0 %v2753
      %v2865 = vpop.f32.mrf.mxu0
      %v2866 = vadd.f32 0.0, %v2865
      %2867 = vmatmul.f32.gmra.mxu0 %v2756
      %v2868 = vpop.f32.mrf.mxu0
      %v2869 = vadd.f32 0.0, %v2868
      %2870 = vmatmul.f32.gmra.mxu0 %v2759
      %v2871 = vpop.f32.mrf.mxu0
      %v2872 = vadd.f32 0.0, %v2871
      %2873 = vmatmul.f32.gmra.mxu0 %v2762
      %v2874 = vpop.f32.mrf.mxu0
      %v2875 = vadd.f32 0.0, %v2874
      %2876 = vmatmul.f32.gmra.mxu0 %v2765
      %v2877 = vpop.f32.mrf.mxu0
      %v2878 = vadd.f32 0.0, %v2877
      %2879 = vmatmul.f32.gmra.mxu0 %v2768
      %v2880 = vpop.f32.mrf.mxu0
      %v2881 = vadd.f32 0.0, %v2880
      %2882 = vmatmul.f32.gmra.mxu0 %v2771
      %v2883 = vpop.f32.mrf.mxu0
      %v2884 = vadd.f32 0.0, %v2883
      %2885 = vdwg.mxu0
      %v2886 = vadd.f32 %v2610, %v2791
      %v2887 = vadd.f32 %v2611, %v2794
      %v2888 = vadd.f32 %v2612, %v2797
      %v2889 = vadd.f32 %v2613, %v2800
      %v2890 = vadd.f32 %v2614, %v2803
      %v2891 = vadd.f32 %v2615, %v2806
      %v2892 = vadd.f32 %v2616, %v2809
      %v2893 = vadd.f32 %v2617, %v2812
      %v2894 = vadd.f32 %v2618, %v2815
      %v2895 = vadd.f32 %v2619, %v2818
      %v2896 = vadd.f32 %v2620, %v2821
      %v2897 = vadd.f32 %v2621, %v2824
      %v2898 = vadd.f32 %v2622, %v2827
      %v2899 = vadd.f32 %v2623, %v2830
      %v2900 = vadd.f32 %v2624, %v2833
      %v2901 = vadd.f32 %v2625, %v2836
      %v2902 = vadd.f32 %v2626, %v2839
      %v2903 = vadd.f32 %v2627, %v2842
      %v2904 = vadd.f32 %v2628, %v2845
      %v2905 = vadd.f32 %v2629, %v2848
      %v2906 = vadd.f32 %v2630, %v2851
      %v2907 = vadd.f32 %v2631, %v2854
      %v2908 = vadd.f32 %v2632, %v2857
      %v2909 = vadd.f32 %v2633, %v2860
      %v2910 = vadd.f32 %v2634, %v2863
      %v2911 = vadd.f32 %v2635, %v2866
      %v2912 = vadd.f32 %v2636, %v2869
      %v2913 = vadd.f32 %v2637, %v2872
      %v2914 = vadd.f32 %v2638, %v2875
      %v2915 = vadd.f32 %v2639, %v2878
      %v2916 = vadd.f32 %v2640, %v2881
      %v2917 = vadd.f32 %v2641, %v2884
      %v2918 = vld [vmem:[%s1801 + $0x8] sm:$0xff]
      %v2919 = vld [vmem:[%s1801 + $0x10] sm:$0xff]
      %v2920 = vld [vmem:[%s1801 + $0x28] sm:$0xff]
      %v2921 = vld [vmem:[%s1801 + $0x30] sm:$0xff]
      %v2922 = vld [vmem:[%s1801 + $0x48] sm:$0xff]
      %v2923 = vld [vmem:[%s1801 + $0x50] sm:$0xff]
      %v2924 = vld [vmem:[%s1801 + $0x68] sm:$0xff]
      %v2925 = vld [vmem:[%s1801 + $0x70] sm:$0xff]
      %v2926 = vld [vmem:[%s1801 + $0x88] sm:$0xff]
      %v2927 = vld [vmem:[%s1801 + $0x90] sm:$0xff]
      %v2928 = vld [vmem:[%s1801 + $0xa8] sm:$0xff]
      %v2929 = vld [vmem:[%s1801 + $0xb0] sm:$0xff]
      %v2930 = vld [vmem:[%s1801 + $0xc8] sm:$0xff]
      %v2931 = vld [vmem:[%s1801 + $0xd0] sm:$0xff]
      %v2932 = vld [vmem:[%s1801 + $0xe8] sm:$0xff]
      %v2933 = vld [vmem:[%s1801 + $0xf0] sm:$0xff]
      %v2934 = vld [vmem:[%s1801 + $0x108] sm:$0xff]
      %v2935 = vld [vmem:[%s1801 + $0x110] sm:$0xff]
      %v2936 = vld [vmem:[%s1801 + $0x128] sm:$0xff]
      %v2937 = vld [vmem:[%s1801 + $0x130] sm:$0xff]
      %v2938 = vld [vmem:[%s1801 + $0x148] sm:$0xff]
      %v2939 = vld [vmem:[%s1801 + $0x150] sm:$0xff]
      %v2940 = vld [vmem:[%s1801 + $0x168] sm:$0xff]
      %v2941 = vld [vmem:[%s1801 + $0x170] sm:$0xff]
      %v2942 = vld [vmem:[%s1801 + $0x188] sm:$0xff]
      %v2943 = vld [vmem:[%s1801 + $0x190] sm:$0xff]
      %v2944 = vld [vmem:[%s1801 + $0x1a8] sm:$0xff]
      %v2945 = vld [vmem:[%s1801 + $0x1b0] sm:$0xff]
      %v2946 = vld [vmem:[%s1801 + $0x1c8] sm:$0xff]
      %v2947 = vld [vmem:[%s1801 + $0x1d0] sm:$0xff]
      %v2948 = vld [vmem:[%s1801 + $0x1e8] sm:$0xff]
      %v2949 = vld [vmem:[%s1801 + $0x1f0] sm:$0xff]
      %s2950 = scalar_lea.vmem %s3, 64
      %v2951 = vld [vmem:[%s2950] sm:$0xff]
      %v2952 = vld [vmem:[%s2950 + $0x8] sm:$0xff]
      %v2954 = vsel %vm1279, %v2918, 0
      %v2957 = vsel %vm1279, %v2919, 0
      %v2960 = vsel %vm1279, %v2920, 0
      %v2963 = vsel %vm1279, %v2921, 0
      %v2966 = vsel %vm1279, %v2922, 0
      %v2969 = vsel %vm1279, %v2923, 0
      %v2972 = vsel %vm1279, %v2924, 0
      %v2975 = vsel %vm1279, %v2925, 0
      %v2978 = vsel %vm1279, %v2926, 0
      %v2981 = vsel %vm1279, %v2927, 0
      %v2984 = vsel %vm1279, %v2928, 0
      %v2987 = vsel %vm1279, %v2929, 0
      %v2990 = vsel %vm1279, %v2930, 0
      %v2993 = vsel %vm1279, %v2931, 0
      %v2996 = vsel %vm1279, %v2932, 0
      %v2999 = vsel %vm1279, %v2933, 0
      %v3002 = vsel %vm1279, %v2934, 0
      %v3005 = vsel %vm1279, %v2935, 0
      %v3008 = vsel %vm1279, %v2936, 0
      %v3011 = vsel %vm1279, %v2937, 0
      %v3014 = vsel %vm1279, %v2938, 0
      %v3017 = vsel %vm1279, %v2939, 0
      %v3020 = vsel %vm1279, %v2940, 0
      %v3023 = vsel %vm1279, %v2941, 0
      %v3026 = vsel %vm1279, %v2942, 0
      %v3029 = vsel %vm1279, %v2943, 0
      %v3032 = vsel %vm1279, %v2944, 0
      %v3035 = vsel %vm1279, %v2945, 0
      %v3038 = vsel %vm1279, %v2946, 0
      %v3041 = vsel %vm1279, %v2947, 0
      %v3044 = vsel %vm1279, %v2948, 0
      %v3047 = vsel %vm1279, %v2949, 0
      %3049 = vmatpush.msra.mxu0 0.0
      %3050 = vmatpush.msra.mxu0 0.0
      %3051 = vmatpush.msra.mxu0 0.0
      %3052 = vmatpush.msra.mxu0 0.0
      %3053 = vmatpush.msra.mxu0 0.0
      %3054 = vmatpush.msra.mxu0 0.0
      %3055 = vmatpush.msra.mxu0 0.0
      %3056 = vmatpush.msra.mxu0 0.0
      %3057 = vmatpush.msra.mxu0 0.0
      %3058 = vmatpush.msra.mxu0 0.0
      %3059 = vmatpush.msra.mxu0 0.0
      %3060 = vmatpush.msra.mxu0 0.0
      %3061 = vmatpush.msra.mxu0 0.0
      %3062 = vmatpush.msra.mxu0 0.0
      %3063 = vmatpush.msra.mxu0 %v2952
      %3064 = vmatpush.msra.mxu0 %v2951
      %3065 = vmatmul.f32.gmra.mxu0 %v2954
      %v3066 = vpop.f32.mrf.mxu0
      %v3067 = vadd.f32 0.0, %v3066
      %3068 = vmatmul.f32.gmra.mxu0 %v2957
      %v3069 = vpop.f32.mrf.mxu0
      %v3070 = vadd.f32 0.0, %v3069
      %3071 = vmatmul.f32.gmra.mxu0 %v2960
      %v3072 = vpop.f32.mrf.mxu0
      %v3073 = vadd.f32 0.0, %v3072
      %3074 = vmatmul.f32.gmra.mxu0 %v2963
      %v3075 = vpop.f32.mrf.mxu0
      %v3076 = vadd.f32 0.0, %v3075
      %3077 = vmatmul.f32.gmra.mxu0 %v2966
      %v3078 = vpop.f32.mrf.mxu0
      %v3079 = vadd.f32 0.0, %v3078
      %3080 = vmatmul.f32.gmra.mxu0 %v2969
      %v3081 = vpop.f32.mrf.mxu0
      %v3082 = vadd.f32 0.0, %v3081
      %3083 = vmatmul.f32.gmra.mxu0 %v2972
      %v3084 = vpop.f32.mrf.mxu0
      %v3085 = vadd.f32 0.0, %v3084
      %3086 = vmatmul.f32.gmra.mxu0 %v2975
      %v3087 = vpop.f32.mrf.mxu0
      %v3088 = vadd.f32 0.0, %v3087
      %3089 = vmatmul.f32.gmra.mxu0 %v2978
      %v3090 = vpop.f32.mrf.mxu0
      %v3091 = vadd.f32 0.0, %v3090
      %3092 = vmatmul.f32.gmra.mxu0 %v2981
      %v3093 = vpop.f32.mrf.mxu0
      %v3094 = vadd.f32 0.0, %v3093
      %3095 = vmatmul.f32.gmra.mxu0 %v2984
      %v3096 = vpop.f32.mrf.mxu0
      %v3097 = vadd.f32 0.0, %v3096
      %3098 = vmatmul.f32.gmra.mxu0 %v2987
      %v3099 = vpop.f32.mrf.mxu0
      %v3100 = vadd.f32 0.0, %v3099
      %3101 = vmatmul.f32.gmra.mxu0 %v2990
      %v3102 = vpop.f32.mrf.mxu0
      %v3103 = vadd.f32 0.0, %v3102
      %3104 = vmatmul.f32.gmra.mxu0 %v2993
      %v3105 = vpop.f32.mrf.mxu0
      %v3106 = vadd.f32 0.0, %v3105
      %3107 = vmatmul.f32.gmra.mxu0 %v2996
      %v3108 = vpop.f32.mrf.mxu0
      %v3109 = vadd.f32 0.0, %v3108
      %3110 = vmatmul.f32.gmra.mxu0 %v2999
      %v3111 = vpop.f32.mrf.mxu0
      %v3112 = vadd.f32 0.0, %v3111
      %3113 = vmatmul.f32.gmra.mxu0 %v3002
      %v3114 = vpop.f32.mrf.mxu0
      %v3115 = vadd.f32 0.0, %v3114
      %3116 = vmatmul.f32.gmra.mxu0 %v3005
      %v3117 = vpop.f32.mrf.mxu0
      %v3118 = vadd.f32 0.0, %v3117
      %3119 = vmatmul.f32.gmra.mxu0 %v3008
      %v3120 = vpop.f32.mrf.mxu0
      %v3121 = vadd.f32 0.0, %v3120
      %3122 = vmatmul.f32.gmra.mxu0 %v3011
      %v3123 = vpop.f32.mrf.mxu0
      %v3124 = vadd.f32 0.0, %v3123
      %3125 = vmatmul.f32.gmra.mxu0 %v3014
      %v3126 = vpop.f32.mrf.mxu0
      %v3127 = vadd.f32 0.0, %v3126
      %3128 = vmatmul.f32.gmra.mxu0 %v3017
      %v3129 = vpop.f32.mrf.mxu0
      %v3130 = vadd.f32 0.0, %v3129
      %3131 = vmatmul.f32.gmra.mxu0 %v3020
      %v3132 = vpop.f32.mrf.mxu0
      %v3133 = vadd.f32 0.0, %v3132
      %3134 = vmatmul.f32.gmra.mxu0 %v3023
      %v3135 = vpop.f32.mrf.mxu0
      %v3136 = vadd.f32 0.0, %v3135
      %3137 = vmatmul.f32.gmra.mxu0 %v3026
      %v3138 = vpop.f32.mrf.mxu0
      %v3139 = vadd.f32 0.0, %v3138
      %3140 = vmatmul.f32.gmra.mxu0 %v3029
      %v3141 = vpop.f32.mrf.mxu0
      %v3142 = vadd.f32 0.0, %v3141
      %3143 = vmatmul.f32.gmra.mxu0 %v3032
      %v3144 = vpop.f32.mrf.mxu0
      %v3145 = vadd.f32 0.0, %v3144
      %3146 = vmatmul.f32.gmra.mxu0 %v3035
      %v3147 = vpop.f32.mrf.mxu0
      %v3148 = vadd.f32 0.0, %v3147
      %3149 = vmatmul.f32.gmra.mxu0 %v3038
      %v3150 = vpop.f32.mrf.mxu0
      %v3151 = vadd.f32 0.0, %v3150
      %3152 = vmatmul.f32.gmra.mxu0 %v3041
      %v3153 = vpop.f32.mrf.mxu0
      %v3154 = vadd.f32 0.0, %v3153
      %3155 = vmatmul.f32.gmra.mxu0 %v3044
      %v3156 = vpop.f32.mrf.mxu0
      %v3157 = vadd.f32 0.0, %v3156
      %3158 = vmatmul.f32.gmra.mxu0 %v3047
      %v3159 = vpop.f32.mrf.mxu0
      %v3160 = vadd.f32 0.0, %v3159
      %3161 = vdwg.mxu0
      %v3162 = vadd.f32 %v2886, %v3067
      %v3163 = vadd.f32 %v2887, %v3070
      %v3164 = vadd.f32 %v2888, %v3073
      %v3165 = vadd.f32 %v2889, %v3076
      %v3166 = vadd.f32 %v2890, %v3079
      %v3167 = vadd.f32 %v2891, %v3082
      %v3168 = vadd.f32 %v2892, %v3085
      %v3169 = vadd.f32 %v2893, %v3088
      %v3170 = vadd.f32 %v2894, %v3091
      %v3171 = vadd.f32 %v2895, %v3094
      %v3172 = vadd.f32 %v2896, %v3097
      %v3173 = vadd.f32 %v2897, %v3100
      %v3174 = vadd.f32 %v2898, %v3103
      %v3175 = vadd.f32 %v2899, %v3106
      %v3176 = vadd.f32 %v2900, %v3109
      %v3177 = vadd.f32 %v2901, %v3112
      %v3178 = vadd.f32 %v2902, %v3115
      %v3179 = vadd.f32 %v2903, %v3118
      %v3180 = vadd.f32 %v2904, %v3121
      %v3181 = vadd.f32 %v2905, %v3124
      %v3182 = vadd.f32 %v2906, %v3127
      %v3183 = vadd.f32 %v2907, %v3130
      %v3184 = vadd.f32 %v2908, %v3133
      %v3185 = vadd.f32 %v2909, %v3136
      %v3186 = vadd.f32 %v2910, %v3139
      %v3187 = vadd.f32 %v2911, %v3142
      %v3188 = vadd.f32 %v2912, %v3145
      %v3189 = vadd.f32 %v2913, %v3148
      %v3190 = vadd.f32 %v2914, %v3151
      %v3191 = vadd.f32 %v2915, %v3154
      %v3192 = vadd.f32 %v2916, %v3157
      %v3193 = vadd.f32 %v2917, %v3160
      %v3194 = vld [vmem:[%s1801 + $0x9] sm:$0xff]
      %v3195 = vld [vmem:[%s1801 + $0x11] sm:$0xff]
      %v3196 = vld [vmem:[%s1801 + $0x29] sm:$0xff]
      %v3197 = vld [vmem:[%s1801 + $0x31] sm:$0xff]
      %v3198 = vld [vmem:[%s1801 + $0x49] sm:$0xff]
      %v3199 = vld [vmem:[%s1801 + $0x51] sm:$0xff]
      %v3200 = vld [vmem:[%s1801 + $0x69] sm:$0xff]
      %v3201 = vld [vmem:[%s1801 + $0x71] sm:$0xff]
      %v3202 = vld [vmem:[%s1801 + $0x89] sm:$0xff]
      %v3203 = vld [vmem:[%s1801 + $0x91] sm:$0xff]
      %v3204 = vld [vmem:[%s1801 + $0xa9] sm:$0xff]
      %v3205 = vld [vmem:[%s1801 + $0xb1] sm:$0xff]
      %v3206 = vld [vmem:[%s1801 + $0xc9] sm:$0xff]
      %v3207 = vld [vmem:[%s1801 + $0xd1] sm:$0xff]
      %v3208 = vld [vmem:[%s1801 + $0xe9] sm:$0xff]
      %v3209 = vld [vmem:[%s1801 + $0xf1] sm:$0xff]
      %v3210 = vld [vmem:[%s1801 + $0x109] sm:$0xff]
      %v3211 = vld [vmem:[%s1801 + $0x111] sm:$0xff]
      %v3212 = vld [vmem:[%s1801 + $0x129] sm:$0xff]
      %v3213 = vld [vmem:[%s1801 + $0x131] sm:$0xff]
      %v3214 = vld [vmem:[%s1801 + $0x149] sm:$0xff]
      %v3215 = vld [vmem:[%s1801 + $0x151] sm:$0xff]
      %v3216 = vld [vmem:[%s1801 + $0x169] sm:$0xff]
      %v3217 = vld [vmem:[%s1801 + $0x171] sm:$0xff]
      %v3218 = vld [vmem:[%s1801 + $0x189] sm:$0xff]
      %v3219 = vld [vmem:[%s1801 + $0x191] sm:$0xff]
      %v3220 = vld [vmem:[%s1801 + $0x1a9] sm:$0xff]
      %v3221 = vld [vmem:[%s1801 + $0x1b1] sm:$0xff]
      %v3222 = vld [vmem:[%s1801 + $0x1c9] sm:$0xff]
      %v3223 = vld [vmem:[%s1801 + $0x1d1] sm:$0xff]
      %v3224 = vld [vmem:[%s1801 + $0x1e9] sm:$0xff]
      %v3225 = vld [vmem:[%s1801 + $0x1f1] sm:$0xff]
      %s3226 = scalar_lea.vmem %s3, 80
      %v3227 = vld [vmem:[%s3226] sm:$0xff]
      %v3228 = vld [vmem:[%s3226 + $0x8] sm:$0xff]
      %v3230 = vsel %vm1279, %v3194, 0
      %v3233 = vsel %vm1279, %v3195, 0
      %v3236 = vsel %vm1279, %v3196, 0
      %v3239 = vsel %vm1279, %v3197, 0
      %v3242 = vsel %vm1279, %v3198, 0
      %v3245 = vsel %vm1279, %v3199, 0
      %v3248 = vsel %vm1279, %v3200, 0
      %v3251 = vsel %vm1279, %v3201, 0
      %v3254 = vsel %vm1279, %v3202, 0
      %v3257 = vsel %vm1279, %v3203, 0
      %v3260 = vsel %vm1279, %v3204, 0
      %v3263 = vsel %vm1279, %v3205, 0
      %v3266 = vsel %vm1279, %v3206, 0
      %v3269 = vsel %vm1279, %v3207, 0
      %v3272 = vsel %vm1279, %v3208, 0
      %v3275 = vsel %vm1279, %v3209, 0
      %v3278 = vsel %vm1279, %v3210, 0
      %v3281 = vsel %vm1279, %v3211, 0
      %v3284 = vsel %vm1279, %v3212, 0
      %v3287 = vsel %vm1279, %v3213, 0
      %v3290 = vsel %vm1279, %v3214, 0
      %v3293 = vsel %vm1279, %v3215, 0
      %v3296 = vsel %vm1279, %v3216, 0
      %v3299 = vsel %vm1279, %v3217, 0
      %v3302 = vsel %vm1279, %v3218, 0
      %v3305 = vsel %vm1279, %v3219, 0
      %v3308 = vsel %vm1279, %v3220, 0
      %v3311 = vsel %vm1279, %v3221, 0
      %v3314 = vsel %vm1279, %v3222, 0
      %v3317 = vsel %vm1279, %v3223, 0
      %v3320 = vsel %vm1279, %v3224, 0
      %v3323 = vsel %vm1279, %v3225, 0
      %3325 = vmatpush.msra.mxu0 0.0
      %3326 = vmatpush.msra.mxu0 0.0
      %3327 = vmatpush.msra.mxu0 0.0
      %3328 = vmatpush.msra.mxu0 0.0
      %3329 = vmatpush.msra.mxu0 0.0
      %3330 = vmatpush.msra.mxu0 0.0
      %3331 = vmatpush.msra.mxu0 0.0
      %3332 = vmatpush.msra.mxu0 0.0
      %3333 = vmatpush.msra.mxu0 0.0
      %3334 = vmatpush.msra.mxu0 0.0
      %3335 = vmatpush.msra.mxu0 0.0
      %3336 = vmatpush.msra.mxu0 0.0
      %3337 = vmatpush.msra.mxu0 0.0
      %3338 = vmatpush.msra.mxu0 0.0
      %3339 = vmatpush.msra.mxu0 %v3228
      %3340 = vmatpush.msra.mxu0 %v3227
      %3341 = vmatmul.f32.gmra.mxu0 %v3230
      %v3342 = vpop.f32.mrf.mxu0
      %v3343 = vadd.f32 0.0, %v3342
      %3344 = vmatmul.f32.gmra.mxu0 %v3233
      %v3345 = vpop.f32.mrf.mxu0
      %v3346 = vadd.f32 0.0, %v3345
      %3347 = vmatmul.f32.gmra.mxu0 %v3236
      %v3348 = vpop.f32.mrf.mxu0
      %v3349 = vadd.f32 0.0, %v3348
      %3350 = vmatmul.f32.gmra.mxu0 %v3239
      %v3351 = vpop.f32.mrf.mxu0
      %v3352 = vadd.f32 0.0, %v3351
      %3353 = vmatmul.f32.gmra.mxu0 %v3242
      %v3354 = vpop.f32.mrf.mxu0
      %v3355 = vadd.f32 0.0, %v3354
      %3356 = vmatmul.f32.gmra.mxu0 %v3245
      %v3357 = vpop.f32.mrf.mxu0
      %v3358 = vadd.f32 0.0, %v3357
      %3359 = vmatmul.f32.gmra.mxu0 %v3248
      %v3360 = vpop.f32.mrf.mxu0
      %v3361 = vadd.f32 0.0, %v3360
      %3362 = vmatmul.f32.gmra.mxu0 %v3251
      %v3363 = vpop.f32.mrf.mxu0
      %v3364 = vadd.f32 0.0, %v3363
      %3365 = vmatmul.f32.gmra.mxu0 %v3254
      %v3366 = vpop.f32.mrf.mxu0
      %v3367 = vadd.f32 0.0, %v3366
      %3368 = vmatmul.f32.gmra.mxu0 %v3257
      %v3369 = vpop.f32.mrf.mxu0
      %v3370 = vadd.f32 0.0, %v3369
      %3371 = vmatmul.f32.gmra.mxu0 %v3260
      %v3372 = vpop.f32.mrf.mxu0
      %v3373 = vadd.f32 0.0, %v3372
      %3374 = vmatmul.f32.gmra.mxu0 %v3263
      %v3375 = vpop.f32.mrf.mxu0
      %v3376 = vadd.f32 0.0, %v3375
      %3377 = vmatmul.f32.gmra.mxu0 %v3266
      %v3378 = vpop.f32.mrf.mxu0
      %v3379 = vadd.f32 0.0, %v3378
      %3380 = vmatmul.f32.gmra.mxu0 %v3269
      %v3381 = vpop.f32.mrf.mxu0
      %v3382 = vadd.f32 0.0, %v3381
      %3383 = vmatmul.f32.gmra.mxu0 %v3272
      %v3384 = vpop.f32.mrf.mxu0
      %v3385 = vadd.f32 0.0, %v3384
      %3386 = vmatmul.f32.gmra.mxu0 %v3275
      %v3387 = vpop.f32.mrf.mxu0
      %v3388 = vadd.f32 0.0, %v3387
      %3389 = vmatmul.f32.gmra.mxu0 %v3278
      %v3390 = vpop.f32.mrf.mxu0
      %v3391 = vadd.f32 0.0, %v3390
      %3392 = vmatmul.f32.gmra.mxu0 %v3281
      %v3393 = vpop.f32.mrf.mxu0
      %v3394 = vadd.f32 0.0, %v3393
      %3395 = vmatmul.f32.gmra.mxu0 %v3284
      %v3396 = vpop.f32.mrf.mxu0
      %v3397 = vadd.f32 0.0, %v3396
      %3398 = vmatmul.f32.gmra.mxu0 %v3287
      %v3399 = vpop.f32.mrf.mxu0
      %v3400 = vadd.f32 0.0, %v3399
      %3401 = vmatmul.f32.gmra.mxu0 %v3290
      %v3402 = vpop.f32.mrf.mxu0
      %v3403 = vadd.f32 0.0, %v3402
      %3404 = vmatmul.f32.gmra.mxu0 %v3293
      %v3405 = vpop.f32.mrf.mxu0
      %v3406 = vadd.f32 0.0, %v3405
      %3407 = vmatmul.f32.gmra.mxu0 %v3296
      %v3408 = vpop.f32.mrf.mxu0
      %v3409 = vadd.f32 0.0, %v3408
      %3410 = vmatmul.f32.gmra.mxu0 %v3299
      %v3411 = vpop.f32.mrf.mxu0
      %v3412 = vadd.f32 0.0, %v3411
      %3413 = vmatmul.f32.gmra.mxu0 %v3302
      %v3414 = vpop.f32.mrf.mxu0
      %v3415 = vadd.f32 0.0, %v3414
      %3416 = vmatmul.f32.gmra.mxu0 %v3305
      %v3417 = vpop.f32.mrf.mxu0
      %v3418 = vadd.f32 0.0, %v3417
      %3419 = vmatmul.f32.gmra.mxu0 %v3308
      %v3420 = vpop.f32.mrf.mxu0
      %v3421 = vadd.f32 0.0, %v3420
      %3422 = vmatmul.f32.gmra.mxu0 %v3311
      %v3423 = vpop.f32.mrf.mxu0
      %v3424 = vadd.f32 0.0, %v3423
      %3425 = vmatmul.f32.gmra.mxu0 %v3314
      %v3426 = vpop.f32.mrf.mxu0
      %v3427 = vadd.f32 0.0, %v3426
      %3428 = vmatmul.f32.gmra.mxu0 %v3317
      %v3429 = vpop.f32.mrf.mxu0
      %v3430 = vadd.f32 0.0, %v3429
      %3431 = vmatmul.f32.gmra.mxu0 %v3320
      %v3432 = vpop.f32.mrf.mxu0
      %v3433 = vadd.f32 0.0, %v3432
      %3434 = vmatmul.f32.gmra.mxu0 %v3323
      %v3435 = vpop.f32.mrf.mxu0
      %v3436 = vadd.f32 0.0, %v3435
      %3437 = vdwg.mxu0
      %v3438 = vadd.f32 %v3162, %v3343
      %v3439 = vadd.f32 %v3163, %v3346
      %v3440 = vadd.f32 %v3164, %v3349
      %v3441 = vadd.f32 %v3165, %v3352
      %v3442 = vadd.f32 %v3166, %v3355
      %v3443 = vadd.f32 %v3167, %v3358
      %v3444 = vadd.f32 %v3168, %v3361
      %v3445 = vadd.f32 %v3169, %v3364
      %v3446 = vadd.f32 %v3170, %v3367
      %v3447 = vadd.f32 %v3171, %v3370
      %v3448 = vadd.f32 %v3172, %v3373
      %v3449 = vadd.f32 %v3173, %v3376
      %v3450 = vadd.f32 %v3174, %v3379
      %v3451 = vadd.f32 %v3175, %v3382
      %v3452 = vadd.f32 %v3176, %v3385
      %v3453 = vadd.f32 %v3177, %v3388
      %v3454 = vadd.f32 %v3178, %v3391
      %v3455 = vadd.f32 %v3179, %v3394
      %v3456 = vadd.f32 %v3180, %v3397
      %v3457 = vadd.f32 %v3181, %v3400
      %v3458 = vadd.f32 %v3182, %v3403
      %v3459 = vadd.f32 %v3183, %v3406
      %v3460 = vadd.f32 %v3184, %v3409
      %v3461 = vadd.f32 %v3185, %v3412
      %v3462 = vadd.f32 %v3186, %v3415
      %v3463 = vadd.f32 %v3187, %v3418
      %v3464 = vadd.f32 %v3188, %v3421
      %v3465 = vadd.f32 %v3189, %v3424
      %v3466 = vadd.f32 %v3190, %v3427
      %v3467 = vadd.f32 %v3191, %v3430
      %v3468 = vadd.f32 %v3192, %v3433
      %v3469 = vadd.f32 %v3193, %v3436
      %v3470 = vld [vmem:[%s1806 + $0x7] sm:$0xff]
      %v3471 = vld [vmem:[%s1806 + $0xf] sm:$0xff]
      %v3472 = vld [vmem:[%s1806 + $0x27] sm:$0xff]
      %v3473 = vld [vmem:[%s1806 + $0x2f] sm:$0xff]
      %v3474 = vld [vmem:[%s1806 + $0x47] sm:$0xff]
      %v3475 = vld [vmem:[%s1806 + $0x4f] sm:$0xff]
      %v3476 = vld [vmem:[%s1806 + $0x67] sm:$0xff]
      %v3477 = vld [vmem:[%s1806 + $0x6f] sm:$0xff]
      %v3478 = vld [vmem:[%s1806 + $0x87] sm:$0xff]
      %v3479 = vld [vmem:[%s1806 + $0x8f] sm:$0xff]
      %v3480 = vld [vmem:[%s1806 + $0xa7] sm:$0xff]
      %v3481 = vld [vmem:[%s1806 + $0xaf] sm:$0xff]
      %v3482 = vld [vmem:[%s1806 + $0xc7] sm:$0xff]
      %v3483 = vld [vmem:[%s1806 + $0xcf] sm:$0xff]
      %v3484 = vld [vmem:[%s1806 + $0xe7] sm:$0xff]
      %v3485 = vld [vmem:[%s1806 + $0xef] sm:$0xff]
      %v3486 = vld [vmem:[%s1806 + $0x107] sm:$0xff]
      %v3487 = vld [vmem:[%s1806 + $0x10f] sm:$0xff]
      %v3488 = vld [vmem:[%s1806 + $0x127] sm:$0xff]
      %v3489 = vld [vmem:[%s1806 + $0x12f] sm:$0xff]
      %v3490 = vld [vmem:[%s1806 + $0x147] sm:$0xff]
      %v3491 = vld [vmem:[%s1806 + $0x14f] sm:$0xff]
      %v3492 = vld [vmem:[%s1806 + $0x167] sm:$0xff]
      %v3493 = vld [vmem:[%s1806 + $0x16f] sm:$0xff]
      %v3494 = vld [vmem:[%s1806 + $0x187] sm:$0xff]
      %v3495 = vld [vmem:[%s1806 + $0x18f] sm:$0xff]
      %v3496 = vld [vmem:[%s1806 + $0x1a7] sm:$0xff]
      %v3497 = vld [vmem:[%s1806 + $0x1af] sm:$0xff]
      %v3498 = vld [vmem:[%s1806 + $0x1c7] sm:$0xff]
      %v3499 = vld [vmem:[%s1806 + $0x1cf] sm:$0xff]
      %v3500 = vld [vmem:[%s1806 + $0x1e7] sm:$0xff]
      %v3501 = vld [vmem:[%s1806 + $0x1ef] sm:$0xff]
      %s3502 = scalar_lea.vmem %s3, 96
      %v3503 = vld [vmem:[%s3502] sm:$0xff]
      %v3504 = vld [vmem:[%s3502 + $0x8] sm:$0xff]
      %v3506 = vsel %vm1279, %v3470, 0
      %v3509 = vsel %vm1279, %v3471, 0
      %v3512 = vsel %vm1279, %v3472, 0
      %v3515 = vsel %vm1279, %v3473, 0
      %v3518 = vsel %vm1279, %v3474, 0
      %v3521 = vsel %vm1279, %v3475, 0
      %v3524 = vsel %vm1279, %v3476, 0
      %v3527 = vsel %vm1279, %v3477, 0
      %v3530 = vsel %vm1279, %v3478, 0
      %v3533 = vsel %vm1279, %v3479, 0
      %v3536 = vsel %vm1279, %v3480, 0
      %v3539 = vsel %vm1279, %v3481, 0
      %v3542 = vsel %vm1279, %v3482, 0
      %v3545 = vsel %vm1279, %v3483, 0
      %v3548 = vsel %vm1279, %v3484, 0
      %v3551 = vsel %vm1279, %v3485, 0
      %v3554 = vsel %vm1279, %v3486, 0
      %v3557 = vsel %vm1279, %v3487, 0
      %v3560 = vsel %vm1279, %v3488, 0
      %v3563 = vsel %vm1279, %v3489, 0
      %v3566 = vsel %vm1279, %v3490, 0
      %v3569 = vsel %vm1279, %v3491, 0
      %v3572 = vsel %vm1279, %v3492, 0
      %v3575 = vsel %vm1279, %v3493, 0
      %v3578 = vsel %vm1279, %v3494, 0
      %v3581 = vsel %vm1279, %v3495, 0
      %v3584 = vsel %vm1279, %v3496, 0
      %v3587 = vsel %vm1279, %v3497, 0
      %v3590 = vsel %vm1279, %v3498, 0
      %v3593 = vsel %vm1279, %v3499, 0
      %v3596 = vsel %vm1279, %v3500, 0
      %v3599 = vsel %vm1279, %v3501, 0
      %3601 = vmatpush.msra.mxu0 0.0
      %3602 = vmatpush.msra.mxu0 0.0
      %3603 = vmatpush.msra.mxu0 0.0
      %3604 = vmatpush.msra.mxu0 0.0
      %3605 = vmatpush.msra.mxu0 0.0
      %3606 = vmatpush.msra.mxu0 0.0
      %3607 = vmatpush.msra.mxu0 0.0
      %3608 = vmatpush.msra.mxu0 0.0
      %3609 = vmatpush.msra.mxu0 0.0
      %3610 = vmatpush.msra.mxu0 0.0
      %3611 = vmatpush.msra.mxu0 0.0
      %3612 = vmatpush.msra.mxu0 0.0
      %3613 = vmatpush.msra.mxu0 0.0
      %3614 = vmatpush.msra.mxu0 0.0
      %3615 = vmatpush.msra.mxu0 %v3504
      %3616 = vmatpush.msra.mxu0 %v3503
      %3617 = vmatmul.f32.gmra.mxu0 %v3506
      %v3618 = vpop.f32.mrf.mxu0
      %v3619 = vadd.f32 0.0, %v3618
      %3620 = vmatmul.f32.gmra.mxu0 %v3509
      %v3621 = vpop.f32.mrf.mxu0
      %v3622 = vadd.f32 0.0, %v3621
      %3623 = vmatmul.f32.gmra.mxu0 %v3512
      %v3624 = vpop.f32.mrf.mxu0
      %v3625 = vadd.f32 0.0, %v3624
      %3626 = vmatmul.f32.gmra.mxu0 %v3515
      %v3627 = vpop.f32.mrf.mxu0
      %v3628 = vadd.f32 0.0, %v3627
      %3629 = vmatmul.f32.gmra.mxu0 %v3518
      %v3630 = vpop.f32.mrf.mxu0
      %v3631 = vadd.f32 0.0, %v3630
      %3632 = vmatmul.f32.gmra.mxu0 %v3521
      %v3633 = vpop.f32.mrf.mxu0
      %v3634 = vadd.f32 0.0, %v3633
      %3635 = vmatmul.f32.gmra.mxu0 %v3524
      %v3636 = vpop.f32.mrf.mxu0
      %v3637 = vadd.f32 0.0, %v3636
      %3638 = vmatmul.f32.gmra.mxu0 %v3527
      %v3639 = vpop.f32.mrf.mxu0
      %v3640 = vadd.f32 0.0, %v3639
      %3641 = vmatmul.f32.gmra.mxu0 %v3530
      %v3642 = vpop.f32.mrf.mxu0
      %v3643 = vadd.f32 0.0, %v3642
      %3644 = vmatmul.f32.gmra.mxu0 %v3533
      %v3645 = vpop.f32.mrf.mxu0
      %v3646 = vadd.f32 0.0, %v3645
      %3647 = vmatmul.f32.gmra.mxu0 %v3536
      %v3648 = vpop.f32.mrf.mxu0
      %v3649 = vadd.f32 0.0, %v3648
      %3650 = vmatmul.f32.gmra.mxu0 %v3539
      %v3651 = vpop.f32.mrf.mxu0
      %v3652 = vadd.f32 0.0, %v3651
      %3653 = vmatmul.f32.gmra.mxu0 %v3542
      %v3654 = vpop.f32.mrf.mxu0
      %v3655 = vadd.f32 0.0, %v3654
      %3656 = vmatmul.f32.gmra.mxu0 %v3545
      %v3657 = vpop.f32.mrf.mxu0
      %v3658 = vadd.f32 0.0, %v3657
      %3659 = vmatmul.f32.gmra.mxu0 %v3548
      %v3660 = vpop.f32.mrf.mxu0
      %v3661 = vadd.f32 0.0, %v3660
      %3662 = vmatmul.f32.gmra.mxu0 %v3551
      %v3663 = vpop.f32.mrf.mxu0
      %v3664 = vadd.f32 0.0, %v3663
      %3665 = vmatmul.f32.gmra.mxu0 %v3554
      %v3666 = vpop.f32.mrf.mxu0
      %v3667 = vadd.f32 0.0, %v3666
      %3668 = vmatmul.f32.gmra.mxu0 %v3557
      %v3669 = vpop.f32.mrf.mxu0
      %v3670 = vadd.f32 0.0, %v3669
      %3671 = vmatmul.f32.gmra.mxu0 %v3560
      %v3672 = vpop.f32.mrf.mxu0
      %v3673 = vadd.f32 0.0, %v3672
      %3674 = vmatmul.f32.gmra.mxu0 %v3563
      %v3675 = vpop.f32.mrf.mxu0
      %v3676 = vadd.f32 0.0, %v3675
      %3677 = vmatmul.f32.gmra.mxu0 %v3566
      %v3678 = vpop.f32.mrf.mxu0
      %v3679 = vadd.f32 0.0, %v3678
      %3680 = vmatmul.f32.gmra.mxu0 %v3569
      %v3681 = vpop.f32.mrf.mxu0
      %v3682 = vadd.f32 0.0, %v3681
      %3683 = vmatmul.f32.gmra.mxu0 %v3572
      %v3684 = vpop.f32.mrf.mxu0
      %v3685 = vadd.f32 0.0, %v3684
      %3686 = vmatmul.f32.gmra.mxu0 %v3575
      %v3687 = vpop.f32.mrf.mxu0
      %v3688 = vadd.f32 0.0, %v3687
      %3689 = vmatmul.f32.gmra.mxu0 %v3578
      %v3690 = vpop.f32.mrf.mxu0
      %v3691 = vadd.f32 0.0, %v3690
      %3692 = vmatmul.f32.gmra.mxu0 %v3581
      %v3693 = vpop.f32.mrf.mxu0
      %v3694 = vadd.f32 0.0, %v3693
      %3695 = vmatmul.f32.gmra.mxu0 %v3584
      %v3696 = vpop.f32.mrf.mxu0
      %v3697 = vadd.f32 0.0, %v3696
      %3698 = vmatmul.f32.gmra.mxu0 %v3587
      %v3699 = vpop.f32.mrf.mxu0
      %v3700 = vadd.f32 0.0, %v3699
      %3701 = vmatmul.f32.gmra.mxu0 %v3590
      %v3702 = vpop.f32.mrf.mxu0
      %v3703 = vadd.f32 0.0, %v3702
      %3704 = vmatmul.f32.gmra.mxu0 %v3593
      %v3705 = vpop.f32.mrf.mxu0
      %v3706 = vadd.f32 0.0, %v3705
      %3707 = vmatmul.f32.gmra.mxu0 %v3596
      %v3708 = vpop.f32.mrf.mxu0
      %v3709 = vadd.f32 0.0, %v3708
      %3710 = vmatmul.f32.gmra.mxu0 %v3599
      %v3711 = vpop.f32.mrf.mxu0
      %v3712 = vadd.f32 0.0, %v3711
      %3713 = vdwg.mxu0
      %v3714 = vadd.f32 %v3438, %v3619
      %v3715 = vadd.f32 %v3439, %v3622
      %v3716 = vadd.f32 %v3440, %v3625
      %v3717 = vadd.f32 %v3441, %v3628
      %v3718 = vadd.f32 %v3442, %v3631
      %v3719 = vadd.f32 %v3443, %v3634
      %v3720 = vadd.f32 %v3444, %v3637
      %v3721 = vadd.f32 %v3445, %v3640
      %v3722 = vadd.f32 %v3446, %v3643
      %v3723 = vadd.f32 %v3447, %v3646
      %v3724 = vadd.f32 %v3448, %v3649
      %v3725 = vadd.f32 %v3449, %v3652
      %v3726 = vadd.f32 %v3450, %v3655
      %v3727 = vadd.f32 %v3451, %v3658
      %v3728 = vadd.f32 %v3452, %v3661
      %v3729 = vadd.f32 %v3453, %v3664
      %v3730 = vadd.f32 %v3454, %v3667
      %v3731 = vadd.f32 %v3455, %v3670
      %v3732 = vadd.f32 %v3456, %v3673
      %v3733 = vadd.f32 %v3457, %v3676
      %v3734 = vadd.f32 %v3458, %v3679
      %v3735 = vadd.f32 %v3459, %v3682
      %v3736 = vadd.f32 %v3460, %v3685
      %v3737 = vadd.f32 %v3461, %v3688
      %v3738 = vadd.f32 %v3462, %v3691
      %v3739 = vadd.f32 %v3463, %v3694
      %v3740 = vadd.f32 %v3464, %v3697
      %v3741 = vadd.f32 %v3465, %v3700
      %v3742 = vadd.f32 %v3466, %v3703
      %v3743 = vadd.f32 %v3467, %v3706
      %v3744 = vadd.f32 %v3468, %v3709
      %v3745 = vadd.f32 %v3469, %v3712
      %v3746 = vld [vmem:[%s1806 + $0x8] sm:$0xff]
      %v3747 = vld [vmem:[%s1806 + $0x10] sm:$0xff]
      %v3748 = vld [vmem:[%s1806 + $0x28] sm:$0xff]
      %v3749 = vld [vmem:[%s1806 + $0x30] sm:$0xff]
      %v3750 = vld [vmem:[%s1806 + $0x48] sm:$0xff]
      %v3751 = vld [vmem:[%s1806 + $0x50] sm:$0xff]
      %v3752 = vld [vmem:[%s1806 + $0x68] sm:$0xff]
      %v3753 = vld [vmem:[%s1806 + $0x70] sm:$0xff]
      %v3754 = vld [vmem:[%s1806 + $0x88] sm:$0xff]
      %v3755 = vld [vmem:[%s1806 + $0x90] sm:$0xff]
      %v3756 = vld [vmem:[%s1806 + $0xa8] sm:$0xff]
      %v3757 = vld [vmem:[%s1806 + $0xb0] sm:$0xff]
      %v3758 = vld [vmem:[%s1806 + $0xc8] sm:$0xff]
      %v3759 = vld [vmem:[%s1806 + $0xd0] sm:$0xff]
      %v3760 = vld [vmem:[%s1806 + $0xe8] sm:$0xff]
      %v3761 = vld [vmem:[%s1806 + $0xf0] sm:$0xff]
      %v3762 = vld [vmem:[%s1806 + $0x108] sm:$0xff]
      %v3763 = vld [vmem:[%s1806 + $0x110] sm:$0xff]
      %v3764 = vld [vmem:[%s1806 + $0x128] sm:$0xff]
      %v3765 = vld [vmem:[%s1806 + $0x130] sm:$0xff]
      %v3766 = vld [vmem:[%s1806 + $0x148] sm:$0xff]
      %v3767 = vld [vmem:[%s1806 + $0x150] sm:$0xff]
      %v3768 = vld [vmem:[%s1806 + $0x168] sm:$0xff]
      %v3769 = vld [vmem:[%s1806 + $0x170] sm:$0xff]
      %v3770 = vld [vmem:[%s1806 + $0x188] sm:$0xff]
      %v3771 = vld [vmem:[%s1806 + $0x190] sm:$0xff]
      %v3772 = vld [vmem:[%s1806 + $0x1a8] sm:$0xff]
      %v3773 = vld [vmem:[%s1806 + $0x1b0] sm:$0xff]
      %v3774 = vld [vmem:[%s1806 + $0x1c8] sm:$0xff]
      %v3775 = vld [vmem:[%s1806 + $0x1d0] sm:$0xff]
      %v3776 = vld [vmem:[%s1806 + $0x1e8] sm:$0xff]
      %v3777 = vld [vmem:[%s1806 + $0x1f0] sm:$0xff]
      %s3778 = scalar_lea.vmem %s3, 112
      %v3779 = vld [vmem:[%s3778] sm:$0xff]
      %v3780 = vld [vmem:[%s3778 + $0x8] sm:$0xff]
      %v3782 = vsel %vm1279, %v3746, 0
      %v3785 = vsel %vm1279, %v3747, 0
      %v3788 = vsel %vm1279, %v3748, 0
      %v3791 = vsel %vm1279, %v3749, 0
      %v3794 = vsel %vm1279, %v3750, 0
      %v3797 = vsel %vm1279, %v3751, 0
      %v3800 = vsel %vm1279, %v3752, 0
      %v3803 = vsel %vm1279, %v3753, 0
      %v3806 = vsel %vm1279, %v3754, 0
      %v3809 = vsel %vm1279, %v3755, 0
      %v3812 = vsel %vm1279, %v3756, 0
      %v3815 = vsel %vm1279, %v3757, 0
      %v3818 = vsel %vm1279, %v3758, 0
      %v3821 = vsel %vm1279, %v3759, 0
      %v3824 = vsel %vm1279, %v3760, 0
      %v3827 = vsel %vm1279, %v3761, 0
      %v3830 = vsel %vm1279, %v3762, 0
      %v3833 = vsel %vm1279, %v3763, 0
      %v3836 = vsel %vm1279, %v3764, 0
      %v3839 = vsel %vm1279, %v3765, 0
      %v3842 = vsel %vm1279, %v3766, 0
      %v3845 = vsel %vm1279, %v3767, 0
      %v3848 = vsel %vm1279, %v3768, 0
      %v3851 = vsel %vm1279, %v3769, 0
      %v3854 = vsel %vm1279, %v3770, 0
      %v3857 = vsel %vm1279, %v3771, 0
      %v3860 = vsel %vm1279, %v3772, 0
      %v3863 = vsel %vm1279, %v3773, 0
      %v3866 = vsel %vm1279, %v3774, 0
      %v3869 = vsel %vm1279, %v3775, 0
      %v3872 = vsel %vm1279, %v3776, 0
      %v3875 = vsel %vm1279, %v3777, 0
      %3877 = vmatpush.msra.mxu0 0.0
      %3878 = vmatpush.msra.mxu0 0.0
      %3879 = vmatpush.msra.mxu0 0.0
      %3880 = vmatpush.msra.mxu0 0.0
      %3881 = vmatpush.msra.mxu0 0.0
      %3882 = vmatpush.msra.mxu0 0.0
      %3883 = vmatpush.msra.mxu0 0.0
      %3884 = vmatpush.msra.mxu0 0.0
      %3885 = vmatpush.msra.mxu0 0.0
      %3886 = vmatpush.msra.mxu0 0.0
      %3887 = vmatpush.msra.mxu0 0.0
      %3888 = vmatpush.msra.mxu0 0.0
      %3889 = vmatpush.msra.mxu0 0.0
      %3890 = vmatpush.msra.mxu0 0.0
      %3891 = vmatpush.msra.mxu0 %v3780
      %3892 = vmatpush.msra.mxu0 %v3779
      %3893 = vmatmul.f32.gmra.mxu0 %v3782
      %v3894 = vpop.f32.mrf.mxu0
      %v3895 = vadd.f32 0.0, %v3894
      %3896 = vmatmul.f32.gmra.mxu0 %v3785
      %v3897 = vpop.f32.mrf.mxu0
      %v3898 = vadd.f32 0.0, %v3897
      %3899 = vmatmul.f32.gmra.mxu0 %v3788
      %v3900 = vpop.f32.mrf.mxu0
      %v3901 = vadd.f32 0.0, %v3900
      %3902 = vmatmul.f32.gmra.mxu0 %v3791
      %v3903 = vpop.f32.mrf.mxu0
      %v3904 = vadd.f32 0.0, %v3903
      %3905 = vmatmul.f32.gmra.mxu0 %v3794
      %v3906 = vpop.f32.mrf.mxu0
      %v3907 = vadd.f32 0.0, %v3906
      %3908 = vmatmul.f32.gmra.mxu0 %v3797
      %v3909 = vpop.f32.mrf.mxu0
      %v3910 = vadd.f32 0.0, %v3909
      %3911 = vmatmul.f32.gmra.mxu0 %v3800
      %v3912 = vpop.f32.mrf.mxu0
      %v3913 = vadd.f32 0.0, %v3912
      %3914 = vmatmul.f32.gmra.mxu0 %v3803
      %v3915 = vpop.f32.mrf.mxu0
      %v3916 = vadd.f32 0.0, %v3915
      %3917 = vmatmul.f32.gmra.mxu0 %v3806
      %v3918 = vpop.f32.mrf.mxu0
      %v3919 = vadd.f32 0.0, %v3918
      %3920 = vmatmul.f32.gmra.mxu0 %v3809
      %v3921 = vpop.f32.mrf.mxu0
      %v3922 = vadd.f32 0.0, %v3921
      %3923 = vmatmul.f32.gmra.mxu0 %v3812
      %v3924 = vpop.f32.mrf.mxu0
      %v3925 = vadd.f32 0.0, %v3924
      %3926 = vmatmul.f32.gmra.mxu0 %v3815
      %v3927 = vpop.f32.mrf.mxu0
      %v3928 = vadd.f32 0.0, %v3927
      %3929 = vmatmul.f32.gmra.mxu0 %v3818
      %v3930 = vpop.f32.mrf.mxu0
      %v3931 = vadd.f32 0.0, %v3930
      %3932 = vmatmul.f32.gmra.mxu0 %v3821
      %v3933 = vpop.f32.mrf.mxu0
      %v3934 = vadd.f32 0.0, %v3933
      %3935 = vmatmul.f32.gmra.mxu0 %v3824
      %v3936 = vpop.f32.mrf.mxu0
      %v3937 = vadd.f32 0.0, %v3936
      %3938 = vmatmul.f32.gmra.mxu0 %v3827
      %v3939 = vpop.f32.mrf.mxu0
      %v3940 = vadd.f32 0.0, %v3939
      %3941 = vmatmul.f32.gmra.mxu0 %v3830
      %v3942 = vpop.f32.mrf.mxu0
      %v3943 = vadd.f32 0.0, %v3942
      %3944 = vmatmul.f32.gmra.mxu0 %v3833
      %v3945 = vpop.f32.mrf.mxu0
      %v3946 = vadd.f32 0.0, %v3945
      %3947 = vmatmul.f32.gmra.mxu0 %v3836
      %v3948 = vpop.f32.mrf.mxu0
      %v3949 = vadd.f32 0.0, %v3948
      %3950 = vmatmul.f32.gmra.mxu0 %v3839
      %v3951 = vpop.f32.mrf.mxu0
      %v3952 = vadd.f32 0.0, %v3951
      %3953 = vmatmul.f32.gmra.mxu0 %v3842
      %v3954 = vpop.f32.mrf.mxu0
      %v3955 = vadd.f32 0.0, %v3954
      %3956 = vmatmul.f32.gmra.mxu0 %v3845
      %v3957 = vpop.f32.mrf.mxu0
      %v3958 = vadd.f32 0.0, %v3957
      %3959 = vmatmul.f32.gmra.mxu0 %v3848
      %v3960 = vpop.f32.mrf.mxu0
      %v3961 = vadd.f32 0.0, %v3960
      %3962 = vmatmul.f32.gmra.mxu0 %v3851
      %v3963 = vpop.f32.mrf.mxu0
      %v3964 = vadd.f32 0.0, %v3963
      %3965 = vmatmul.f32.gmra.mxu0 %v3854
      %v3966 = vpop.f32.mrf.mxu0
      %v3967 = vadd.f32 0.0, %v3966
      %3968 = vmatmul.f32.gmra.mxu0 %v3857
      %v3969 = vpop.f32.mrf.mxu0
      %v3970 = vadd.f32 0.0, %v3969
      %3971 = vmatmul.f32.gmra.mxu0 %v3860
      %v3972 = vpop.f32.mrf.mxu0
      %v3973 = vadd.f32 0.0, %v3972
      %3974 = vmatmul.f32.gmra.mxu0 %v3863
      %v3975 = vpop.f32.mrf.mxu0
      %v3976 = vadd.f32 0.0, %v3975
      %3977 = vmatmul.f32.gmra.mxu0 %v3866
      %v3978 = vpop.f32.mrf.mxu0
      %v3979 = vadd.f32 0.0, %v3978
      %3980 = vmatmul.f32.gmra.mxu0 %v3869
      %v3981 = vpop.f32.mrf.mxu0
      %v3982 = vadd.f32 0.0, %v3981
      %3983 = vmatmul.f32.gmra.mxu0 %v3872
      %v3984 = vpop.f32.mrf.mxu0
      %v3985 = vadd.f32 0.0, %v3984
      %3986 = vmatmul.f32.gmra.mxu0 %v3875
      %v3987 = vpop.f32.mrf.mxu0
      %v3988 = vadd.f32 0.0, %v3987
      %3989 = vdwg.mxu0
      %v3990 = vadd.f32 %v3714, %v3895
      %v3991 = vadd.f32 %v3715, %v3898
      %v3992 = vadd.f32 %v3716, %v3901
      %v3993 = vadd.f32 %v3717, %v3904
      %v3994 = vadd.f32 %v3718, %v3907
      %v3995 = vadd.f32 %v3719, %v3910
      %v3996 = vadd.f32 %v3720, %v3913
      %v3997 = vadd.f32 %v3721, %v3916
      %v3998 = vadd.f32 %v3722, %v3919
      %v3999 = vadd.f32 %v3723, %v3922
      %v4000 = vadd.f32 %v3724, %v3925
      %v4001 = vadd.f32 %v3725, %v3928
      %v4002 = vadd.f32 %v3726, %v3931
      %v4003 = vadd.f32 %v3727, %v3934
      %v4004 = vadd.f32 %v3728, %v3937
      %v4005 = vadd.f32 %v3729, %v3940
      %v4006 = vadd.f32 %v3730, %v3943
      %v4007 = vadd.f32 %v3731, %v3946
      %v4008 = vadd.f32 %v3732, %v3949
      %v4009 = vadd.f32 %v3733, %v3952
      %v4010 = vadd.f32 %v3734, %v3955
      %v4011 = vadd.f32 %v3735, %v3958
      %v4012 = vadd.f32 %v3736, %v3961
      %v4013 = vadd.f32 %v3737, %v3964
      %v4014 = vadd.f32 %v3738, %v3967
      %v4015 = vadd.f32 %v3739, %v3970
      %v4016 = vadd.f32 %v3740, %v3973
      %v4017 = vadd.f32 %v3741, %v3976
      %v4018 = vadd.f32 %v3742, %v3979
      %v4019 = vadd.f32 %v3743, %v3982
      %v4020 = vadd.f32 %v3744, %v3985
      %v4021 = vadd.f32 %v3745, %v3988
      %v4022 = vld [vmem:[%s1806 + $0x9] sm:$0xff]
      %v4023 = vld [vmem:[%s1806 + $0x11] sm:$0xff]
      %v4024 = vld [vmem:[%s1806 + $0x29] sm:$0xff]
      %v4025 = vld [vmem:[%s1806 + $0x31] sm:$0xff]
      %v4026 = vld [vmem:[%s1806 + $0x49] sm:$0xff]
      %v4027 = vld [vmem:[%s1806 + $0x51] sm:$0xff]
      %v4028 = vld [vmem:[%s1806 + $0x69] sm:$0xff]
      %v4029 = vld [vmem:[%s1806 + $0x71] sm:$0xff]
      %v4030 = vld [vmem:[%s1806 + $0x89] sm:$0xff]
      %v4031 = vld [vmem:[%s1806 + $0x91] sm:$0xff]
      %v4032 = vld [vmem:[%s1806 + $0xa9] sm:$0xff]
      %v4033 = vld [vmem:[%s1806 + $0xb1] sm:$0xff]
      %v4034 = vld [vmem:[%s1806 + $0xc9] sm:$0xff]
      %v4035 = vld [vmem:[%s1806 + $0xd1] sm:$0xff]
      %v4036 = vld [vmem:[%s1806 + $0xe9] sm:$0xff]
      %v4037 = vld [vmem:[%s1806 + $0xf1] sm:$0xff]
      %v4038 = vld [vmem:[%s1806 + $0x109] sm:$0xff]
      %v4039 = vld [vmem:[%s1806 + $0x111] sm:$0xff]
      %v4040 = vld [vmem:[%s1806 + $0x129] sm:$0xff]
      %v4041 = vld [vmem:[%s1806 + $0x131] sm:$0xff]
      %v4042 = vld [vmem:[%s1806 + $0x149] sm:$0xff]
      %v4043 = vld [vmem:[%s1806 + $0x151] sm:$0xff]
      %v4044 = vld [vmem:[%s1806 + $0x169] sm:$0xff]
      %v4045 = vld [vmem:[%s1806 + $0x171] sm:$0xff]
      %v4046 = vld [vmem:[%s1806 + $0x189] sm:$0xff]
      %v4047 = vld [vmem:[%s1806 + $0x191] sm:$0xff]
      %v4048 = vld [vmem:[%s1806 + $0x1a9] sm:$0xff]
      %v4049 = vld [vmem:[%s1806 + $0x1b1] sm:$0xff]
      %v4050 = vld [vmem:[%s1806 + $0x1c9] sm:$0xff]
      %v4051 = vld [vmem:[%s1806 + $0x1d1] sm:$0xff]
      %v4052 = vld [vmem:[%s1806 + $0x1e9] sm:$0xff]
      %v4053 = vld [vmem:[%s1806 + $0x1f1] sm:$0xff]
      %s4054 = scalar_lea.vmem %s3, 128
      %v4055 = vld [vmem:[%s4054] sm:$0xff]
      %v4056 = vld [vmem:[%s4054 + $0x8] sm:$0xff]
      %v4058 = vsel %vm1279, %v4022, 0
      %v4061 = vsel %vm1279, %v4023, 0
      %v4064 = vsel %vm1279, %v4024, 0
      %v4067 = vsel %vm1279, %v4025, 0
      %v4070 = vsel %vm1279, %v4026, 0
      %v4073 = vsel %vm1279, %v4027, 0
      %v4076 = vsel %vm1279, %v4028, 0
      %v4079 = vsel %vm1279, %v4029, 0
      %v4082 = vsel %vm1279, %v4030, 0
      %v4085 = vsel %vm1279, %v4031, 0
      %v4088 = vsel %vm1279, %v4032, 0
      %v4091 = vsel %vm1279, %v4033, 0
      %v4094 = vsel %vm1279, %v4034, 0
      %v4097 = vsel %vm1279, %v4035, 0
      %v4100 = vsel %vm1279, %v4036, 0
      %v4103 = vsel %vm1279, %v4037, 0
      %v4106 = vsel %vm1279, %v4038, 0
      %v4109 = vsel %vm1279, %v4039, 0
      %v4112 = vsel %vm1279, %v4040, 0
      %v4115 = vsel %vm1279, %v4041, 0
      %v4118 = vsel %vm1279, %v4042, 0
      %v4121 = vsel %vm1279, %v4043, 0
      %v4124 = vsel %vm1279, %v4044, 0
      %v4127 = vsel %vm1279, %v4045, 0
      %v4130 = vsel %vm1279, %v4046, 0
      %v4133 = vsel %vm1279, %v4047, 0
      %v4136 = vsel %vm1279, %v4048, 0
      %v4139 = vsel %vm1279, %v4049, 0
      %v4142 = vsel %vm1279, %v4050, 0
      %v4145 = vsel %vm1279, %v4051, 0
      %v4148 = vsel %vm1279, %v4052, 0
      %v4151 = vsel %vm1279, %v4053, 0
      %4153 = vmatpush.msra.mxu0 0.0
      %4154 = vmatpush.msra.mxu0 0.0
      %4155 = vmatpush.msra.mxu0 0.0
      %4156 = vmatpush.msra.mxu0 0.0
      %4157 = vmatpush.msra.mxu0 0.0
      %4158 = vmatpush.msra.mxu0 0.0
      %4159 = vmatpush.msra.mxu0 0.0
      %4160 = vmatpush.msra.mxu0 0.0
      %4161 = vmatpush.msra.mxu0 0.0
      %4162 = vmatpush.msra.mxu0 0.0
      %4163 = vmatpush.msra.mxu0 0.0
      %4164 = vmatpush.msra.mxu0 0.0
      %4165 = vmatpush.msra.mxu0 0.0
      %4166 = vmatpush.msra.mxu0 0.0
      %4167 = vmatpush.msra.mxu0 %v4056
      %4168 = vmatpush.msra.mxu0 %v4055
      %4169 = vmatmul.f32.gmra.mxu0 %v4058
      %v4170 = vpop.f32.mrf.mxu0
      %v4171 = vadd.f32 0.0, %v4170
      %4172 = vmatmul.f32.gmra.mxu0 %v4061
      %v4173 = vpop.f32.mrf.mxu0
      %v4174 = vadd.f32 0.0, %v4173
      %4175 = vmatmul.f32.gmra.mxu0 %v4064
      %v4176 = vpop.f32.mrf.mxu0
      %v4177 = vadd.f32 0.0, %v4176
      %4178 = vmatmul.f32.gmra.mxu0 %v4067
      %v4179 = vpop.f32.mrf.mxu0
      %v4180 = vadd.f32 0.0, %v4179
      %4181 = vmatmul.f32.gmra.mxu0 %v4070
      %v4182 = vpop.f32.mrf.mxu0
      %v4183 = vadd.f32 0.0, %v4182
      %4184 = vmatmul.f32.gmra.mxu0 %v4073
      %v4185 = vpop.f32.mrf.mxu0
      %v4186 = vadd.f32 0.0, %v4185
      %4187 = vmatmul.f32.gmra.mxu0 %v4076
      %v4188 = vpop.f32.mrf.mxu0
      %v4189 = vadd.f32 0.0, %v4188
      %4190 = vmatmul.f32.gmra.mxu0 %v4079
      %v4191 = vpop.f32.mrf.mxu0
      %v4192 = vadd.f32 0.0, %v4191
      %4193 = vmatmul.f32.gmra.mxu0 %v4082
      %v4194 = vpop.f32.mrf.mxu0
      %v4195 = vadd.f32 0.0, %v4194
      %4196 = vmatmul.f32.gmra.mxu0 %v4085
      %v4197 = vpop.f32.mrf.mxu0
      %v4198 = vadd.f32 0.0, %v4197
      %4199 = vmatmul.f32.gmra.mxu0 %v4088
      %v4200 = vpop.f32.mrf.mxu0
      %v4201 = vadd.f32 0.0, %v4200
      %4202 = vmatmul.f32.gmra.mxu0 %v4091
      %v4203 = vpop.f32.mrf.mxu0
      %v4204 = vadd.f32 0.0, %v4203
      %4205 = vmatmul.f32.gmra.mxu0 %v4094
      %v4206 = vpop.f32.mrf.mxu0
      %v4207 = vadd.f32 0.0, %v4206
      %4208 = vmatmul.f32.gmra.mxu0 %v4097
      %v4209 = vpop.f32.mrf.mxu0
      %v4210 = vadd.f32 0.0, %v4209
      %4211 = vmatmul.f32.gmra.mxu0 %v4100
      %v4212 = vpop.f32.mrf.mxu0
      %v4213 = vadd.f32 0.0, %v4212
      %4214 = vmatmul.f32.gmra.mxu0 %v4103
      %v4215 = vpop.f32.mrf.mxu0
      %v4216 = vadd.f32 0.0, %v4215
      %4217 = vmatmul.f32.gmra.mxu0 %v4106
      %v4218 = vpop.f32.mrf.mxu0
      %v4219 = vadd.f32 0.0, %v4218
      %4220 = vmatmul.f32.gmra.mxu0 %v4109
      %v4221 = vpop.f32.mrf.mxu0
      %v4222 = vadd.f32 0.0, %v4221
      %4223 = vmatmul.f32.gmra.mxu0 %v4112
      %v4224 = vpop.f32.mrf.mxu0
      %v4225 = vadd.f32 0.0, %v4224
      %4226 = vmatmul.f32.gmra.mxu0 %v4115
      %v4227 = vpop.f32.mrf.mxu0
      %v4228 = vadd.f32 0.0, %v4227
      %4229 = vmatmul.f32.gmra.mxu0 %v4118
      %v4230 = vpop.f32.mrf.mxu0
      %v4231 = vadd.f32 0.0, %v4230
      %4232 = vmatmul.f32.gmra.mxu0 %v4121
      %v4233 = vpop.f32.mrf.mxu0
      %v4234 = vadd.f32 0.0, %v4233
      %4235 = vmatmul.f32.gmra.mxu0 %v4124
      %v4236 = vpop.f32.mrf.mxu0
      %v4237 = vadd.f32 0.0, %v4236
      %4238 = vmatmul.f32.gmra.mxu0 %v4127
      %v4239 = vpop.f32.mrf.mxu0
      %v4240 = vadd.f32 0.0, %v4239
      %4241 = vmatmul.f32.gmra.mxu0 %v4130
      %v4242 = vpop.f32.mrf.mxu0
      %v4243 = vadd.f32 0.0, %v4242
      %4244 = vmatmul.f32.gmra.mxu0 %v4133
      %v4245 = vpop.f32.mrf.mxu0
      %v4246 = vadd.f32 0.0, %v4245
      %4247 = vmatmul.f32.gmra.mxu0 %v4136
      %v4248 = vpop.f32.mrf.mxu0
      %v4249 = vadd.f32 0.0, %v4248
      %4250 = vmatmul.f32.gmra.mxu0 %v4139
      %v4251 = vpop.f32.mrf.mxu0
      %v4252 = vadd.f32 0.0, %v4251
      %4253 = vmatmul.f32.gmra.mxu0 %v4142
      %v4254 = vpop.f32.mrf.mxu0
      %v4255 = vadd.f32 0.0, %v4254
      %4256 = vmatmul.f32.gmra.mxu0 %v4145
      %v4257 = vpop.f32.mrf.mxu0
      %v4258 = vadd.f32 0.0, %v4257
      %4259 = vmatmul.f32.gmra.mxu0 %v4148
      %v4260 = vpop.f32.mrf.mxu0
      %v4261 = vadd.f32 0.0, %v4260
      %4262 = vmatmul.f32.gmra.mxu0 %v4151
      %v4263 = vpop.f32.mrf.mxu0
      %v4264 = vadd.f32 0.0, %v4263
      %4265 = vdwg.mxu0
      %v4266 = vadd.f32 %v3990, %v4171
      %v4267 = vadd.f32 %v3991, %v4174
      %v4268 = vadd.f32 %v3992, %v4177
      %v4269 = vadd.f32 %v3993, %v4180
      %v4270 = vadd.f32 %v3994, %v4183
      %v4271 = vadd.f32 %v3995, %v4186
      %v4272 = vadd.f32 %v3996, %v4189
      %v4273 = vadd.f32 %v3997, %v4192
      %v4274 = vadd.f32 %v3998, %v4195
      %v4275 = vadd.f32 %v3999, %v4198
      %v4276 = vadd.f32 %v4000, %v4201
      %v4277 = vadd.f32 %v4001, %v4204
      %v4278 = vadd.f32 %v4002, %v4207
      %v4279 = vadd.f32 %v4003, %v4210
      %v4280 = vadd.f32 %v4004, %v4213
      %v4281 = vadd.f32 %v4005, %v4216
      %v4282 = vadd.f32 %v4006, %v4219
      %v4283 = vadd.f32 %v4007, %v4222
      %v4284 = vadd.f32 %v4008, %v4225
      %v4285 = vadd.f32 %v4009, %v4228
      %v4286 = vadd.f32 %v4010, %v4231
      %v4287 = vadd.f32 %v4011, %v4234
      %v4288 = vadd.f32 %v4012, %v4237
      %v4289 = vadd.f32 %v4013, %v4240
      %v4290 = vadd.f32 %v4014, %v4243
      %v4291 = vadd.f32 %v4015, %v4246
      %v4292 = vadd.f32 %v4016, %v4249
      %v4293 = vadd.f32 %v4017, %v4252
      %v4294 = vadd.f32 %v4018, %v4255
      %v4295 = vadd.f32 %v4019, %v4258
      %v4296 = vadd.f32 %v4020, %v4261
      %v4297 = vadd.f32 %v4021, %v4264
      %v4298 = vld [vmem:[%s4] sm:$0x1]
      %v4300 = vperm.slane %v4298, 0
      %v4302 = vadd.f32 %v4266, %v4300
      %v4303 = vadd.f32 %v4267, %v4300
      %v4304 = vadd.f32 %v4268, %v4300
      %v4305 = vadd.f32 %v4269, %v4300
      %v4306 = vadd.f32 %v4270, %v4300
      %v4307 = vadd.f32 %v4271, %v4300
      %v4308 = vadd.f32 %v4272, %v4300
      %v4309 = vadd.f32 %v4273, %v4300
      %v4310 = vadd.f32 %v4274, %v4300
      %v4311 = vadd.f32 %v4275, %v4300
      %v4312 = vadd.f32 %v4276, %v4300
      %v4313 = vadd.f32 %v4277, %v4300
      %v4314 = vadd.f32 %v4278, %v4300
      %v4315 = vadd.f32 %v4279, %v4300
      %v4316 = vadd.f32 %v4280, %v4300
      %v4317 = vadd.f32 %v4281, %v4300
      %v4318 = vadd.f32 %v4282, %v4300
      %v4319 = vadd.f32 %v4283, %v4300
      %v4320 = vadd.f32 %v4284, %v4300
      %v4321 = vadd.f32 %v4285, %v4300
      %v4322 = vadd.f32 %v4286, %v4300
      %v4323 = vadd.f32 %v4287, %v4300
      %v4324 = vadd.f32 %v4288, %v4300
      %v4325 = vadd.f32 %v4289, %v4300
      %v4326 = vadd.f32 %v4290, %v4300
      %v4327 = vadd.f32 %v4291, %v4300
      %v4328 = vadd.f32 %v4292, %v4300
      %v4329 = vadd.f32 %v4293, %v4300
      %v4330 = vadd.f32 %v4294, %v4300
      %v4331 = vadd.f32 %v4295, %v4300
      %v4332 = vadd.f32 %v4296, %v4300
      %v4333 = vadd.f32 %v4297, %v4300
      %v4334 = vmax.f32 %v4302, 0.0
      %v4335 = vmax.f32 %v4303, 0.0
      %v4336 = vmax.f32 %v4304, 0.0
      %v4337 = vmax.f32 %v4305, 0.0
      %v4338 = vmax.f32 %v4306, 0.0
      %v4339 = vmax.f32 %v4307, 0.0
      %v4340 = vmax.f32 %v4308, 0.0
      %v4341 = vmax.f32 %v4309, 0.0
      %v4342 = vmax.f32 %v4310, 0.0
      %v4343 = vmax.f32 %v4311, 0.0
      %v4344 = vmax.f32 %v4312, 0.0
      %v4345 = vmax.f32 %v4313, 0.0
      %v4346 = vmax.f32 %v4314, 0.0
      %v4347 = vmax.f32 %v4315, 0.0
      %v4348 = vmax.f32 %v4316, 0.0
      %v4349 = vmax.f32 %v4317, 0.0
      %v4350 = vmax.f32 %v4318, 0.0
      %v4351 = vmax.f32 %v4319, 0.0
      %v4352 = vmax.f32 %v4320, 0.0
      %v4353 = vmax.f32 %v4321, 0.0
      %v4354 = vmax.f32 %v4322, 0.0
      %v4355 = vmax.f32 %v4323, 0.0
      %v4356 = vmax.f32 %v4324, 0.0
      %v4357 = vmax.f32 %v4325, 0.0
      %v4358 = vmax.f32 %v4326, 0.0
      %v4359 = vmax.f32 %v4327, 0.0
      %v4360 = vmax.f32 %v4328, 0.0
      %v4361 = vmax.f32 %v4329, 0.0
      %v4362 = vmax.f32 %v4330, 0.0
      %v4363 = vmax.f32 %v4331, 0.0
      %v4364 = vmax.f32 %v4332, 0.0
      %v4365 = vmax.f32 %v4333, 0.0
      %vm4366 = vcmask 64512
      %4367 = vst.msk [vmem:[#allocation4] sm:$0xff] %vm4366, %v4334
      %4368 = vst.msk [vmem:[#allocation4 + $0x8] sm:$0xff] %vm4366, %v4335
      %4369 = vst.msk [vmem:[#allocation4 + $0x10] sm:$0xff] %vm4366, %v4336
      %4370 = vst.msk [vmem:[#allocation4 + $0x18] sm:$0xff] %vm4366, %v4337
      %4371 = vst.msk [vmem:[#allocation4 + $0x20] sm:$0xff] %vm4366, %v4338
      %4372 = vst.msk [vmem:[#allocation4 + $0x28] sm:$0xff] %vm4366, %v4339
      %4373 = vst.msk [vmem:[#allocation4 + $0x30] sm:$0xff] %vm4366, %v4340
      %4374 = vst.msk [vmem:[#allocation4 + $0x38] sm:$0xff] %vm4366, %v4341
      %4375 = vst.msk [vmem:[#allocation4 + $0x40] sm:$0xff] %vm4366, %v4342
      %4376 = vst.msk [vmem:[#allocation4 + $0x48] sm:$0xff] %vm4366, %v4343
      %4377 = vst.msk [vmem:[#allocation4 + $0x50] sm:$0xff] %vm4366, %v4344
      %4378 = vst.msk [vmem:[#allocation4 + $0x58] sm:$0xff] %vm4366, %v4345
      %4379 = vst.msk [vmem:[#allocation4 + $0x60] sm:$0xff] %vm4366, %v4346
      %4380 = vst.msk [vmem:[#allocation4 + $0x68] sm:$0xff] %vm4366, %v4347
      %4381 = vst.msk [vmem:[#allocation4 + $0x70] sm:$0xff] %vm4366, %v4348
      %4382 = vst.msk [vmem:[#allocation4 + $0x78] sm:$0xff] %vm4366, %v4349
      %4383 = vst.msk [vmem:[#allocation4 + $0x80] sm:$0xff] %vm4366, %v4350
      %4384 = vst.msk [vmem:[#allocation4 + $0x88] sm:$0xff] %vm4366, %v4351
      %4385 = vst.msk [vmem:[#allocation4 + $0x90] sm:$0xff] %vm4366, %v4352
      %4386 = vst.msk [vmem:[#allocation4 + $0x98] sm:$0xff] %vm4366, %v4353
      %4387 = vst.msk [vmem:[#allocation4 + $0xa0] sm:$0xff] %vm4366, %v4354
      %4388 = vst.msk [vmem:[#allocation4 + $0xa8] sm:$0xff] %vm4366, %v4355
      %4389 = vst.msk [vmem:[#allocation4 + $0xb0] sm:$0xff] %vm4366, %v4356
      %4390 = vst.msk [vmem:[#allocation4 + $0xb8] sm:$0xff] %vm4366, %v4357
      %4391 = vst.msk [vmem:[#allocation4 + $0xc0] sm:$0xff] %vm4366, %v4358
      %4392 = vst.msk [vmem:[#allocation4 + $0xc8] sm:$0xff] %vm4366, %v4359
      %4393 = vst.msk [vmem:[#allocation4 + $0xd0] sm:$0xff] %vm4366, %v4360
      %4394 = vst.msk [vmem:[#allocation4 + $0xd8] sm:$0xff] %vm4366, %v4361
      %4395 = vst.msk [vmem:[#allocation4 + $0xe0] sm:$0xff] %vm4366, %v4362
      %4396 = vst.msk [vmem:[#allocation4 + $0xe8] sm:$0xff] %vm4366, %v4363
      %4397 = vst.msk [vmem:[#allocation4 + $0xf0] sm:$0xff] %vm4366, %v4364
      %4398 = vst.msk [vmem:[#allocation4 + $0xf8] sm:$0xff] %vm4366, %v4365
      %v4399 = vld [vmem:[#allocation4] ss:$2 sm:$0xff]
      %s4400 = scalar_lea.vmem [#allocation4], 16
      %v4401 = vld [vmem:[%s4400] ss:$2 sm:$0xff]
      %s4402 = scalar_lea.vmem [#allocation4], 32
      %v4403 = vld [vmem:[%s4402] ss:$2 sm:$0xff]
      %s4404 = scalar_lea.vmem [#allocation4], 48
      %v4405 = vld [vmem:[%s4404] ss:$2 sm:$0xff]
      %s4406 = scalar_lea.vmem [#allocation4], 64
      %v4407 = vld [vmem:[%s4406] ss:$2 sm:$0xff]
      %s4408 = scalar_lea.vmem [#allocation4], 80
      %v4409 = vld [vmem:[%s4408] ss:$2 sm:$0xff]
      %s4410 = scalar_lea.vmem [#allocation4], 96
      %v4411 = vld [vmem:[%s4410] ss:$2 sm:$0xff]
      %s4412 = scalar_lea.vmem [#allocation4], 112
      %v4413 = vld [vmem:[%s4412] ss:$2 sm:$0xff]
      %s4414 = scalar_lea.vmem [#allocation4], 128
      %v4415 = vld [vmem:[%s4414] ss:$2 sm:$0xff]
      %s4416 = scalar_lea.vmem [#allocation4], 144
      %v4417 = vld [vmem:[%s4416] ss:$2 sm:$0xff]
      %s4418 = scalar_lea.vmem [#allocation4], 160
      %v4419 = vld [vmem:[%s4418] ss:$2 sm:$0xff]
      %s4420 = scalar_lea.vmem [#allocation4], 176
      %v4421 = vld [vmem:[%s4420] ss:$2 sm:$0xff]
      %s4422 = scalar_lea.vmem [#allocation4], 192
      %v4423 = vld [vmem:[%s4422] ss:$2 sm:$0xff]
      %s4424 = scalar_lea.vmem [#allocation4], 208
      %v4425 = vld [vmem:[%s4424] ss:$2 sm:$0xff]
      %s4426 = scalar_lea.vmem [#allocation4], 224
      %v4427 = vld [vmem:[%s4426] ss:$2 sm:$0xff]
      %s4428 = scalar_lea.vmem [#allocation4], 240
      %v4429 = vld [vmem:[%s4428] ss:$2 sm:$0xff]
      %s4430 = scalar_lea.vmem [#allocation4], 1
      %v4431 = vld [vmem:[%s4430] ss:$2 sm:$0xff]
      %s4432 = scalar_lea.vmem [#allocation4], 17
      %v4433 = vld [vmem:[%s4432] ss:$2 sm:$0xff]
      %s4434 = scalar_lea.vmem [#allocation4], 33
      %v4435 = vld [vmem:[%s4434] ss:$2 sm:$0xff]
      %s4436 = scalar_lea.vmem [#allocation4], 49
      %v4437 = vld [vmem:[%s4436] ss:$2 sm:$0xff]
      %s4438 = scalar_lea.vmem [#allocation4], 65
      %v4439 = vld [vmem:[%s4438] ss:$2 sm:$0xff]
      %s4440 = scalar_lea.vmem [#allocation4], 81
      %v4441 = vld [vmem:[%s4440] ss:$2 sm:$0xff]
      %s4442 = scalar_lea.vmem [#allocation4], 97
      %v4443 = vld [vmem:[%s4442] ss:$2 sm:$0xff]
      %s4444 = scalar_lea.vmem [#allocation4], 113
      %v4445 = vld [vmem:[%s4444] ss:$2 sm:$0xff]
      %s4446 = scalar_lea.vmem [#allocation4], 129
      %v4447 = vld [vmem:[%s4446] ss:$2 sm:$0xff]
      %s4448 = scalar_lea.vmem [#allocation4], 145
      %v4449 = vld [vmem:[%s4448] ss:$2 sm:$0xff]
      %s4450 = scalar_lea.vmem [#allocation4], 161
      %v4451 = vld [vmem:[%s4450] ss:$2 sm:$0xff]
      %s4452 = scalar_lea.vmem [#allocation4], 177
      %v4453 = vld [vmem:[%s4452] ss:$2 sm:$0xff]
      %s4454 = scalar_lea.vmem [#allocation4], 193
      %v4455 = vld [vmem:[%s4454] ss:$2 sm:$0xff]
      %s4456 = scalar_lea.vmem [#allocation4], 209
      %v4457 = vld [vmem:[%s4456] ss:$2 sm:$0xff]
      %s4458 = scalar_lea.vmem [#allocation4], 225
      %v4459 = vld [vmem:[%s4458] ss:$2 sm:$0xff]
      %s4460 = scalar_lea.vmem [#allocation4], 241
      %v4461 = vld [vmem:[%s4460] ss:$2 sm:$0xff]
      %v4462 = vmax.f32 %v4399, %v4431
      %v4463 = vmax.f32 %v4401, %v4433
      %v4464 = vmax.f32 %v4403, %v4435
      %v4465 = vmax.f32 %v4405, %v4437
      %v4466 = vmax.f32 %v4407, %v4439
      %v4467 = vmax.f32 %v4409, %v4441
      %v4468 = vmax.f32 %v4411, %v4443
      %v4469 = vmax.f32 %v4413, %v4445
      %v4470 = vmax.f32 %v4415, %v4447
      %v4471 = vmax.f32 %v4417, %v4449
      %v4472 = vmax.f32 %v4419, %v4451
      %v4473 = vmax.f32 %v4421, %v4453
      %v4474 = vmax.f32 %v4423, %v4455
      %v4475 = vmax.f32 %v4425, %v4457
      %v4476 = vmax.f32 %v4427, %v4459
      %v4477 = vmax.f32 %v4429, %v4461
      %v4478 = vmax.f32 %v4462, %v4463
      %4479 = vst.msk [vmem:[%s224] sm:$0xff] %vm4366, %v4478
      %v4480 = vmax.f32 %v4464, %v4465
      %4481 = vst.msk [vmem:[%s224 + $0x8] sm:$0xff] %vm4366, %v4480
      %v4482 = vmax.f32 %v4466, %v4467
      %4483 = vst.msk [vmem:[%s224 + $0x10] sm:$0xff] %vm4366, %v4482
      %v4484 = vmax.f32 %v4468, %v4469
      %4485 = vst.msk [vmem:[%s224 + $0x18] sm:$0xff] %vm4366, %v4484
      %v4486 = vmax.f32 %v4470, %v4471
      %4487 = vst.msk [vmem:[%s224 + $0x20] sm:$0xff] %vm4366, %v4486
      %v4488 = vmax.f32 %v4472, %v4473
      %4489 = vst.msk [vmem:[%s224 + $0x28] sm:$0xff] %vm4366, %v4488
      %v4490 = vmax.f32 %v4474, %v4475
      %4491 = vst.msk [vmem:[%s224 + $0x30] sm:$0xff] %vm4366, %v4490
      %v4492 = vmax.f32 %v4476, %v4477
      %4493 = vst.msk [vmem:[%s224 + $0x38] sm:$0xff] %vm4366, %v4492
      %p4494 = scmp.lt.s32.totalorder %s16, 1
      %s4495 = scalar_select %p4494, %s16, 1
      %s4496 = smul.addr %s4495, 8
      %s4497 = smul.addr %s4496, 8
      %s4498 = scalar_lea.vmem %s5, %s4497
      // Predicated region
      $region41: #{net_forward.2} parent=39 // pred_check
        %p4499 = pneg %p144
      $region42: #{net_forward.2} parent=39 // pred_check_branch
        %4501 = sbr.rel (%p4499) target = $region44
      $region43: #{net_forward.2} parent=39 // pred_region
        _
      $region44: #{net_forward.2} parent=39 // pred_fallthru
        _
    $region40: #{net_forward.2} parent=5 // pred_fallthru
      _
    %p4502 = scmp.le.s32.totalorder 2, %s11
    // Predicated region
    $region45: #{net_forward.2} parent=5 // pred_check
      %p4503 = pneg %p4502
    $region46: #{net_forward.2} parent=5 // pred_check_branch
      %4505 = sbr.rel (%p4503) target = $region48
    $region47: #{net_forward.2} parent=5 // pred_region
      %s4506 = ssub.s32 %s11, 2
      // Predicated region
      $region49: #{net_forward.2} parent=47 // pred_check
        %p4507 = pneg %p150
      $region50: #{net_forward.2} parent=47 // pred_check_branch
        %4509 = sbr.rel (%p4507) target = $region52
      $region51: #{net_forward.2} parent=47 // pred_region
        %p4510 = scmp.lt.s32.totalorder %s17, 1
        %s4511 = scalar_select %p4510, %s17, 1
        %s4512 = smul.addr %s4511, 8
        %s4513 = smul.addr %s4512, 8
        %s4514 = scalar_lea.vmem %s5, %s4513
      $region52: #{net_forward.2} parent=47 // pred_fallthru
        _
    $region48: #{net_forward.2} parent=5 // pred_fallthru
      _
  $region6: #{net_forward.2} parent=0 // loop_footer
    %s15 = sadd.s32 1, %s11
  $region7: #{net_forward.2} parent=0 // loop_footer_branch
    %10 = sbr.rel target = $region3
  $region8: #{net_forward.2} parent=0 // loop_exit
    _

</llo_original>
